<compile_context>
chip_gen: v6e
topology: v6e:2x2x1
jax: 0.10.0
libtpu: 0.0.40
codegen_flags: <defaults>
</compile_context>

<pallas_src>
import functools

import jax
import jax.numpy as jnp
from jax import lax
from jax.experimental import pallas as pl
from jax.experimental.pallas import tpu as pltpu


# ----------------------------------------------------------------------------
# Pallas kernel: 3-layer GRU (chunked gate-input matmuls + serial recurrence)
# followed by the two fused linear heads on the last timestep.
# ----------------------------------------------------------------------------
def bpnet_kernel(x_ref,                                     # (Tc*Bp, Xp) f32 raw input
                 wih0_ref, gxb0_ref, whh0_ref, bhhn0_ref,   # layer 0
                 wih1_ref, gxb1_ref, whh1_ref, bhhn1_ref,   # layer 1
                 wih2_ref, gxb2_ref, whh2_ref, bhhn2_ref,   # layer 2
                 wl_ref, bl_ref,                            # fused heads (Hp,2),(1,2)
                 out_ref,                                   # (Bp, 2)
                 seq_ref,                                   # scratch (Tc*Bp, Hp) bf16
                 gx_ref,                                    # scratch (C*Bp, 3Hp) f32
                 *, T, Tc, C, Bp, Hp, unroll):

    n_full = T // C
    rem = T - n_full * C

    # Deterministically zero the never-written tail rows of the hidden-sequence
    # scratch (they feed padded rows of later chunk matmuls that are never
    # consumed by the recurrence).
    if Tc > T:
        seq_ref[pl.ds(T * Bp, (Tc - T) * Bp), :] = jnp.zeros(
            ((Tc - T) * Bp, Hp), seq_ref.dtype)

    def run_layer(src_ref, wih_ref, gxb_ref, whh_ref, bhhn_ref, store_seq):
        # Hoist weight loads and bias broadcasts out of every loop
        # (JAX does not CSE broadcast_in_dim).
        wih = wih_ref[...]                                    # (K, 3Hp)
        gxb = gxb_ref[...]                                    # (1, 3Hp)
        whh = whh_ref[...]                                    # (Hp, 3Hp) bf16
        bhhn = jnp.broadcast_to(bhhn_ref[...], (Bp, Hp))      # n-gate b_hh only

        def run_chunk(chunk_row0, n_steps, h):
            # Gate input for the whole chunk: one batched MXU matmul,
            # off the serial recurrence path.
            src = src_ref[pl.ds(chunk_row0, C * Bp), :]
            gx_ref[...] = (jnp.dot(src, wih, preferred_element_type=jnp.float32)
                           + gxb)

            def step(i, h):
                lrow = pl.multiple_of(i * Bp, 8)
                gx_t = gx_ref[pl.ds(lrow, Bp), :]             # (Bp, 3Hp) f32
                # Only this tiny (Bp,Hp)x(Hp,3Hp) matmul is on the serial path.
                # TODO(synk): pltpu.matmul_push_rhs to keep Whh resident.
                gh = jnp.dot(h.astype(jnp.bfloat16), whh,
                             preferred_element_type=jnp.float32)
                r = jax.nn.sigmoid(gx_t[:, 0:Hp] + gh[:, 0:Hp])
                z = jax.nn.sigmoid(gx_t[:, Hp:2 * Hp] + gh[:, Hp:2 * Hp])
                # PyTorch GRU: n = tanh(W_in x + b_in + r*(W_hn h + b_hn)).
                n = jnp.tanh(gx_t[:, 2 * Hp:3 * Hp]
                             + r * (gh[:, 2 * Hp:3 * Hp] + bhhn))
                h_new = (1.0 - z) * n + z * h
                if store_seq:                                 # static flag
                    seq_ref[pl.ds(chunk_row0 + lrow, Bp), :] = (
                        h_new.astype(seq_ref.dtype))
                return h_new

            return lax.fori_loop(0, n_steps, step, h, unroll=unroll)

        h = jnp.zeros((Bp, Hp), jnp.float32)
        if n_full > 0:
            def full_chunk(c, h):
                row0 = pl.multiple_of(c * (C * Bp), 8)
                return run_chunk(row0, C, h)
            h = lax.fori_loop(0, n_full, full_chunk, h)
        if rem > 0:                                           # ragged tail chunk
            h = run_chunk(n_full * C * Bp, rem, h)
        return h

    # Layer 0 reads the raw input; layers 1/2 read (and then overwrite, strictly
    # after reading each chunk) the bf16 hidden-sequence scratch.
    run_layer(x_ref, wih0_ref, gxb0_ref, whh0_ref, bhhn0_ref, store_seq=True)
    run_layer(seq_ref, wih1_ref, gxb1_ref, whh1_ref, bhhn1_ref, store_seq=True)
    h_last = run_layer(seq_ref, wih2_ref, gxb2_ref, whh2_ref, bhhn2_ref,
                       store_seq=False)

    # Fused linear heads on the last timestep: one (Bp, 2) MXU call.
    out_ref[...] = (jnp.dot(h_last, wl_ref[...],
                            preferred_element_type=jnp.float32) + bl_ref[...])


# ----------------------------------------------------------------------------
# Parameter packing: pad each gate block to Hp lanes, pad input dims, fuse
# biases and the two heads.  Gates laid out [r | z | n], each Hp lanes wide.
# ----------------------------------------------------------------------------
def _pack_gates_T(w, H, Hp, in_pad):
    """w: (3H, in) PyTorch layout, gates [r|z|n] along rows -> (in_pad, 3Hp)."""
    in_dim = w.shape[1]
    out = jnp.zeros((in_pad, 3 * Hp), jnp.float32)
    for g in range(3):
        out = out.at[:in_dim, g * Hp:g * Hp + H].set(w[g * H:(g + 1) * H, :].T)
    return out


def _pack_gates_vec(v, H, Hp):
    out = jnp.zeros((3 * Hp,), jnp.float32)
    for g in range(3):
        out = out.at[g * Hp:g * Hp + H].set(v[g * H:(g + 1) * H])
    return out


def pack_params(params, Hp, Xp):
    H = params["whh0"].shape[1]
    packed = {}
    for l in range(3):
        wih, whh = params[f"wih{l}"], params[f"whh{l}"]
        bih, bhh = params[f"bih{l}"], params[f"bhh{l}"]
        in_pad = Xp if l == 0 else Hp                  # <- fixes the shape bug
        wdt = jnp.float32 if l == 0 else jnp.bfloat16  # bf16 MXU operands
        packed[f"wih{l}_pT"] = _pack_gates_T(wih, H, Hp, in_pad).astype(wdt)
        packed[f"whh{l}_pT"] = _pack_gates_T(whh, H, Hp, Hp).astype(jnp.bfloat16)
        bih_p = _pack_gates_vec(bih, H, Hp)
        bhh_p = _pack_gates_vec(bhh, H, Hp)
        # b_ih (all gates) + b_hh (r, z only) folded into the chunked gx matmul;
        # b_hh_n stays inside the recurrence (it is scaled by r) — n slab only.
        packed[f"gxb{l}"] = (bih_p + bhh_p.at[2 * Hp:].set(0.0)).reshape(1, 3 * Hp)
        packed[f"bhhn{l}"] = (jnp.zeros((Hp,), jnp.float32)
                              .at[:H].set(bhh[2 * H:3 * H]).reshape(1, Hp))
    wl = jnp.concatenate([params["wl1"].T, params["wl2"].T], axis=1)   # (H, 2)
    packed["wl_p"] = jnp.zeros((Hp, 2), jnp.float32).at[:H, :].set(wl)
    packed["bl"] = jnp.concatenate([params["bl1"], params["bl2"]]).reshape(1, 2)
    return packed


# ----------------------------------------------------------------------------
# Wrapper
# ----------------------------------------------------------------------------
def bpnet_forward(ppg_x, ecg_x, packed):
    """ppg_x, ecg_x: (B, 1, T) float32. Returns ((B, 1), (B, 1))."""
    B, _, T = ppg_x.shape
    Hp = packed["whh0_pT"].shape[0]
    Xp = packed["wih0_pT"].shape[0]
    Bp = max(8, ((B + 7) // 8) * 8)          # pad batch to a sublane tile
    C = min(T, 128)                          # time-chunk length (bounds VMEM)
    Tc = ((T + C - 1) // C) * C
    unroll = True if T <= 32 else 16

    # Raw input, padded to (Tc, Bp, Xp) and flattened to a 2-D, tile-friendly slab.
    fusion = jnp.concatenate([ppg_x, ecg_x], axis=1).astype(jnp.float32)  # (B, 2, T)
    x = jnp.transpose(fusion, (2, 0, 1))                                  # (T, B, 2)
    x = jnp.pad(x, ((0, Tc - T), (0, Bp - B), (0, Xp - 2)))
    x = x.reshape(Tc * Bp, Xp)

    kern = functools.partial(bpnet_kernel, T=T, Tc=Tc, C=C, Bp=Bp, Hp=Hp,
                             unroll=unroll)
    vmem = pl.BlockSpec(memory_space=pltpu.MemorySpace.VMEM)

    # Explicit VMEM budget: inputs + scratch, x2 margin for double-buffering
    # plus slack for weights/misc.
    vmem_bytes = int(2 * (x.size * 4 + Tc * Bp * Hp * 2 + C * Bp * 3 * Hp * 4
                          + 3 * (Xp + 2 * Hp) * 3 * Hp * 4) + (8 << 20))
    vmem_bytes = min(max(vmem_bytes, 32 * 1024 * 1024), 100 * 1024 * 1024)

    out = pl.pallas_call(
        kern,
        out_shape=jax.ShapeDtypeStruct((Bp, 2), jnp.float32),
        in_specs=[vmem] * 15,
        out_specs=vmem,
        scratch_shapes=[pltpu.VMEM((Tc * Bp, Hp), jnp.bfloat16),      # hidden seq
                        pltpu.VMEM((C * Bp, 3 * Hp), jnp.float32)],   # gx chunk
        compiler_params=pltpu.CompilerParams(vmem_limit_bytes=vmem_bytes),
    )(x,
      packed["wih0_pT"], packed["gxb0"], packed["whh0_pT"], packed["bhhn0"],
      packed["wih1_pT"], packed["gxb1"], packed["whh1_pT"], packed["bhhn1"],
      packed["wih2_pT"], packed["gxb2"], packed["whh2_pT"], packed["bhhn2"],
      packed["wl_p"], packed["bl"])
    return out[:B, 0:1], out[:B, 1:2]


# ----------------------------------------------------------------------------
# Deterministic PyTorch-layout parameter init (uniform(-1/sqrt(H), 1/sqrt(H)))
# ----------------------------------------------------------------------------
def init_params(key, model_width):
    H = model_width
    k = 1.0 / jnp.sqrt(jnp.float32(H))
    keys = jax.random.split(key, 16)
    u = lambda kk, shape: jax.random.uniform(kk, shape, jnp.float32, -k, k)

    params = {}
    in_dims = [2, H, H]
    for l in range(3):
        base = l * 4
        params[f"wih{l}"] = u(keys[base + 0], (3 * H, in_dims[l]))   # weight_ih_l{k}
        params[f"whh{l}"] = u(keys[base + 1], (3 * H, H))            # weight_hh_l{k}
        params[f"bih{l}"] = u(keys[base + 2], (3 * H,))
        params[f"bhh{l}"] = u(keys[base + 3], (3 * H,))
    params["wl1"] = u(keys[12], (1, H)); params["bl1"] = u(keys[13], (1,))
    params["wl2"] = u(keys[14], (1, H)); params["bl2"] = u(keys[15], (1,))
    return params


# ----------------------------------------------------------------------------
# Pure-JAX reference (for correctness check)
# ----------------------------------------------------------------------------
def bpnet_reference(ppg_x, ecg_x, params):
    fusion = jnp.concatenate([ppg_x, ecg_x], axis=1)               # (B, 2, T)
    x = jnp.transpose(fusion, (0, 2, 1)).astype(jnp.float32)       # (B, T, 2)
    B, T, _ = x.shape
    H = params["whh0"].shape[1]

    seq = x
    for l in range(3):
        wih_T, whh_T = params[f"wih{l}"].T, params[f"whh{l}"].T
        bih, bhh = params[f"bih{l}"], params[f"bhh{l}"]

        def step(h, x_t, wih_T=wih_T, whh_T=whh_T, bih=bih, bhh=bhh):
            gx = x_t @ wih_T + bih
            gh = h @ whh_T + bhh
            r = jax.nn.sigmoid(gx[:, :H] + gh[:, :H])
            z = jax.nn.sigmoid(gx[:, H:2 * H] + gh[:, H:2 * H])
            n = jnp.tanh(gx[:, 2 * H:] + r * gh[:, 2 * H:])
            h_new = (1.0 - z) * n + z * h
            return h_new, h_new

        _, ys = lax.scan(step, jnp.zeros((B, H), jnp.float32),
                         jnp.transpose(seq, (1, 0, 2)))
        seq = jnp.transpose(ys, (1, 0, 2))

    h_last = seq[:, -1, :]
    out1 = h_last @ params["wl1"].T + params["bl1"]
    out2 = h_last @ params["wl2"].T + params["bl2"]
    return out1, out2


if __name__ == "__main__":
    B, T, H = 2, 8, 32          # batch, sequence length, model_width
    Hp = ((H + 127) // 128) * 128
    Xp = 8                      # input feature dim (2) padded to one sublane tile

    key = jax.random.PRNGKey(0)
    k_ppg, k_ecg, k_param = jax.random.split(key, 3)
    ppg_x = jax.random.normal(k_ppg, (B, 1, T), jnp.float32)
    ecg_x = jax.random.normal(k_ecg, (B, 1, T), jnp.float32)
    params = init_params(k_param, H)
    packed = pack_params(params, Hp, Xp)

    out1, out2 = jax.jit(bpnet_forward)(ppg_x, ecg_x, packed)
    jax.block_until_ready((out1, out2))

    ref1, ref2 = bpnet_reference(ppg_x, ecg_x, params)
    assert out1.shape == (B, 1) and out2.shape == (B, 1)
    # bf16 MXU operands (weights + hidden state) -> compare against the f32
    # reference at a bf16-appropriate tolerance.
    assert jnp.allclose(out1, ref1, rtol=2e-2, atol=2e-2), (out1, ref1)
    assert jnp.allclose(out2, ref2, rtol=2e-2, atol=2e-2), (out2, ref2)

    print("KERNEL_OK")
</pallas_src>

<mosaic_0001>
module attributes {stable_mosaic.version = 11 : i64} {
  func.func @bpnet_kernel(%arg0: memref<64x8xf32, #tpu.memory_space<vmem>>, %arg1: memref<8x384xf32, #tpu.memory_space<vmem>>, %arg2: memref<1x384xf32, #tpu.memory_space<vmem>>, %arg3: memref<128x384xbf16, #tpu.memory_space<vmem>>, %arg4: memref<1x128xf32, #tpu.memory_space<vmem>>, %arg5: memref<128x384xbf16, #tpu.memory_space<vmem>>, %arg6: memref<1x384xf32, #tpu.memory_space<vmem>>, %arg7: memref<128x384xbf16, #tpu.memory_space<vmem>>, %arg8: memref<1x128xf32, #tpu.memory_space<vmem>>, %arg9: memref<128x384xbf16, #tpu.memory_space<vmem>>, %arg10: memref<1x384xf32, #tpu.memory_space<vmem>>, %arg11: memref<128x384xbf16, #tpu.memory_space<vmem>>, %arg12: memref<1x128xf32, #tpu.memory_space<vmem>>, %arg13: memref<128x2xf32, #tpu.memory_space<vmem>>, %arg14: memref<1x2xf32, #tpu.memory_space<vmem>>, %arg15: memref<8x2xf32, #tpu.memory_space<vmem>>, %arg16: memref<64x128xbf16, #tpu.memory_space<vmem>>, %arg17: memref<64x384xf32, #tpu.memory_space<vmem>>) attributes {dimension_semantics = [], scalar_prefetch = 0 : i64, scratch_operands = 2 : i64, tpu.core_type = #tpu.core_type<tc>} {
    %c0 = arith.constant 0 : index
    %c0_0 = arith.constant 0 : index
    %0 = vector.load %arg1[%c0, %c0_0] : memref<8x384xf32, #tpu.memory_space<vmem>>, vector<8x384xf32>
    %c0_1 = arith.constant 0 : index
    %c0_2 = arith.constant 0 : index
    %1 = vector.load %arg2[%c0_1, %c0_2] : memref<1x384xf32, #tpu.memory_space<vmem>>, vector<1x384xf32>
    %c0_3 = arith.constant 0 : index
    %c0_4 = arith.constant 0 : index
    %2 = vector.load %arg3[%c0_3, %c0_4] : memref<128x384xbf16, #tpu.memory_space<vmem>>, vector<128x384xbf16>
    %c0_5 = arith.constant 0 : index
    %c0_6 = arith.constant 0 : index
    %3 = vector.load %arg4[%c0_5, %c0_6] : memref<1x128xf32, #tpu.memory_space<vmem>>, vector<1x128xf32>
    %4 = vector.shape_cast %3 : vector<1x128xf32> to vector<1x128xf32>
    %5 = vector.broadcast %4 : vector<1x128xf32> to vector<8x128xf32>
    %cst = arith.constant 0.000000e+00 : f32
    %6 = vector.broadcast %cst : f32 to vector<8x128xf32>
    %c0_i32 = arith.constant 0 : i32
    %c64_i32 = arith.constant 64 : i32
    %7 = arith.muli %c0_i32, %c64_i32 : i32
    %8 = tpu.assume_multiple %7, 8 : i32
    %9 = arith.index_cast %8 : i32 to index
    %c0_7 = arith.constant 0 : index
    %10 = vector.load %arg0[%9, %c0_7] : memref<64x8xf32, #tpu.memory_space<vmem>>, vector<64x8xf32>
    %cst_8 = arith.constant dense<0.000000e+00> : vector<64x384xf32>
    %11 = tpu.matmul %10, %0, %cst_8 {dimension_numbers = #tpu.dot_dimension_numbers<[1], [0], [0], [1], [0, 0, 1, 1], [], []>} : vector<64x8xf32>, vector<8x384xf32>, vector<64x384xf32> -> vector<64x384xf32>
    %12 = vector.broadcast %1 : vector<1x384xf32> to vector<64x384xf32>
    %13 = arith.addf %11, %12 : vector<64x384xf32>
    %c0_9 = arith.constant 0 : index
    %c0_10 = arith.constant 0 : index
    %14 = vector.load %arg17[%c0_9, %c0_10] : memref<64x384xf32, #tpu.memory_space<vmem>>, vector<64x384xf32>
    tpu.vector_store %arg17[%c0_9, %c0_10], %13 {strides = array<i32>} : memref<64x384xf32, #tpu.memory_space<vmem>>, vector<64x384xf32>,
    %c0_i32_11 = arith.constant 0 : i32
    %c8_i32 = arith.constant 8 : i32
    %15 = arith.muli %c0_i32_11, %c8_i32 : i32
    %16 = tpu.assume_multiple %15, 8 : i32
    %17 = arith.index_cast %16 : i32 to index
    %c0_12 = arith.constant 0 : index
    %18 = vector.load %arg17[%17, %c0_12] : memref<64x384xf32, #tpu.memory_space<vmem>>, vector<8x384xf32>
    %19 = arith.truncf %6 : vector<8x128xf32> to vector<8x128xbf16>
    %cst_13 = arith.constant dense<0.000000e+00> : vector<8x384xf32>
    %20 = tpu.matmul %19, %2, %cst_13 {dimension_numbers = #tpu.dot_dimension_numbers<[1], [0], [0], [1], [0, 0, 1, 1], [], []>} : vector<8x128xbf16>, vector<128x384xbf16>, vector<8x384xf32> -> vector<8x384xf32>
    %21 = vector.extract_strided_slice %18 {offsets = [0, 0], sizes = [8, 128], strides = [1, 1]} : vector<8x384xf32> to vector<8x128xf32>
    %22 = vector.extract_strided_slice %20 {offsets = [0, 0], sizes = [8, 128], strides = [1, 1]} : vector<8x384xf32> to vector<8x128xf32>
    %23 = arith.addf %21, %22 : vector<8x128xf32>
    %24 = arith.negf %23 : vector<8x128xf32>
    %25 = math.exp %24 : vector<8x128xf32>
    %cst_14 = arith.constant 1.000000e+00 : f32
    %26 = vector.broadcast %cst_14 : f32 to vector<8x128xf32>
    %27 = arith.addf %26, %25 : vector<8x128xf32>
    %28 = arith.divf %26, %27 : vector<8x128xf32>
    %29 = vector.extract_strided_slice %18 {offsets = [0, 128], sizes = [8, 128], strides = [1, 1]} : vector<8x384xf32> to vector<8x128xf32>
    %30 = vector.extract_strided_slice %20 {offsets = [0, 128], sizes = [8, 128], strides = [1, 1]} : vector<8x384xf32> to vector<8x128xf32>
    %31 = arith.addf %29, %30 : vector<8x128xf32>
    %32 = arith.negf %31 : vector<8x128xf32>
    %33 = math.exp %32 : vector<8x128xf32>
    %cst_15 = arith.constant 1.000000e+00 : f32
    %34 = vector.broadcast %cst_15 : f32 to vector<8x128xf32>
    %35 = arith.addf %34, %33 : vector<8x128xf32>
    %36 = arith.divf %34, %35 : vector<8x128xf32>
    %37 = vector.extract_strided_slice %18 {offsets = [0, 256], sizes = [8, 128], strides = [1, 1]} : vector<8x384xf32> to vector<8x128xf32>
    %38 = vector.extract_strided_slice %20 {offsets = [0, 256], sizes = [8, 128], strides = [1, 1]} : vector<8x384xf32> to vector<8x128xf32>
    %39 = arith.addf %38, %5 : vector<8x128xf32>
    %40 = arith.mulf %28, %39 : vector<8x128xf32>
    %41 = arith.addf %37, %40 : vector<8x128xf32>
    %42 = math.tanh %41 : vector<8x128xf32>
    %cst_16 = arith.constant 1.000000e+00 : f32
    %43 = vector.broadcast %cst_16 : f32 to vector<8x128xf32>
    %44 = arith.subf %43, %36 : vector<8x128xf32>
    %45 = arith.mulf %44, %42 : vector<8x128xf32>
    %46 = arith.mulf %36, %6 : vector<8x128xf32>
    %47 = arith.addf %45, %46 : vector<8x128xf32>
    %48 = arith.truncf %47 : vector<8x128xf32> to vector<8x128xbf16>
    %49 = arith.addi %8, %16 : i32
    %50 = arith.index_cast %49 : i32 to index
    %c0_17 = arith.constant 0 : index
    %51 = vector.load %arg16[%50, %c0_17] : memref<64x128xbf16, #tpu.memory_space<vmem>>, vector<8x128xbf16>
    tpu.vector_store %arg16[%50, %c0_17], %48 {strides = array<i32>} : memref<64x128xbf16, #tpu.memory_space<vmem>>, vector<8x128xbf16>,
    %c1_i32 = arith.constant 1 : i32
    %c8_i32_18 = arith.constant 8 : i32
    %52 = arith.muli %c1_i32, %c8_i32_18 : i32
    %53 = tpu.assume_multiple %52, 8 : i32
    %54 = arith.index_cast %53 : i32 to index
    %c0_19 = arith.constant 0 : index
    %55 = vector.load %arg17[%54, %c0_19] : memref<64x384xf32, #tpu.memory_space<vmem>>, vector<8x384xf32>
    %56 = arith.truncf %47 : vector<8x128xf32> to vector<8x128xbf16>
    %cst_20 = arith.constant dense<0.000000e+00> : vector<8x384xf32>
    %57 = tpu.matmul %56, %2, %cst_20 {dimension_numbers = #tpu.dot_dimension_numbers<[1], [0], [0], [1], [0, 0, 1, 1], [], []>} : vector<8x128xbf16>, vector<128x384xbf16>, vector<8x384xf32> -> vector<8x384xf32>
    %58 = vector.extract_strided_slice %55 {offsets = [0, 0], sizes = [8, 128], strides = [1, 1]} : vector<8x384xf32> to vector<8x128xf32>
    %59 = vector.extract_strided_slice %57 {offsets = [0, 0], sizes = [8, 128], strides = [1, 1]} : vector<8x384xf32> to vector<8x128xf32>
    %60 = arith.addf %58, %59 : vector<8x128xf32>
    %61 = arith.negf %60 : vector<8x128xf32>
    %62 = math.exp %61 : vector<8x128xf32>
    %cst_21 = arith.constant 1.000000e+00 : f32
    %63 = vector.broadcast %cst_21 : f32 to vector<8x128xf32>
    %64 = arith.addf %63, %62 : vector<8x128xf32>
    %65 = arith.divf %63, %64 : vector<8x128xf32>
    %66 = vector.extract_strided_slice %55 {offsets = [0, 128], sizes = [8, 128], strides = [1, 1]} : vector<8x384xf32> to vector<8x128xf32>
    %67 = vector.extract_strided_slice %57 {offsets = [0, 128], sizes = [8, 128], strides = [1, 1]} : vector<8x384xf32> to vector<8x128xf32>
    %68 = arith.addf %66, %67 : vector<8x128xf32>
    %69 = arith.negf %68 : vector<8x128xf32>
    %70 = math.exp %69 : vector<8x128xf32>
    %cst_22 = arith.constant 1.000000e+00 : f32
    %71 = vector.broadcast %cst_22 : f32 to vector<8x128xf32>
    %72 = arith.addf %71, %70 : vector<8x128xf32>
    %73 = arith.divf %71, %72 : vector<8x128xf32>
    %74 = vector.extract_strided_slice %55 {offsets = [0, 256], sizes = [8, 128], strides = [1, 1]} : vector<8x384xf32> to vector<8x128xf32>
    %75 = vector.extract_strided_slice %57 {offsets = [0, 256], sizes = [8, 128], strides = [1, 1]} : vector<8x384xf32> to vector<8x128xf32>
    %76 = arith.addf %75, %5 : vector<8x128xf32>
    %77 = arith.mulf %65, %76 : vector<8x128xf32>
    %78 = arith.addf %74, %77 : vector<8x128xf32>
    %79 = math.tanh %78 : vector<8x128xf32>
    %cst_23 = arith.constant 1.000000e+00 : f32
    %80 = vector.broadcast %cst_23 : f32 to vector<8x128xf32>
    %81 = arith.subf %80, %73 : vector<8x128xf32>
    %82 = arith.mulf %81, %79 : vector<8x128xf32>
    %83 = arith.mulf %73, %47 : vector<8x128xf32>
    %84 = arith.addf %82, %83 : vector<8x128xf32>
    %85 = arith.truncf %84 : vector<8x128xf32> to vector<8x128xbf16>
    %86 = arith.addi %8, %53 : i32
    %87 = arith.index_cast %86 : i32 to index
    %c0_24 = arith.constant 0 : index
    %88 = vector.load %arg16[%87, %c0_24] : memref<64x128xbf16, #tpu.memory_space<vmem>>, vector<8x128xbf16>
    tpu.vector_store %arg16[%87, %c0_24], %85 {strides = array<i32>} : memref<64x128xbf16, #tpu.memory_space<vmem>>, vector<8x128xbf16>,
    %c2_i32 = arith.constant 2 : i32
    %c8_i32_25 = arith.constant 8 : i32
    %89 = arith.muli %c2_i32, %c8_i32_25 : i32
    %90 = tpu.assume_multiple %89, 8 : i32
    %91 = arith.index_cast %90 : i32 to index
    %c0_26 = arith.constant 0 : index
    %92 = vector.load %arg17[%91, %c0_26] : memref<64x384xf32, #tpu.memory_space<vmem>>, vector<8x384xf32>
    %93 = arith.truncf %84 : vector<8x128xf32> to vector<8x128xbf16>
    %cst_27 = arith.constant dense<0.000000e+00> : vector<8x384xf32>
    %94 = tpu.matmul %93, %2, %cst_27 {dimension_numbers = #tpu.dot_dimension_numbers<[1], [0], [0], [1], [0, 0, 1, 1], [], []>} : vector<8x128xbf16>, vector<128x384xbf16>, vector<8x384xf32> -> vector<8x384xf32>
    %95 = vector.extract_strided_slice %92 {offsets = [0, 0], sizes = [8, 128], strides = [1, 1]} : vector<8x384xf32> to vector<8x128xf32>
    %96 = vector.extract_strided_slice %94 {offsets = [0, 0], sizes = [8, 128], strides = [1, 1]} : vector<8x384xf32> to vector<8x128xf32>
    %97 = arith.addf %95, %96 : vector<8x128xf32>
    %98 = arith.negf %97 : vector<8x128xf32>
    %99 = math.exp %98 : vector<8x128xf32>
    %cst_28 = arith.constant 1.000000e+00 : f32
    %100 = vector.broadcast %cst_28 : f32 to vector<8x128xf32>
    %101 = arith.addf %100, %99 : vector<8x128xf32>
    %102 = arith.divf %100, %101 : vector<8x128xf32>
    %103 = vector.extract_strided_slice %92 {offsets = [0, 128], sizes = [8, 128], strides = [1, 1]} : vector<8x384xf32> to vector<8x128xf32>
    %104 = vector.extract_strided_slice %94 {offsets = [0, 128], sizes = [8, 128], strides = [1, 1]} : vector<8x384xf32> to vector<8x128xf32>
    %105 = arith.addf %103, %104 : vector<8x128xf32>
    %106 = arith.negf %105 : vector<8x128xf32>
    %107 = math.exp %106 : vector<8x128xf32>
    %cst_29 = arith.constant 1.000000e+00 : f32
    %108 = vector.broadcast %cst_29 : f32 to vector<8x128xf32>
    %109 = arith.addf %108, %107 : vector<8x128xf32>
    %110 = arith.divf %108, %109 : vector<8x128xf32>
    %111 = vector.extract_strided_slice %92 {offsets = [0, 256], sizes = [8, 128], strides = [1, 1]} : vector<8x384xf32> to vector<8x128xf32>
    %112 = vector.extract_strided_slice %94 {offsets = [0, 256], sizes = [8, 128], strides = [1, 1]} : vector<8x384xf32> to vector<8x128xf32>
    %113 = arith.addf %112, %5 : vector<8x128xf32>
    %114 = arith.mulf %102, %113 : vector<8x128xf32>
    %115 = arith.addf %111, %114 : vector<8x128xf32>
    %116 = math.tanh %115 : vector<8x128xf32>
    %cst_30 = arith.constant 1.000000e+00 : f32
    %117 = vector.broadcast %cst_30 : f32 to vector<8x128xf32>
    %118 = arith.subf %117, %110 : vector<8x128xf32>
    %119 = arith.mulf %118, %116 : vector<8x128xf32>
    %120 = arith.mulf %110, %84 : vector<8x128xf32>
    %121 = arith.addf %119, %120 : vector<8x128xf32>
    %122 = arith.truncf %121 : vector<8x128xf32> to vector<8x128xbf16>
    %123 = arith.addi %8, %90 : i32
    %124 = arith.index_cast %123 : i32 to index
    %c0_31 = arith.constant 0 : index
    %125 = vector.load %arg16[%124, %c0_31] : memref<64x128xbf16, #tpu.memory_space<vmem>>, vector<8x128xbf16>
    tpu.vector_store %arg16[%124, %c0_31], %122 {strides = array<i32>} : memref<64x128xbf16, #tpu.memory_space<vmem>>, vector<8x128xbf16>,
    %c3_i32 = arith.constant 3 : i32
    %c8_i32_32 = arith.constant 8 : i32
    %126 = arith.muli %c3_i32, %c8_i32_32 : i32
    %127 = tpu.assume_multiple %126, 8 : i32
    %128 = arith.index_cast %127 : i32 to index
    %c0_33 = arith.constant 0 : index
    %129 = vector.load %arg17[%128, %c0_33] : memref<64x384xf32, #tpu.memory_space<vmem>>, vector<8x384xf32>
    %130 = arith.truncf %121 : vector<8x128xf32> to vector<8x128xbf16>
    %cst_34 = arith.constant dense<0.000000e+00> : vector<8x384xf32>
    %131 = tpu.matmul %130, %2, %cst_34 {dimension_numbers = #tpu.dot_dimension_numbers<[1], [0], [0], [1], [0, 0, 1, 1], [], []>} : vector<8x128xbf16>, vector<128x384xbf16>, vector<8x384xf32> -> vector<8x384xf32>
    %132 = vector.extract_strided_slice %129 {offsets = [0, 0], sizes = [8, 128], strides = [1, 1]} : vector<8x384xf32> to vector<8x128xf32>
    %133 = vector.extract_strided_slice %131 {offsets = [0, 0], sizes = [8, 128], strides = [1, 1]} : vector<8x384xf32> to vector<8x128xf32>
    %134 = arith.addf %132, %133 : vector<8x128xf32>
    %135 = arith.negf %134 : vector<8x128xf32>
    %136 = math.exp %135 : vector<8x128xf32>
    %cst_35 = arith.constant 1.000000e+00 : f32
    %137 = vector.broadcast %cst_35 : f32 to vector<8x128xf32>
    %138 = arith.addf %137, %136 : vector<8x128xf32>
    %139 = arith.divf %137, %138 : vector<8x128xf32>
    %140 = vector.extract_strided_slice %129 {offsets = [0, 128], sizes = [8, 128], strides = [1, 1]} : vector<8x384xf32> to vector<8x128xf32>
    %141 = vector.extract_strided_slice %131 {offsets = [0, 128], sizes = [8, 128], strides = [1, 1]} : vector<8x384xf32> to vector<8x128xf32>
    %142 = arith.addf %140, %141 : vector<8x128xf32>
    %143 = arith.negf %142 : vector<8x128xf32>
    %144 = math.exp %143 : vector<8x128xf32>
    %cst_36 = arith.constant 1.000000e+00 : f32
    %145 = vector.broadcast %cst_36 : f32 to vector<8x128xf32>
    %146 = arith.addf %145, %144 : vector<8x128xf32>
    %147 = arith.divf %145, %146 : vector<8x128xf32>
    %148 = vector.extract_strided_slice %129 {offsets = [0, 256], sizes = [8, 128], strides = [1, 1]} : vector<8x384xf32> to vector<8x128xf32>
    %149 = vector.extract_strided_slice %131 {offsets = [0, 256], sizes = [8, 128], strides = [1, 1]} : vector<8x384xf32> to vector<8x128xf32>
    %150 = arith.addf %149, %5 : vector<8x128xf32>
    %151 = arith.mulf %139, %150 : vector<8x128xf32>
    %152 = arith.addf %148, %151 : vector<8x128xf32>
    %153 = math.tanh %152 : vector<8x128xf32>
    %cst_37 = arith.constant 1.000000e+00 : f32
    %154 = vector.broadcast %cst_37 : f32 to vector<8x128xf32>
    %155 = arith.subf %154, %147 : vector<8x128xf32>
    %156 = arith.mulf %155, %153 : vector<8x128xf32>
    %157 = arith.mulf %147, %121 : vector<8x128xf32>
    %158 = arith.addf %156, %157 : vector<8x128xf32>
    %159 = arith.truncf %158 : vector<8x128xf32> to vector<8x128xbf16>
    %160 = arith.addi %8, %127 : i32
    %161 = arith.index_cast %160 : i32 to index
    %c0_38 = arith.constant 0 : index
    %162 = vector.load %arg16[%161, %c0_38] : memref<64x128xbf16, #tpu.memory_space<vmem>>, vector<8x128xbf16>
    tpu.vector_store %arg16[%161, %c0_38], %159 {strides = array<i32>} : memref<64x128xbf16, #tpu.memory_space<vmem>>, vector<8x128xbf16>,
    %c4_i32 = arith.constant 4 : i32
    %c8_i32_39 = arith.constant 8 : i32
    %163 = arith.muli %c4_i32, %c8_i32_39 : i32
    %164 = tpu.assume_multiple %163, 8 : i32
    %165 = arith.index_cast %164 : i32 to index
    %c0_40 = arith.constant 0 : index
    %166 = vector.load %arg17[%165, %c0_40] : memref<64x384xf32, #tpu.memory_space<vmem>>, vector<8x384xf32>
    %167 = arith.truncf %158 : vector<8x128xf32> to vector<8x128xbf16>
    %cst_41 = arith.constant dense<0.000000e+00> : vector<8x384xf32>
    %168 = tpu.matmul %167, %2, %cst_41 {dimension_numbers = #tpu.dot_dimension_numbers<[1], [0], [0], [1], [0, 0, 1, 1], [], []>} : vector<8x128xbf16>, vector<128x384xbf16>, vector<8x384xf32> -> vector<8x384xf32>
    %169 = vector.extract_strided_slice %166 {offsets = [0, 0], sizes = [8, 128], strides = [1, 1]} : vector<8x384xf32> to vector<8x128xf32>
    %170 = vector.extract_strided_slice %168 {offsets = [0, 0], sizes = [8, 128], strides = [1, 1]} : vector<8x384xf32> to vector<8x128xf32>
    %171 = arith.addf %169, %170 : vector<8x128xf32>
    %172 = arith.negf %171 : vector<8x128xf32>
    %173 = math.exp %172 : vector<8x128xf32>
    %cst_42 = arith.constant 1.000000e+00 : f32
    %174 = vector.broadcast %cst_42 : f32 to vector<8x128xf32>
    %175 = arith.addf %174, %173 : vector<8x128xf32>
    %176 = arith.divf %174, %175 : vector<8x128xf32>
    %177 = vector.extract_strided_slice %166 {offsets = [0, 128], sizes = [8, 128], strides = [1, 1]} : vector<8x384xf32> to vector<8x128xf32>
    %178 = vector.extract_strided_slice %168 {offsets = [0, 128], sizes = [8, 128], strides = [1, 1]} : vector<8x384xf32> to vector<8x128xf32>
    %179 = arith.addf %177, %178 : vector<8x128xf32>
    %180 = arith.negf %179 : vector<8x128xf32>
    %181 = math.exp %180 : vector<8x128xf32>
    %cst_43 = arith.constant 1.000000e+00 : f32
    %182 = vector.broadcast %cst_43 : f32 to vector<8x128xf32>
    %183 = arith.addf %182, %181 : vector<8x128xf32>
    %184 = arith.divf %182, %183 : vector<8x128xf32>
    %185 = vector.extract_strided_slice %166 {offsets = [0, 256], sizes = [8, 128], strides = [1, 1]} : vector<8x384xf32> to vector<8x128xf32>
    %186 = vector.extract_strided_slice %168 {offsets = [0, 256], sizes = [8, 128], strides = [1, 1]} : vector<8x384xf32> to vector<8x128xf32>
    %187 = arith.addf %186, %5 : vector<8x128xf32>
    %188 = arith.mulf %176, %187 : vector<8x128xf32>
    %189 = arith.addf %185, %188 : vector<8x128xf32>
    %190 = math.tanh %189 : vector<8x128xf32>
    %cst_44 = arith.constant 1.000000e+00 : f32
    %191 = vector.broadcast %cst_44 : f32 to vector<8x128xf32>
    %192 = arith.subf %191, %184 : vector<8x128xf32>
    %193 = arith.mulf %192, %190 : vector<8x128xf32>
    %194 = arith.mulf %184, %158 : vector<8x128xf32>
    %195 = arith.addf %193, %194 : vector<8x128xf32>
    %196 = arith.truncf %195 : vector<8x128xf32> to vector<8x128xbf16>
    %197 = arith.addi %8, %164 : i32
    %198 = arith.index_cast %197 : i32 to index
    %c0_45 = arith.constant 0 : index
    %199 = vector.load %arg16[%198, %c0_45] : memref<64x128xbf16, #tpu.memory_space<vmem>>, vector<8x128xbf16>
    tpu.vector_store %arg16[%198, %c0_45], %196 {strides = array<i32>} : memref<64x128xbf16, #tpu.memory_space<vmem>>, vector<8x128xbf16>,
    %c5_i32 = arith.constant 5 : i32
    %c8_i32_46 = arith.constant 8 : i32
    %200 = arith.muli %c5_i32, %c8_i32_46 : i32
    %201 = tpu.assume_multiple %200, 8 : i32
    %202 = arith.index_cast %201 : i32 to index
    %c0_47 = arith.constant 0 : index
    %203 = vector.load %arg17[%202, %c0_47] : memref<64x384xf32, #tpu.memory_space<vmem>>, vector<8x384xf32>
    %204 = arith.truncf %195 : vector<8x128xf32> to vector<8x128xbf16>
    %cst_48 = arith.constant dense<0.000000e+00> : vector<8x384xf32>
    %205 = tpu.matmul %204, %2, %cst_48 {dimension_numbers = #tpu.dot_dimension_numbers<[1], [0], [0], [1], [0, 0, 1, 1], [], []>} : vector<8x128xbf16>, vector<128x384xbf16>, vector<8x384xf32> -> vector<8x384xf32>
    %206 = vector.extract_strided_slice %203 {offsets = [0, 0], sizes = [8, 128], strides = [1, 1]} : vector<8x384xf32> to vector<8x128xf32>
    %207 = vector.extract_strided_slice %205 {offsets = [0, 0], sizes = [8, 128], strides = [1, 1]} : vector<8x384xf32> to vector<8x128xf32>
    %208 = arith.addf %206, %207 : vector<8x128xf32>
    %209 = arith.negf %208 : vector<8x128xf32>
    %210 = math.exp %209 : vector<8x128xf32>
    %cst_49 = arith.constant 1.000000e+00 : f32
    %211 = vector.broadcast %cst_49 : f32 to vector<8x128xf32>
    %212 = arith.addf %211, %210 : vector<8x128xf32>
    %213 = arith.divf %211, %212 : vector<8x128xf32>
    %214 = vector.extract_strided_slice %203 {offsets = [0, 128], sizes = [8, 128], strides = [1, 1]} : vector<8x384xf32> to vector<8x128xf32>
    %215 = vector.extract_strided_slice %205 {offsets = [0, 128], sizes = [8, 128], strides = [1, 1]} : vector<8x384xf32> to vector<8x128xf32>
    %216 = arith.addf %214, %215 : vector<8x128xf32>
    %217 = arith.negf %216 : vector<8x128xf32>
    %218 = math.exp %217 : vector<8x128xf32>
    %cst_50 = arith.constant 1.000000e+00 : f32
    %219 = vector.broadcast %cst_50 : f32 to vector<8x128xf32>
    %220 = arith.addf %219, %218 : vector<8x128xf32>
    %221 = arith.divf %219, %220 : vector<8x128xf32>
    %222 = vector.extract_strided_slice %203 {offsets = [0, 256], sizes = [8, 128], strides = [1, 1]} : vector<8x384xf32> to vector<8x128xf32>
    %223 = vector.extract_strided_slice %205 {offsets = [0, 256], sizes = [8, 128], strides = [1, 1]} : vector<8x384xf32> to vector<8x128xf32>
    %224 = arith.addf %223, %5 : vector<8x128xf32>
    %225 = arith.mulf %213, %224 : vector<8x128xf32>
    %226 = arith.addf %222, %225 : vector<8x128xf32>
    %227 = math.tanh %226 : vector<8x128xf32>
    %cst_51 = arith.constant 1.000000e+00 : f32
    %228 = vector.broadcast %cst_51 : f32 to vector<8x128xf32>
    %229 = arith.subf %228, %221 : vector<8x128xf32>
    %230 = arith.mulf %229, %227 : vector<8x128xf32>
    %231 = arith.mulf %221, %195 : vector<8x128xf32>
    %232 = arith.addf %230, %231 : vector<8x128xf32>
    %233 = arith.truncf %232 : vector<8x128xf32> to vector<8x128xbf16>
    %234 = arith.addi %8, %201 : i32
    %235 = arith.index_cast %234 : i32 to index
    %c0_52 = arith.constant 0 : index
    %236 = vector.load %arg16[%235, %c0_52] : memref<64x128xbf16, #tpu.memory_space<vmem>>, vector<8x128xbf16>
    tpu.vector_store %arg16[%235, %c0_52], %233 {strides = array<i32>} : memref<64x128xbf16, #tpu.memory_space<vmem>>, vector<8x128xbf16>,
    %c6_i32 = arith.constant 6 : i32
    %c8_i32_53 = arith.constant 8 : i32
    %237 = arith.muli %c6_i32, %c8_i32_53 : i32
    %238 = tpu.assume_multiple %237, 8 : i32
    %239 = arith.index_cast %238 : i32 to index
    %c0_54 = arith.constant 0 : index
    %240 = vector.load %arg17[%239, %c0_54] : memref<64x384xf32, #tpu.memory_space<vmem>>, vector<8x384xf32>
    %241 = arith.truncf %232 : vector<8x128xf32> to vector<8x128xbf16>
    %cst_55 = arith.constant dense<0.000000e+00> : vector<8x384xf32>
    %242 = tpu.matmul %241, %2, %cst_55 {dimension_numbers = #tpu.dot_dimension_numbers<[1], [0], [0], [1], [0, 0, 1, 1], [], []>} : vector<8x128xbf16>, vector<128x384xbf16>, vector<8x384xf32> -> vector<8x384xf32>
    %243 = vector.extract_strided_slice %240 {offsets = [0, 0], sizes = [8, 128], strides = [1, 1]} : vector<8x384xf32> to vector<8x128xf32>
    %244 = vector.extract_strided_slice %242 {offsets = [0, 0], sizes = [8, 128], strides = [1, 1]} : vector<8x384xf32> to vector<8x128xf32>
    %245 = arith.addf %243, %244 : vector<8x128xf32>
    %246 = arith.negf %245 : vector<8x128xf32>
    %247 = math.exp %246 : vector<8x128xf32>
    %cst_56 = arith.constant 1.000000e+00 : f32
    %248 = vector.broadcast %cst_56 : f32 to vector<8x128xf32>
    %249 = arith.addf %248, %247 : vector<8x128xf32>
    %250 = arith.divf %248, %249 : vector<8x128xf32>
    %251 = vector.extract_strided_slice %240 {offsets = [0, 128], sizes = [8, 128], strides = [1, 1]} : vector<8x384xf32> to vector<8x128xf32>
    %252 = vector.extract_strided_slice %242 {offsets = [0, 128], sizes = [8, 128], strides = [1, 1]} : vector<8x384xf32> to vector<8x128xf32>
    %253 = arith.addf %251, %252 : vector<8x128xf32>
    %254 = arith.negf %253 : vector<8x128xf32>
    %255 = math.exp %254 : vector<8x128xf32>
    %cst_57 = arith.constant 1.000000e+00 : f32
    %256 = vector.broadcast %cst_57 : f32 to vector<8x128xf32>
    %257 = arith.addf %256, %255 : vector<8x128xf32>
    %258 = arith.divf %256, %257 : vector<8x128xf32>
    %259 = vector.extract_strided_slice %240 {offsets = [0, 256], sizes = [8, 128], strides = [1, 1]} : vector<8x384xf32> to vector<8x128xf32>
    %260 = vector.extract_strided_slice %242 {offsets = [0, 256], sizes = [8, 128], strides = [1, 1]} : vector<8x384xf32> to vector<8x128xf32>
    %261 = arith.addf %260, %5 : vector<8x128xf32>
    %262 = arith.mulf %250, %261 : vector<8x128xf32>
    %263 = arith.addf %259, %262 : vector<8x128xf32>
    %264 = math.tanh %263 : vector<8x128xf32>
    %cst_58 = arith.constant 1.000000e+00 : f32
    %265 = vector.broadcast %cst_58 : f32 to vector<8x128xf32>
    %266 = arith.subf %265, %258 : vector<8x128xf32>
    %267 = arith.mulf %266, %264 : vector<8x128xf32>
    %268 = arith.mulf %258, %232 : vector<8x128xf32>
    %269 = arith.addf %267, %268 : vector<8x128xf32>
    %270 = arith.truncf %269 : vector<8x128xf32> to vector<8x128xbf16>
    %271 = arith.addi %8, %238 : i32
    %272 = arith.index_cast %271 : i32 to index
    %c0_59 = arith.constant 0 : index
    %273 = vector.load %arg16[%272, %c0_59] : memref<64x128xbf16, #tpu.memory_space<vmem>>, vector<8x128xbf16>
    tpu.vector_store %arg16[%272, %c0_59], %270 {strides = array<i32>} : memref<64x128xbf16, #tpu.memory_space<vmem>>, vector<8x128xbf16>,
    %c7_i32 = arith.constant 7 : i32
    %c8_i32_60 = arith.constant 8 : i32
    %274 = arith.muli %c7_i32, %c8_i32_60 : i32
    %275 = tpu.assume_multiple %274, 8 : i32
    %276 = arith.index_cast %275 : i32 to index
    %c0_61 = arith.constant 0 : index
    %277 = vector.load %arg17[%276, %c0_61] : memref<64x384xf32, #tpu.memory_space<vmem>>, vector<8x384xf32>
    %278 = arith.truncf %269 : vector<8x128xf32> to vector<8x128xbf16>
    %cst_62 = arith.constant dense<0.000000e+00> : vector<8x384xf32>
    %279 = tpu.matmul %278, %2, %cst_62 {dimension_numbers = #tpu.dot_dimension_numbers<[1], [0], [0], [1], [0, 0, 1, 1], [], []>} : vector<8x128xbf16>, vector<128x384xbf16>, vector<8x384xf32> -> vector<8x384xf32>
    %280 = vector.extract_strided_slice %277 {offsets = [0, 0], sizes = [8, 128], strides = [1, 1]} : vector<8x384xf32> to vector<8x128xf32>
    %281 = vector.extract_strided_slice %279 {offsets = [0, 0], sizes = [8, 128], strides = [1, 1]} : vector<8x384xf32> to vector<8x128xf32>
    %282 = arith.addf %280, %281 : vector<8x128xf32>
    %283 = arith.negf %282 : vector<8x128xf32>
    %284 = math.exp %283 : vector<8x128xf32>
    %cst_63 = arith.constant 1.000000e+00 : f32
    %285 = vector.broadcast %cst_63 : f32 to vector<8x128xf32>
    %286 = arith.addf %285, %284 : vector<8x128xf32>
    %287 = arith.divf %285, %286 : vector<8x128xf32>
    %288 = vector.extract_strided_slice %277 {offsets = [0, 128], sizes = [8, 128], strides = [1, 1]} : vector<8x384xf32> to vector<8x128xf32>
    %289 = vector.extract_strided_slice %279 {offsets = [0, 128], sizes = [8, 128], strides = [1, 1]} : vector<8x384xf32> to vector<8x128xf32>
    %290 = arith.addf %288, %289 : vector<8x128xf32>
    %291 = arith.negf %290 : vector<8x128xf32>
    %292 = math.exp %291 : vector<8x128xf32>
    %cst_64 = arith.constant 1.000000e+00 : f32
    %293 = vector.broadcast %cst_64 : f32 to vector<8x128xf32>
    %294 = arith.addf %293, %292 : vector<8x128xf32>
    %295 = arith.divf %293, %294 : vector<8x128xf32>
    %296 = vector.extract_strided_slice %277 {offsets = [0, 256], sizes = [8, 128], strides = [1, 1]} : vector<8x384xf32> to vector<8x128xf32>
    %297 = vector.extract_strided_slice %279 {offsets = [0, 256], sizes = [8, 128], strides = [1, 1]} : vector<8x384xf32> to vector<8x128xf32>
    %298 = arith.addf %297, %5 : vector<8x128xf32>
    %299 = arith.mulf %287, %298 : vector<8x128xf32>
    %300 = arith.addf %296, %299 : vector<8x128xf32>
    %301 = math.tanh %300 : vector<8x128xf32>
    %cst_65 = arith.constant 1.000000e+00 : f32
    %302 = vector.broadcast %cst_65 : f32 to vector<8x128xf32>
    %303 = arith.subf %302, %295 : vector<8x128xf32>
    %304 = arith.mulf %303, %301 : vector<8x128xf32>
    %305 = arith.mulf %295, %269 : vector<8x128xf32>
    %306 = arith.addf %304, %305 : vector<8x128xf32>
    %307 = arith.truncf %306 : vector<8x128xf32> to vector<8x128xbf16>
    %308 = arith.addi %8, %275 : i32
    %309 = arith.index_cast %308 : i32 to index
    %c0_66 = arith.constant 0 : index
    %310 = vector.load %arg16[%309, %c0_66] : memref<64x128xbf16, #tpu.memory_space<vmem>>, vector<8x128xbf16>
    tpu.vector_store %arg16[%309, %c0_66], %307 {strides = array<i32>} : memref<64x128xbf16, #tpu.memory_space<vmem>>, vector<8x128xbf16>,
    %c8_i32_67 = arith.constant 8 : i32
    %c1_i32_68 = arith.constant 1 : i32
    %c0_69 = arith.constant 0 : index
    %c0_70 = arith.constant 0 : index
    %311 = vector.load %arg5[%c0_69, %c0_70] : memref<128x384xbf16, #tpu.memory_space<vmem>>, vector<128x384xbf16>
    %c0_71 = arith.constant 0 : index
    %c0_72 = arith.constant 0 : index
    %312 = vector.load %arg6[%c0_71, %c0_72] : memref<1x384xf32, #tpu.memory_space<vmem>>, vector<1x384xf32>
    %c0_73 = arith.constant 0 : index
    %c0_74 = arith.constant 0 : index
    %313 = vector.load %arg7[%c0_73, %c0_74] : memref<128x384xbf16, #tpu.memory_space<vmem>>, vector<128x384xbf16>
    %c0_75 = arith.constant 0 : index
    %c0_76 = arith.constant 0 : index
    %314 = vector.load %arg8[%c0_75, %c0_76] : memref<1x128xf32, #tpu.memory_space<vmem>>, vector<1x128xf32>
    %315 = vector.shape_cast %314 : vector<1x128xf32> to vector<1x128xf32>
    %316 = vector.broadcast %315 : vector<1x128xf32> to vector<8x128xf32>
    %cst_77 = arith.constant 0.000000e+00 : f32
    %317 = vector.broadcast %cst_77 : f32 to vector<8x128xf32>
    %c0_i32_78 = arith.constant 0 : i32
    %c64_i32_79 = arith.constant 64 : i32
    %318 = arith.muli %c0_i32_78, %c64_i32_79 : i32
    %319 = tpu.assume_multiple %318, 8 : i32
    %320 = arith.index_cast %319 : i32 to index
    %c0_80 = arith.constant 0 : index
    %321 = vector.load %arg16[%320, %c0_80] : memref<64x128xbf16, #tpu.memory_space<vmem>>, vector<64x128xbf16>
    %cst_81 = arith.constant dense<0.000000e+00> : vector<64x384xf32>
    %322 = tpu.matmul %321, %311, %cst_81 {dimension_numbers = #tpu.dot_dimension_numbers<[1], [0], [0], [1], [0, 0, 1, 1], [], []>} : vector<64x128xbf16>, vector<128x384xbf16>, vector<64x384xf32> -> vector<64x384xf32>
    %323 = vector.broadcast %312 : vector<1x384xf32> to vector<64x384xf32>
    %324 = arith.addf %322, %323 : vector<64x384xf32>
    %c0_82 = arith.constant 0 : index
    %c0_83 = arith.constant 0 : index
    %325 = vector.load %arg17[%c0_82, %c0_83] : memref<64x384xf32, #tpu.memory_space<vmem>>, vector<64x384xf32>
    tpu.vector_store %arg17[%c0_82, %c0_83], %324 {strides = array<i32>} : memref<64x384xf32, #tpu.memory_space<vmem>>, vector<64x384xf32>,
    %c0_i32_84 = arith.constant 0 : i32
    %c8_i32_85 = arith.constant 8 : i32
    %326 = arith.muli %c0_i32_84, %c8_i32_85 : i32
    %327 = tpu.assume_multiple %326, 8 : i32
    %328 = arith.index_cast %327 : i32 to index
    %c0_86 = arith.constant 0 : index
    %329 = vector.load %arg17[%328, %c0_86] : memref<64x384xf32, #tpu.memory_space<vmem>>, vector<8x384xf32>
    %330 = arith.truncf %317 : vector<8x128xf32> to vector<8x128xbf16>
    %cst_87 = arith.constant dense<0.000000e+00> : vector<8x384xf32>
    %331 = tpu.matmul %330, %313, %cst_87 {dimension_numbers = #tpu.dot_dimension_numbers<[1], [0], [0], [1], [0, 0, 1, 1], [], []>} : vector<8x128xbf16>, vector<128x384xbf16>, vector<8x384xf32> -> vector<8x384xf32>
    %332 = vector.extract_strided_slice %329 {offsets = [0, 0], sizes = [8, 128], strides = [1, 1]} : vector<8x384xf32> to vector<8x128xf32>
    %333 = vector.extract_strided_slice %331 {offsets = [0, 0], sizes = [8, 128], strides = [1, 1]} : vector<8x384xf32> to vector<8x128xf32>
    %334 = arith.addf %332, %333 : vector<8x128xf32>
    %335 = arith.negf %334 : vector<8x128xf32>
    %336 = math.exp %335 : vector<8x128xf32>
    %cst_88 = arith.constant 1.000000e+00 : f32
    %337 = vector.broadcast %cst_88 : f32 to vector<8x128xf32>
    %338 = arith.addf %337, %336 : vector<8x128xf32>
    %339 = arith.divf %337, %338 : vector<8x128xf32>
    %340 = vector.extract_strided_slice %329 {offsets = [0, 128], sizes = [8, 128], strides = [1, 1]} : vector<8x384xf32> to vector<8x128xf32>
    %341 = vector.extract_strided_slice %331 {offsets = [0, 128], sizes = [8, 128], strides = [1, 1]} : vector<8x384xf32> to vector<8x128xf32>
    %342 = arith.addf %340, %341 : vector<8x128xf32>
    %343 = arith.negf %342 : vector<8x128xf32>
    %344 = math.exp %343 : vector<8x128xf32>
    %cst_89 = arith.constant 1.000000e+00 : f32
    %345 = vector.broadcast %cst_89 : f32 to vector<8x128xf32>
    %346 = arith.addf %345, %344 : vector<8x128xf32>
    %347 = arith.divf %345, %346 : vector<8x128xf32>
    %348 = vector.extract_strided_slice %329 {offsets = [0, 256], sizes = [8, 128], strides = [1, 1]} : vector<8x384xf32> to vector<8x128xf32>
    %349 = vector.extract_strided_slice %331 {offsets = [0, 256], sizes = [8, 128], strides = [1, 1]} : vector<8x384xf32> to vector<8x128xf32>
    %350 = arith.addf %349, %316 : vector<8x128xf32>
    %351 = arith.mulf %339, %350 : vector<8x128xf32>
    %352 = arith.addf %348, %351 : vector<8x128xf32>
    %353 = math.tanh %352 : vector<8x128xf32>
    %cst_90 = arith.constant 1.000000e+00 : f32
    %354 = vector.broadcast %cst_90 : f32 to vector<8x128xf32>
    %355 = arith.subf %354, %347 : vector<8x128xf32>
    %356 = arith.mulf %355, %353 : vector<8x128xf32>
    %357 = arith.mulf %347, %317 : vector<8x128xf32>
    %358 = arith.addf %356, %357 : vector<8x128xf32>
    %359 = arith.truncf %358 : vector<8x128xf32> to vector<8x128xbf16>
    %360 = arith.addi %319, %327 : i32
    %361 = arith.index_cast %360 : i32 to index
    %c0_91 = arith.constant 0 : index
    %362 = vector.load %arg16[%361, %c0_91] : memref<64x128xbf16, #tpu.memory_space<vmem>>, vector<8x128xbf16>
    tpu.vector_store %arg16[%361, %c0_91], %359 {strides = array<i32>} : memref<64x128xbf16, #tpu.memory_space<vmem>>, vector<8x128xbf16>,
    %c1_i32_92 = arith.constant 1 : i32
    %c8_i32_93 = arith.constant 8 : i32
    %363 = arith.muli %c1_i32_92, %c8_i32_93 : i32
    %364 = tpu.assume_multiple %363, 8 : i32
    %365 = arith.index_cast %364 : i32 to index
    %c0_94 = arith.constant 0 : index
    %366 = vector.load %arg17[%365, %c0_94] : memref<64x384xf32, #tpu.memory_space<vmem>>, vector<8x384xf32>
    %367 = arith.truncf %358 : vector<8x128xf32> to vector<8x128xbf16>
    %cst_95 = arith.constant dense<0.000000e+00> : vector<8x384xf32>
    %368 = tpu.matmul %367, %313, %cst_95 {dimension_numbers = #tpu.dot_dimension_numbers<[1], [0], [0], [1], [0, 0, 1, 1], [], []>} : vector<8x128xbf16>, vector<128x384xbf16>, vector<8x384xf32> -> vector<8x384xf32>
    %369 = vector.extract_strided_slice %366 {offsets = [0, 0], sizes = [8, 128], strides = [1, 1]} : vector<8x384xf32> to vector<8x128xf32>
    %370 = vector.extract_strided_slice %368 {offsets = [0, 0], sizes = [8, 128], strides = [1, 1]} : vector<8x384xf32> to vector<8x128xf32>
    %371 = arith.addf %369, %370 : vector<8x128xf32>
    %372 = arith.negf %371 : vector<8x128xf32>
    %373 = math.exp %372 : vector<8x128xf32>
    %cst_96 = arith.constant 1.000000e+00 : f32
    %374 = vector.broadcast %cst_96 : f32 to vector<8x128xf32>
    %375 = arith.addf %374, %373 : vector<8x128xf32>
    %376 = arith.divf %374, %375 : vector<8x128xf32>
    %377 = vector.extract_strided_slice %366 {offsets = [0, 128], sizes = [8, 128], strides = [1, 1]} : vector<8x384xf32> to vector<8x128xf32>
    %378 = vector.extract_strided_slice %368 {offsets = [0, 128], sizes = [8, 128], strides = [1, 1]} : vector<8x384xf32> to vector<8x128xf32>
    %379 = arith.addf %377, %378 : vector<8x128xf32>
    %380 = arith.negf %379 : vector<8x128xf32>
    %381 = math.exp %380 : vector<8x128xf32>
    %cst_97 = arith.constant 1.000000e+00 : f32
    %382 = vector.broadcast %cst_97 : f32 to vector<8x128xf32>
    %383 = arith.addf %382, %381 : vector<8x128xf32>
    %384 = arith.divf %382, %383 : vector<8x128xf32>
    %385 = vector.extract_strided_slice %366 {offsets = [0, 256], sizes = [8, 128], strides = [1, 1]} : vector<8x384xf32> to vector<8x128xf32>
    %386 = vector.extract_strided_slice %368 {offsets = [0, 256], sizes = [8, 128], strides = [1, 1]} : vector<8x384xf32> to vector<8x128xf32>
    %387 = arith.addf %386, %316 : vector<8x128xf32>
    %388 = arith.mulf %376, %387 : vector<8x128xf32>
    %389 = arith.addf %385, %388 : vector<8x128xf32>
    %390 = math.tanh %389 : vector<8x128xf32>
    %cst_98 = arith.constant 1.000000e+00 : f32
    %391 = vector.broadcast %cst_98 : f32 to vector<8x128xf32>
    %392 = arith.subf %391, %384 : vector<8x128xf32>
    %393 = arith.mulf %392, %390 : vector<8x128xf32>
    %394 = arith.mulf %384, %358 : vector<8x128xf32>
    %395 = arith.addf %393, %394 : vector<8x128xf32>
    %396 = arith.truncf %395 : vector<8x128xf32> to vector<8x128xbf16>
    %397 = arith.addi %319, %364 : i32
    %398 = arith.index_cast %397 : i32 to index
    %c0_99 = arith.constant 0 : index
    %399 = vector.load %arg16[%398, %c0_99] : memref<64x128xbf16, #tpu.memory_space<vmem>>, vector<8x128xbf16>
    tpu.vector_store %arg16[%398, %c0_99], %396 {strides = array<i32>} : memref<64x128xbf16, #tpu.memory_space<vmem>>, vector<8x128xbf16>,
    %c2_i32_100 = arith.constant 2 : i32
    %c8_i32_101 = arith.constant 8 : i32
    %400 = arith.muli %c2_i32_100, %c8_i32_101 : i32
    %401 = tpu.assume_multiple %400, 8 : i32
    %402 = arith.index_cast %401 : i32 to index
    %c0_102 = arith.constant 0 : index
    %403 = vector.load %arg17[%402, %c0_102] : memref<64x384xf32, #tpu.memory_space<vmem>>, vector<8x384xf32>
    %404 = arith.truncf %395 : vector<8x128xf32> to vector<8x128xbf16>
    %cst_103 = arith.constant dense<0.000000e+00> : vector<8x384xf32>
    %405 = tpu.matmul %404, %313, %cst_103 {dimension_numbers = #tpu.dot_dimension_numbers<[1], [0], [0], [1], [0, 0, 1, 1], [], []>} : vector<8x128xbf16>, vector<128x384xbf16>, vector<8x384xf32> -> vector<8x384xf32>
    %406 = vector.extract_strided_slice %403 {offsets = [0, 0], sizes = [8, 128], strides = [1, 1]} : vector<8x384xf32> to vector<8x128xf32>
    %407 = vector.extract_strided_slice %405 {offsets = [0, 0], sizes = [8, 128], strides = [1, 1]} : vector<8x384xf32> to vector<8x128xf32>
    %408 = arith.addf %406, %407 : vector<8x128xf32>
    %409 = arith.negf %408 : vector<8x128xf32>
    %410 = math.exp %409 : vector<8x128xf32>
    %cst_104 = arith.constant 1.000000e+00 : f32
    %411 = vector.broadcast %cst_104 : f32 to vector<8x128xf32>
    %412 = arith.addf %411, %410 : vector<8x128xf32>
    %413 = arith.divf %411, %412 : vector<8x128xf32>
    %414 = vector.extract_strided_slice %403 {offsets = [0, 128], sizes = [8, 128], strides = [1, 1]} : vector<8x384xf32> to vector<8x128xf32>
    %415 = vector.extract_strided_slice %405 {offsets = [0, 128], sizes = [8, 128], strides = [1, 1]} : vector<8x384xf32> to vector<8x128xf32>
    %416 = arith.addf %414, %415 : vector<8x128xf32>
    %417 = arith.negf %416 : vector<8x128xf32>
    %418 = math.exp %417 : vector<8x128xf32>
    %cst_105 = arith.constant 1.000000e+00 : f32
    %419 = vector.broadcast %cst_105 : f32 to vector<8x128xf32>
    %420 = arith.addf %419, %418 : vector<8x128xf32>
    %421 = arith.divf %419, %420 : vector<8x128xf32>
    %422 = vector.extract_strided_slice %403 {offsets = [0, 256], sizes = [8, 128], strides = [1, 1]} : vector<8x384xf32> to vector<8x128xf32>
    %423 = vector.extract_strided_slice %405 {offsets = [0, 256], sizes = [8, 128], strides = [1, 1]} : vector<8x384xf32> to vector<8x128xf32>
    %424 = arith.addf %423, %316 : vector<8x128xf32>
    %425 = arith.mulf %413, %424 : vector<8x128xf32>
    %426 = arith.addf %422, %425 : vector<8x128xf32>
    %427 = math.tanh %426 : vector<8x128xf32>
    %cst_106 = arith.constant 1.000000e+00 : f32
    %428 = vector.broadcast %cst_106 : f32 to vector<8x128xf32>
    %429 = arith.subf %428, %421 : vector<8x128xf32>
    %430 = arith.mulf %429, %427 : vector<8x128xf32>
    %431 = arith.mulf %421, %395 : vector<8x128xf32>
    %432 = arith.addf %430, %431 : vector<8x128xf32>
    %433 = arith.truncf %432 : vector<8x128xf32> to vector<8x128xbf16>
    %434 = arith.addi %319, %401 : i32
    %435 = arith.index_cast %434 : i32 to index
    %c0_107 = arith.constant 0 : index
    %436 = vector.load %arg16[%435, %c0_107] : memref<64x128xbf16, #tpu.memory_space<vmem>>, vector<8x128xbf16>
    tpu.vector_store %arg16[%435, %c0_107], %433 {strides = array<i32>} : memref<64x128xbf16, #tpu.memory_space<vmem>>, vector<8x128xbf16>,
    %c3_i32_108 = arith.constant 3 : i32
    %c8_i32_109 = arith.constant 8 : i32
    %437 = arith.muli %c3_i32_108, %c8_i32_109 : i32
    %438 = tpu.assume_multiple %437, 8 : i32
    %439 = arith.index_cast %438 : i32 to index
    %c0_110 = arith.constant 0 : index
    %440 = vector.load %arg17[%439, %c0_110] : memref<64x384xf32, #tpu.memory_space<vmem>>, vector<8x384xf32>
    %441 = arith.truncf %432 : vector<8x128xf32> to vector<8x128xbf16>
    %cst_111 = arith.constant dense<0.000000e+00> : vector<8x384xf32>
    %442 = tpu.matmul %441, %313, %cst_111 {dimension_numbers = #tpu.dot_dimension_numbers<[1], [0], [0], [1], [0, 0, 1, 1], [], []>} : vector<8x128xbf16>, vector<128x384xbf16>, vector<8x384xf32> -> vector<8x384xf32>
    %443 = vector.extract_strided_slice %440 {offsets = [0, 0], sizes = [8, 128], strides = [1, 1]} : vector<8x384xf32> to vector<8x128xf32>
    %444 = vector.extract_strided_slice %442 {offsets = [0, 0], sizes = [8, 128], strides = [1, 1]} : vector<8x384xf32> to vector<8x128xf32>
    %445 = arith.addf %443, %444 : vector<8x128xf32>
    %446 = arith.negf %445 : vector<8x128xf32>
    %447 = math.exp %446 : vector<8x128xf32>
    %cst_112 = arith.constant 1.000000e+00 : f32
    %448 = vector.broadcast %cst_112 : f32 to vector<8x128xf32>
    %449 = arith.addf %448, %447 : vector<8x128xf32>
    %450 = arith.divf %448, %449 : vector<8x128xf32>
    %451 = vector.extract_strided_slice %440 {offsets = [0, 128], sizes = [8, 128], strides = [1, 1]} : vector<8x384xf32> to vector<8x128xf32>
    %452 = vector.extract_strided_slice %442 {offsets = [0, 128], sizes = [8, 128], strides = [1, 1]} : vector<8x384xf32> to vector<8x128xf32>
    %453 = arith.addf %451, %452 : vector<8x128xf32>
    %454 = arith.negf %453 : vector<8x128xf32>
    %455 = math.exp %454 : vector<8x128xf32>
    %cst_113 = arith.constant 1.000000e+00 : f32
    %456 = vector.broadcast %cst_113 : f32 to vector<8x128xf32>
    %457 = arith.addf %456, %455 : vector<8x128xf32>
    %458 = arith.divf %456, %457 : vector<8x128xf32>
    %459 = vector.extract_strided_slice %440 {offsets = [0, 256], sizes = [8, 128], strides = [1, 1]} : vector<8x384xf32> to vector<8x128xf32>
    %460 = vector.extract_strided_slice %442 {offsets = [0, 256], sizes = [8, 128], strides = [1, 1]} : vector<8x384xf32> to vector<8x128xf32>
    %461 = arith.addf %460, %316 : vector<8x128xf32>
    %462 = arith.mulf %450, %461 : vector<8x128xf32>
    %463 = arith.addf %459, %462 : vector<8x128xf32>
    %464 = math.tanh %463 : vector<8x128xf32>
    %cst_114 = arith.constant 1.000000e+00 : f32
    %465 = vector.broadcast %cst_114 : f32 to vector<8x128xf32>
    %466 = arith.subf %465, %458 : vector<8x128xf32>
    %467 = arith.mulf %466, %464 : vector<8x128xf32>
    %468 = arith.mulf %458, %432 : vector<8x128xf32>
    %469 = arith.addf %467, %468 : vector<8x128xf32>
    %470 = arith.truncf %469 : vector<8x128xf32> to vector<8x128xbf16>
    %471 = arith.addi %319, %438 : i32
    %472 = arith.index_cast %471 : i32 to index
    %c0_115 = arith.constant 0 : index
    %473 = vector.load %arg16[%472, %c0_115] : memref<64x128xbf16, #tpu.memory_space<vmem>>, vector<8x128xbf16>
    tpu.vector_store %arg16[%472, %c0_115], %470 {strides = array<i32>} : memref<64x128xbf16, #tpu.memory_space<vmem>>, vector<8x128xbf16>,
    %c4_i32_116 = arith.constant 4 : i32
    %c8_i32_117 = arith.constant 8 : i32
    %474 = arith.muli %c4_i32_116, %c8_i32_117 : i32
    %475 = tpu.assume_multiple %474, 8 : i32
    %476 = arith.index_cast %475 : i32 to index
    %c0_118 = arith.constant 0 : index
    %477 = vector.load %arg17[%476, %c0_118] : memref<64x384xf32, #tpu.memory_space<vmem>>, vector<8x384xf32>
    %478 = arith.truncf %469 : vector<8x128xf32> to vector<8x128xbf16>
    %cst_119 = arith.constant dense<0.000000e+00> : vector<8x384xf32>
    %479 = tpu.matmul %478, %313, %cst_119 {dimension_numbers = #tpu.dot_dimension_numbers<[1], [0], [0], [1], [0, 0, 1, 1], [], []>} : vector<8x128xbf16>, vector<128x384xbf16>, vector<8x384xf32> -> vector<8x384xf32>
    %480 = vector.extract_strided_slice %477 {offsets = [0, 0], sizes = [8, 128], strides = [1, 1]} : vector<8x384xf32> to vector<8x128xf32>
    %481 = vector.extract_strided_slice %479 {offsets = [0, 0], sizes = [8, 128], strides = [1, 1]} : vector<8x384xf32> to vector<8x128xf32>
    %482 = arith.addf %480, %481 : vector<8x128xf32>
    %483 = arith.negf %482 : vector<8x128xf32>
    %484 = math.exp %483 : vector<8x128xf32>
    %cst_120 = arith.constant 1.000000e+00 : f32
    %485 = vector.broadcast %cst_120 : f32 to vector<8x128xf32>
    %486 = arith.addf %485, %484 : vector<8x128xf32>
    %487 = arith.divf %485, %486 : vector<8x128xf32>
    %488 = vector.extract_strided_slice %477 {offsets = [0, 128], sizes = [8, 128], strides = [1, 1]} : vector<8x384xf32> to vector<8x128xf32>
    %489 = vector.extract_strided_slice %479 {offsets = [0, 128], sizes = [8, 128], strides = [1, 1]} : vector<8x384xf32> to vector<8x128xf32>
    %490 = arith.addf %488, %489 : vector<8x128xf32>
    %491 = arith.negf %490 : vector<8x128xf32>
    %492 = math.exp %491 : vector<8x128xf32>
    %cst_121 = arith.constant 1.000000e+00 : f32
    %493 = vector.broadcast %cst_121 : f32 to vector<8x128xf32>
    %494 = arith.addf %493, %492 : vector<8x128xf32>
    %495 = arith.divf %493, %494 : vector<8x128xf32>
    %496 = vector.extract_strided_slice %477 {offsets = [0, 256], sizes = [8, 128], strides = [1, 1]} : vector<8x384xf32> to vector<8x128xf32>
    %497 = vector.extract_strided_slice %479 {offsets = [0, 256], sizes = [8, 128], strides = [1, 1]} : vector<8x384xf32> to vector<8x128xf32>
    %498 = arith.addf %497, %316 : vector<8x128xf32>
    %499 = arith.mulf %487, %498 : vector<8x128xf32>
    %500 = arith.addf %496, %499 : vector<8x128xf32>
    %501 = math.tanh %500 : vector<8x128xf32>
    %cst_122 = arith.constant 1.000000e+00 : f32
    %502 = vector.broadcast %cst_122 : f32 to vector<8x128xf32>
    %503 = arith.subf %502, %495 : vector<8x128xf32>
    %504 = arith.mulf %503, %501 : vector<8x128xf32>
    %505 = arith.mulf %495, %469 : vector<8x128xf32>
    %506 = arith.addf %504, %505 : vector<8x128xf32>
    %507 = arith.truncf %506 : vector<8x128xf32> to vector<8x128xbf16>
    %508 = arith.addi %319, %475 : i32
    %509 = arith.index_cast %508 : i32 to index
    %c0_123 = arith.constant 0 : index
    %510 = vector.load %arg16[%509, %c0_123] : memref<64x128xbf16, #tpu.memory_space<vmem>>, vector<8x128xbf16>
    tpu.vector_store %arg16[%509, %c0_123], %507 {strides = array<i32>} : memref<64x128xbf16, #tpu.memory_space<vmem>>, vector<8x128xbf16>,
    %c5_i32_124 = arith.constant 5 : i32
    %c8_i32_125 = arith.constant 8 : i32
    %511 = arith.muli %c5_i32_124, %c8_i32_125 : i32
    %512 = tpu.assume_multiple %511, 8 : i32
    %513 = arith.index_cast %512 : i32 to index
    %c0_126 = arith.constant 0 : index
    %514 = vector.load %arg17[%513, %c0_126] : memref<64x384xf32, #tpu.memory_space<vmem>>, vector<8x384xf32>
    %515 = arith.truncf %506 : vector<8x128xf32> to vector<8x128xbf16>
    %cst_127 = arith.constant dense<0.000000e+00> : vector<8x384xf32>
    %516 = tpu.matmul %515, %313, %cst_127 {dimension_numbers = #tpu.dot_dimension_numbers<[1], [0], [0], [1], [0, 0, 1, 1], [], []>} : vector<8x128xbf16>, vector<128x384xbf16>, vector<8x384xf32> -> vector<8x384xf32>
    %517 = vector.extract_strided_slice %514 {offsets = [0, 0], sizes = [8, 128], strides = [1, 1]} : vector<8x384xf32> to vector<8x128xf32>
    %518 = vector.extract_strided_slice %516 {offsets = [0, 0], sizes = [8, 128], strides = [1, 1]} : vector<8x384xf32> to vector<8x128xf32>
    %519 = arith.addf %517, %518 : vector<8x128xf32>
    %520 = arith.negf %519 : vector<8x128xf32>
    %521 = math.exp %520 : vector<8x128xf32>
    %cst_128 = arith.constant 1.000000e+00 : f32
    %522 = vector.broadcast %cst_128 : f32 to vector<8x128xf32>
    %523 = arith.addf %522, %521 : vector<8x128xf32>
    %524 = arith.divf %522, %523 : vector<8x128xf32>
    %525 = vector.extract_strided_slice %514 {offsets = [0, 128], sizes = [8, 128], strides = [1, 1]} : vector<8x384xf32> to vector<8x128xf32>
    %526 = vector.extract_strided_slice %516 {offsets = [0, 128], sizes = [8, 128], strides = [1, 1]} : vector<8x384xf32> to vector<8x128xf32>
    %527 = arith.addf %525, %526 : vector<8x128xf32>
    %528 = arith.negf %527 : vector<8x128xf32>
    %529 = math.exp %528 : vector<8x128xf32>
    %cst_129 = arith.constant 1.000000e+00 : f32
    %530 = vector.broadcast %cst_129 : f32 to vector<8x128xf32>
    %531 = arith.addf %530, %529 : vector<8x128xf32>
    %532 = arith.divf %530, %531 : vector<8x128xf32>
    %533 = vector.extract_strided_slice %514 {offsets = [0, 256], sizes = [8, 128], strides = [1, 1]} : vector<8x384xf32> to vector<8x128xf32>
    %534 = vector.extract_strided_slice %516 {offsets = [0, 256], sizes = [8, 128], strides = [1, 1]} : vector<8x384xf32> to vector<8x128xf32>
    %535 = arith.addf %534, %316 : vector<8x128xf32>
    %536 = arith.mulf %524, %535 : vector<8x128xf32>
    %537 = arith.addf %533, %536 : vector<8x128xf32>
    %538 = math.tanh %537 : vector<8x128xf32>
    %cst_130 = arith.constant 1.000000e+00 : f32
    %539 = vector.broadcast %cst_130 : f32 to vector<8x128xf32>
    %540 = arith.subf %539, %532 : vector<8x128xf32>
    %541 = arith.mulf %540, %538 : vector<8x128xf32>
    %542 = arith.mulf %532, %506 : vector<8x128xf32>
    %543 = arith.addf %541, %542 : vector<8x128xf32>
    %544 = arith.truncf %543 : vector<8x128xf32> to vector<8x128xbf16>
    %545 = arith.addi %319, %512 : i32
    %546 = arith.index_cast %545 : i32 to index
    %c0_131 = arith.constant 0 : index
    %547 = vector.load %arg16[%546, %c0_131] : memref<64x128xbf16, #tpu.memory_space<vmem>>, vector<8x128xbf16>
    tpu.vector_store %arg16[%546, %c0_131], %544 {strides = array<i32>} : memref<64x128xbf16, #tpu.memory_space<vmem>>, vector<8x128xbf16>,
    %c6_i32_132 = arith.constant 6 : i32
    %c8_i32_133 = arith.constant 8 : i32
    %548 = arith.muli %c6_i32_132, %c8_i32_133 : i32
    %549 = tpu.assume_multiple %548, 8 : i32
    %550 = arith.index_cast %549 : i32 to index
    %c0_134 = arith.constant 0 : index
    %551 = vector.load %arg17[%550, %c0_134] : memref<64x384xf32, #tpu.memory_space<vmem>>, vector<8x384xf32>
    %552 = arith.truncf %543 : vector<8x128xf32> to vector<8x128xbf16>
    %cst_135 = arith.constant dense<0.000000e+00> : vector<8x384xf32>
    %553 = tpu.matmul %552, %313, %cst_135 {dimension_numbers = #tpu.dot_dimension_numbers<[1], [0], [0], [1], [0, 0, 1, 1], [], []>} : vector<8x128xbf16>, vector<128x384xbf16>, vector<8x384xf32> -> vector<8x384xf32>
    %554 = vector.extract_strided_slice %551 {offsets = [0, 0], sizes = [8, 128], strides = [1, 1]} : vector<8x384xf32> to vector<8x128xf32>
    %555 = vector.extract_strided_slice %553 {offsets = [0, 0], sizes = [8, 128], strides = [1, 1]} : vector<8x384xf32> to vector<8x128xf32>
    %556 = arith.addf %554, %555 : vector<8x128xf32>
    %557 = arith.negf %556 : vector<8x128xf32>
    %558 = math.exp %557 : vector<8x128xf32>
    %cst_136 = arith.constant 1.000000e+00 : f32
    %559 = vector.broadcast %cst_136 : f32 to vector<8x128xf32>
    %560 = arith.addf %559, %558 : vector<8x128xf32>
    %561 = arith.divf %559, %560 : vector<8x128xf32>
    %562 = vector.extract_strided_slice %551 {offsets = [0, 128], sizes = [8, 128], strides = [1, 1]} : vector<8x384xf32> to vector<8x128xf32>
    %563 = vector.extract_strided_slice %553 {offsets = [0, 128], sizes = [8, 128], strides = [1, 1]} : vector<8x384xf32> to vector<8x128xf32>
    %564 = arith.addf %562, %563 : vector<8x128xf32>
    %565 = arith.negf %564 : vector<8x128xf32>
    %566 = math.exp %565 : vector<8x128xf32>
    %cst_137 = arith.constant 1.000000e+00 : f32
    %567 = vector.broadcast %cst_137 : f32 to vector<8x128xf32>
    %568 = arith.addf %567, %566 : vector<8x128xf32>
    %569 = arith.divf %567, %568 : vector<8x128xf32>
    %570 = vector.extract_strided_slice %551 {offsets = [0, 256], sizes = [8, 128], strides = [1, 1]} : vector<8x384xf32> to vector<8x128xf32>
    %571 = vector.extract_strided_slice %553 {offsets = [0, 256], sizes = [8, 128], strides = [1, 1]} : vector<8x384xf32> to vector<8x128xf32>
    %572 = arith.addf %571, %316 : vector<8x128xf32>
    %573 = arith.mulf %561, %572 : vector<8x128xf32>
    %574 = arith.addf %570, %573 : vector<8x128xf32>
    %575 = math.tanh %574 : vector<8x128xf32>
    %cst_138 = arith.constant 1.000000e+00 : f32
    %576 = vector.broadcast %cst_138 : f32 to vector<8x128xf32>
    %577 = arith.subf %576, %569 : vector<8x128xf32>
    %578 = arith.mulf %577, %575 : vector<8x128xf32>
    %579 = arith.mulf %569, %543 : vector<8x128xf32>
    %580 = arith.addf %578, %579 : vector<8x128xf32>
    %581 = arith.truncf %580 : vector<8x128xf32> to vector<8x128xbf16>
    %582 = arith.addi %319, %549 : i32
    %583 = arith.index_cast %582 : i32 to index
    %c0_139 = arith.constant 0 : index
    %584 = vector.load %arg16[%583, %c0_139] : memref<64x128xbf16, #tpu.memory_space<vmem>>, vector<8x128xbf16>
    tpu.vector_store %arg16[%583, %c0_139], %581 {strides = array<i32>} : memref<64x128xbf16, #tpu.memory_space<vmem>>, vector<8x128xbf16>,
    %c7_i32_140 = arith.constant 7 : i32
    %c8_i32_141 = arith.constant 8 : i32
    %585 = arith.muli %c7_i32_140, %c8_i32_141 : i32
    %586 = tpu.assume_multiple %585, 8 : i32
    %587 = arith.index_cast %586 : i32 to index
    %c0_142 = arith.constant 0 : index
    %588 = vector.load %arg17[%587, %c0_142] : memref<64x384xf32, #tpu.memory_space<vmem>>, vector<8x384xf32>
    %589 = arith.truncf %580 : vector<8x128xf32> to vector<8x128xbf16>
    %cst_143 = arith.constant dense<0.000000e+00> : vector<8x384xf32>
    %590 = tpu.matmul %589, %313, %cst_143 {dimension_numbers = #tpu.dot_dimension_numbers<[1], [0], [0], [1], [0, 0, 1, 1], [], []>} : vector<8x128xbf16>, vector<128x384xbf16>, vector<8x384xf32> -> vector<8x384xf32>
    %591 = vector.extract_strided_slice %588 {offsets = [0, 0], sizes = [8, 128], strides = [1, 1]} : vector<8x384xf32> to vector<8x128xf32>
    %592 = vector.extract_strided_slice %590 {offsets = [0, 0], sizes = [8, 128], strides = [1, 1]} : vector<8x384xf32> to vector<8x128xf32>
    %593 = arith.addf %591, %592 : vector<8x128xf32>
    %594 = arith.negf %593 : vector<8x128xf32>
    %595 = math.exp %594 : vector<8x128xf32>
    %cst_144 = arith.constant 1.000000e+00 : f32
    %596 = vector.broadcast %cst_144 : f32 to vector<8x128xf32>
    %597 = arith.addf %596, %595 : vector<8x128xf32>
    %598 = arith.divf %596, %597 : vector<8x128xf32>
    %599 = vector.extract_strided_slice %588 {offsets = [0, 128], sizes = [8, 128], strides = [1, 1]} : vector<8x384xf32> to vector<8x128xf32>
    %600 = vector.extract_strided_slice %590 {offsets = [0, 128], sizes = [8, 128], strides = [1, 1]} : vector<8x384xf32> to vector<8x128xf32>
    %601 = arith.addf %599, %600 : vector<8x128xf32>
    %602 = arith.negf %601 : vector<8x128xf32>
    %603 = math.exp %602 : vector<8x128xf32>
    %cst_145 = arith.constant 1.000000e+00 : f32
    %604 = vector.broadcast %cst_145 : f32 to vector<8x128xf32>
    %605 = arith.addf %604, %603 : vector<8x128xf32>
    %606 = arith.divf %604, %605 : vector<8x128xf32>
    %607 = vector.extract_strided_slice %588 {offsets = [0, 256], sizes = [8, 128], strides = [1, 1]} : vector<8x384xf32> to vector<8x128xf32>
    %608 = vector.extract_strided_slice %590 {offsets = [0, 256], sizes = [8, 128], strides = [1, 1]} : vector<8x384xf32> to vector<8x128xf32>
    %609 = arith.addf %608, %316 : vector<8x128xf32>
    %610 = arith.mulf %598, %609 : vector<8x128xf32>
    %611 = arith.addf %607, %610 : vector<8x128xf32>
    %612 = math.tanh %611 : vector<8x128xf32>
    %cst_146 = arith.constant 1.000000e+00 : f32
    %613 = vector.broadcast %cst_146 : f32 to vector<8x128xf32>
    %614 = arith.subf %613, %606 : vector<8x128xf32>
    %615 = arith.mulf %614, %612 : vector<8x128xf32>
    %616 = arith.mulf %606, %580 : vector<8x128xf32>
    %617 = arith.addf %615, %616 : vector<8x128xf32>
    %618 = arith.truncf %617 : vector<8x128xf32> to vector<8x128xbf16>
    %619 = arith.addi %319, %586 : i32
    %620 = arith.index_cast %619 : i32 to index
    %c0_147 = arith.constant 0 : index
    %621 = vector.load %arg16[%620, %c0_147] : memref<64x128xbf16, #tpu.memory_space<vmem>>, vector<8x128xbf16>
    tpu.vector_store %arg16[%620, %c0_147], %618 {strides = array<i32>} : memref<64x128xbf16, #tpu.memory_space<vmem>>, vector<8x128xbf16>,
    %c8_i32_148 = arith.constant 8 : i32
    %c1_i32_149 = arith.constant 1 : i32
    %c0_150 = arith.constant 0 : index
    %c0_151 = arith.constant 0 : index
    %622 = vector.load %arg9[%c0_150, %c0_151] : memref<128x384xbf16, #tpu.memory_space<vmem>>, vector<128x384xbf16>
    %c0_152 = arith.constant 0 : index
    %c0_153 = arith.constant 0 : index
    %623 = vector.load %arg10[%c0_152, %c0_153] : memref<1x384xf32, #tpu.memory_space<vmem>>, vector<1x384xf32>
    %c0_154 = arith.constant 0 : index
    %c0_155 = arith.constant 0 : index
    %624 = vector.load %arg11[%c0_154, %c0_155] : memref<128x384xbf16, #tpu.memory_space<vmem>>, vector<128x384xbf16>
    %c0_156 = arith.constant 0 : index
    %c0_157 = arith.constant 0 : index
    %625 = vector.load %arg12[%c0_156, %c0_157] : memref<1x128xf32, #tpu.memory_space<vmem>>, vector<1x128xf32>
    %626 = vector.shape_cast %625 : vector<1x128xf32> to vector<1x128xf32>
    %627 = vector.broadcast %626 : vector<1x128xf32> to vector<8x128xf32>
    %cst_158 = arith.constant 0.000000e+00 : f32
    %628 = vector.broadcast %cst_158 : f32 to vector<8x128xf32>
    %c0_i32_159 = arith.constant 0 : i32
    %c64_i32_160 = arith.constant 64 : i32
    %629 = arith.muli %c0_i32_159, %c64_i32_160 : i32
    %630 = tpu.assume_multiple %629, 8 : i32
    %631 = arith.index_cast %630 : i32 to index
    %c0_161 = arith.constant 0 : index
    %632 = vector.load %arg16[%631, %c0_161] : memref<64x128xbf16, #tpu.memory_space<vmem>>, vector<64x128xbf16>
    %cst_162 = arith.constant dense<0.000000e+00> : vector<64x384xf32>
    %633 = tpu.matmul %632, %622, %cst_162 {dimension_numbers = #tpu.dot_dimension_numbers<[1], [0], [0], [1], [0, 0, 1, 1], [], []>} : vector<64x128xbf16>, vector<128x384xbf16>, vector<64x384xf32> -> vector<64x384xf32>
    %634 = vector.broadcast %623 : vector<1x384xf32> to vector<64x384xf32>
    %635 = arith.addf %633, %634 : vector<64x384xf32>
    %c0_163 = arith.constant 0 : index
    %c0_164 = arith.constant 0 : index
    %636 = vector.load %arg17[%c0_163, %c0_164] : memref<64x384xf32, #tpu.memory_space<vmem>>, vector<64x384xf32>
    tpu.vector_store %arg17[%c0_163, %c0_164], %635 {strides = array<i32>} : memref<64x384xf32, #tpu.memory_space<vmem>>, vector<64x384xf32>,
    %c0_i32_165 = arith.constant 0 : i32
    %c8_i32_166 = arith.constant 8 : i32
    %637 = arith.muli %c0_i32_165, %c8_i32_166 : i32
    %638 = tpu.assume_multiple %637, 8 : i32
    %639 = arith.index_cast %638 : i32 to index
    %c0_167 = arith.constant 0 : index
    %640 = vector.load %arg17[%639, %c0_167] : memref<64x384xf32, #tpu.memory_space<vmem>>, vector<8x384xf32>
    %641 = arith.truncf %628 : vector<8x128xf32> to vector<8x128xbf16>
    %cst_168 = arith.constant dense<0.000000e+00> : vector<8x384xf32>
    %642 = tpu.matmul %641, %624, %cst_168 {dimension_numbers = #tpu.dot_dimension_numbers<[1], [0], [0], [1], [0, 0, 1, 1], [], []>} : vector<8x128xbf16>, vector<128x384xbf16>, vector<8x384xf32> -> vector<8x384xf32>
    %643 = vector.extract_strided_slice %640 {offsets = [0, 0], sizes = [8, 128], strides = [1, 1]} : vector<8x384xf32> to vector<8x128xf32>
    %644 = vector.extract_strided_slice %642 {offsets = [0, 0], sizes = [8, 128], strides = [1, 1]} : vector<8x384xf32> to vector<8x128xf32>
    %645 = arith.addf %643, %644 : vector<8x128xf32>
    %646 = arith.negf %645 : vector<8x128xf32>
    %647 = math.exp %646 : vector<8x128xf32>
    %cst_169 = arith.constant 1.000000e+00 : f32
    %648 = vector.broadcast %cst_169 : f32 to vector<8x128xf32>
    %649 = arith.addf %648, %647 : vector<8x128xf32>
    %650 = arith.divf %648, %649 : vector<8x128xf32>
    %651 = vector.extract_strided_slice %640 {offsets = [0, 128], sizes = [8, 128], strides = [1, 1]} : vector<8x384xf32> to vector<8x128xf32>
    %652 = vector.extract_strided_slice %642 {offsets = [0, 128], sizes = [8, 128], strides = [1, 1]} : vector<8x384xf32> to vector<8x128xf32>
    %653 = arith.addf %651, %652 : vector<8x128xf32>
    %654 = arith.negf %653 : vector<8x128xf32>
    %655 = math.exp %654 : vector<8x128xf32>
    %cst_170 = arith.constant 1.000000e+00 : f32
    %656 = vector.broadcast %cst_170 : f32 to vector<8x128xf32>
    %657 = arith.addf %656, %655 : vector<8x128xf32>
    %658 = arith.divf %656, %657 : vector<8x128xf32>
    %659 = vector.extract_strided_slice %640 {offsets = [0, 256], sizes = [8, 128], strides = [1, 1]} : vector<8x384xf32> to vector<8x128xf32>
    %660 = vector.extract_strided_slice %642 {offsets = [0, 256], sizes = [8, 128], strides = [1, 1]} : vector<8x384xf32> to vector<8x128xf32>
    %661 = arith.addf %660, %627 : vector<8x128xf32>
    %662 = arith.mulf %650, %661 : vector<8x128xf32>
    %663 = arith.addf %659, %662 : vector<8x128xf32>
    %664 = math.tanh %663 : vector<8x128xf32>
    %cst_171 = arith.constant 1.000000e+00 : f32
    %665 = vector.broadcast %cst_171 : f32 to vector<8x128xf32>
    %666 = arith.subf %665, %658 : vector<8x128xf32>
    %667 = arith.mulf %666, %664 : vector<8x128xf32>
    %668 = arith.mulf %658, %628 : vector<8x128xf32>
    %669 = arith.addf %667, %668 : vector<8x128xf32>
    %c1_i32_172 = arith.constant 1 : i32
    %c8_i32_173 = arith.constant 8 : i32
    %670 = arith.muli %c1_i32_172, %c8_i32_173 : i32
    %671 = tpu.assume_multiple %670, 8 : i32
    %672 = arith.index_cast %671 : i32 to index
    %c0_174 = arith.constant 0 : index
    %673 = vector.load %arg17[%672, %c0_174] : memref<64x384xf32, #tpu.memory_space<vmem>>, vector<8x384xf32>
    %674 = arith.truncf %669 : vector<8x128xf32> to vector<8x128xbf16>
    %cst_175 = arith.constant dense<0.000000e+00> : vector<8x384xf32>
    %675 = tpu.matmul %674, %624, %cst_175 {dimension_numbers = #tpu.dot_dimension_numbers<[1], [0], [0], [1], [0, 0, 1, 1], [], []>} : vector<8x128xbf16>, vector<128x384xbf16>, vector<8x384xf32> -> vector<8x384xf32>
    %676 = vector.extract_strided_slice %673 {offsets = [0, 0], sizes = [8, 128], strides = [1, 1]} : vector<8x384xf32> to vector<8x128xf32>
    %677 = vector.extract_strided_slice %675 {offsets = [0, 0], sizes = [8, 128], strides = [1, 1]} : vector<8x384xf32> to vector<8x128xf32>
    %678 = arith.addf %676, %677 : vector<8x128xf32>
    %679 = arith.negf %678 : vector<8x128xf32>
    %680 = math.exp %679 : vector<8x128xf32>
    %cst_176 = arith.constant 1.000000e+00 : f32
    %681 = vector.broadcast %cst_176 : f32 to vector<8x128xf32>
    %682 = arith.addf %681, %680 : vector<8x128xf32>
    %683 = arith.divf %681, %682 : vector<8x128xf32>
    %684 = vector.extract_strided_slice %673 {offsets = [0, 128], sizes = [8, 128], strides = [1, 1]} : vector<8x384xf32> to vector<8x128xf32>
    %685 = vector.extract_strided_slice %675 {offsets = [0, 128], sizes = [8, 128], strides = [1, 1]} : vector<8x384xf32> to vector<8x128xf32>
    %686 = arith.addf %684, %685 : vector<8x128xf32>
    %687 = arith.negf %686 : vector<8x128xf32>
    %688 = math.exp %687 : vector<8x128xf32>
    %cst_177 = arith.constant 1.000000e+00 : f32
    %689 = vector.broadcast %cst_177 : f32 to vector<8x128xf32>
    %690 = arith.addf %689, %688 : vector<8x128xf32>
    %691 = arith.divf %689, %690 : vector<8x128xf32>
    %692 = vector.extract_strided_slice %673 {offsets = [0, 256], sizes = [8, 128], strides = [1, 1]} : vector<8x384xf32> to vector<8x128xf32>
    %693 = vector.extract_strided_slice %675 {offsets = [0, 256], sizes = [8, 128], strides = [1, 1]} : vector<8x384xf32> to vector<8x128xf32>
    %694 = arith.addf %693, %627 : vector<8x128xf32>
    %695 = arith.mulf %683, %694 : vector<8x128xf32>
    %696 = arith.addf %692, %695 : vector<8x128xf32>
    %697 = math.tanh %696 : vector<8x128xf32>
    %cst_178 = arith.constant 1.000000e+00 : f32
    %698 = vector.broadcast %cst_178 : f32 to vector<8x128xf32>
    %699 = arith.subf %698, %691 : vector<8x128xf32>
    %700 = arith.mulf %699, %697 : vector<8x128xf32>
    %701 = arith.mulf %691, %669 : vector<8x128xf32>
    %702 = arith.addf %700, %701 : vector<8x128xf32>
    %c2_i32_179 = arith.constant 2 : i32
    %c8_i32_180 = arith.constant 8 : i32
    %703 = arith.muli %c2_i32_179, %c8_i32_180 : i32
    %704 = tpu.assume_multiple %703, 8 : i32
    %705 = arith.index_cast %704 : i32 to index
    %c0_181 = arith.constant 0 : index
    %706 = vector.load %arg17[%705, %c0_181] : memref<64x384xf32, #tpu.memory_space<vmem>>, vector<8x384xf32>
    %707 = arith.truncf %702 : vector<8x128xf32> to vector<8x128xbf16>
    %cst_182 = arith.constant dense<0.000000e+00> : vector<8x384xf32>
    %708 = tpu.matmul %707, %624, %cst_182 {dimension_numbers = #tpu.dot_dimension_numbers<[1], [0], [0], [1], [0, 0, 1, 1], [], []>} : vector<8x128xbf16>, vector<128x384xbf16>, vector<8x384xf32> -> vector<8x384xf32>
    %709 = vector.extract_strided_slice %706 {offsets = [0, 0], sizes = [8, 128], strides = [1, 1]} : vector<8x384xf32> to vector<8x128xf32>
    %710 = vector.extract_strided_slice %708 {offsets = [0, 0], sizes = [8, 128], strides = [1, 1]} : vector<8x384xf32> to vector<8x128xf32>
    %711 = arith.addf %709, %710 : vector<8x128xf32>
    %712 = arith.negf %711 : vector<8x128xf32>
    %713 = math.exp %712 : vector<8x128xf32>
    %cst_183 = arith.constant 1.000000e+00 : f32
    %714 = vector.broadcast %cst_183 : f32 to vector<8x128xf32>
    %715 = arith.addf %714, %713 : vector<8x128xf32>
    %716 = arith.divf %714, %715 : vector<8x128xf32>
    %717 = vector.extract_strided_slice %706 {offsets = [0, 128], sizes = [8, 128], strides = [1, 1]} : vector<8x384xf32> to vector<8x128xf32>
    %718 = vector.extract_strided_slice %708 {offsets = [0, 128], sizes = [8, 128], strides = [1, 1]} : vector<8x384xf32> to vector<8x128xf32>
    %719 = arith.addf %717, %718 : vector<8x128xf32>
    %720 = arith.negf %719 : vector<8x128xf32>
    %721 = math.exp %720 : vector<8x128xf32>
    %cst_184 = arith.constant 1.000000e+00 : f32
    %722 = vector.broadcast %cst_184 : f32 to vector<8x128xf32>
    %723 = arith.addf %722, %721 : vector<8x128xf32>
    %724 = arith.divf %722, %723 : vector<8x128xf32>
    %725 = vector.extract_strided_slice %706 {offsets = [0, 256], sizes = [8, 128], strides = [1, 1]} : vector<8x384xf32> to vector<8x128xf32>
    %726 = vector.extract_strided_slice %708 {offsets = [0, 256], sizes = [8, 128], strides = [1, 1]} : vector<8x384xf32> to vector<8x128xf32>
    %727 = arith.addf %726, %627 : vector<8x128xf32>
    %728 = arith.mulf %716, %727 : vector<8x128xf32>
    %729 = arith.addf %725, %728 : vector<8x128xf32>
    %730 = math.tanh %729 : vector<8x128xf32>
    %cst_185 = arith.constant 1.000000e+00 : f32
    %731 = vector.broadcast %cst_185 : f32 to vector<8x128xf32>
    %732 = arith.subf %731, %724 : vector<8x128xf32>
    %733 = arith.mulf %732, %730 : vector<8x128xf32>
    %734 = arith.mulf %724, %702 : vector<8x128xf32>
    %735 = arith.addf %733, %734 : vector<8x128xf32>
    %c3_i32_186 = arith.constant 3 : i32
    %c8_i32_187 = arith.constant 8 : i32
    %736 = arith.muli %c3_i32_186, %c8_i32_187 : i32
    %737 = tpu.assume_multiple %736, 8 : i32
    %738 = arith.index_cast %737 : i32 to index
    %c0_188 = arith.constant 0 : index
    %739 = vector.load %arg17[%738, %c0_188] : memref<64x384xf32, #tpu.memory_space<vmem>>, vector<8x384xf32>
    %740 = arith.truncf %735 : vector<8x128xf32> to vector<8x128xbf16>
    %cst_189 = arith.constant dense<0.000000e+00> : vector<8x384xf32>
    %741 = tpu.matmul %740, %624, %cst_189 {dimension_numbers = #tpu.dot_dimension_numbers<[1], [0], [0], [1], [0, 0, 1, 1], [], []>} : vector<8x128xbf16>, vector<128x384xbf16>, vector<8x384xf32> -> vector<8x384xf32>
    %742 = vector.extract_strided_slice %739 {offsets = [0, 0], sizes = [8, 128], strides = [1, 1]} : vector<8x384xf32> to vector<8x128xf32>
    %743 = vector.extract_strided_slice %741 {offsets = [0, 0], sizes = [8, 128], strides = [1, 1]} : vector<8x384xf32> to vector<8x128xf32>
    %744 = arith.addf %742, %743 : vector<8x128xf32>
    %745 = arith.negf %744 : vector<8x128xf32>
    %746 = math.exp %745 : vector<8x128xf32>
    %cst_190 = arith.constant 1.000000e+00 : f32
    %747 = vector.broadcast %cst_190 : f32 to vector<8x128xf32>
    %748 = arith.addf %747, %746 : vector<8x128xf32>
    %749 = arith.divf %747, %748 : vector<8x128xf32>
    %750 = vector.extract_strided_slice %739 {offsets = [0, 128], sizes = [8, 128], strides = [1, 1]} : vector<8x384xf32> to vector<8x128xf32>
    %751 = vector.extract_strided_slice %741 {offsets = [0, 128], sizes = [8, 128], strides = [1, 1]} : vector<8x384xf32> to vector<8x128xf32>
    %752 = arith.addf %750, %751 : vector<8x128xf32>
    %753 = arith.negf %752 : vector<8x128xf32>
    %754 = math.exp %753 : vector<8x128xf32>
    %cst_191 = arith.constant 1.000000e+00 : f32
    %755 = vector.broadcast %cst_191 : f32 to vector<8x128xf32>
    %756 = arith.addf %755, %754 : vector<8x128xf32>
    %757 = arith.divf %755, %756 : vector<8x128xf32>
    %758 = vector.extract_strided_slice %739 {offsets = [0, 256], sizes = [8, 128], strides = [1, 1]} : vector<8x384xf32> to vector<8x128xf32>
    %759 = vector.extract_strided_slice %741 {offsets = [0, 256], sizes = [8, 128], strides = [1, 1]} : vector<8x384xf32> to vector<8x128xf32>
    %760 = arith.addf %759, %627 : vector<8x128xf32>
    %761 = arith.mulf %749, %760 : vector<8x128xf32>
    %762 = arith.addf %758, %761 : vector<8x128xf32>
    %763 = math.tanh %762 : vector<8x128xf32>
    %cst_192 = arith.constant 1.000000e+00 : f32
    %764 = vector.broadcast %cst_192 : f32 to vector<8x128xf32>
    %765 = arith.subf %764, %757 : vector<8x128xf32>
    %766 = arith.mulf %765, %763 : vector<8x128xf32>
    %767 = arith.mulf %757, %735 : vector<8x128xf32>
    %768 = arith.addf %766, %767 : vector<8x128xf32>
    %c4_i32_193 = arith.constant 4 : i32
    %c8_i32_194 = arith.constant 8 : i32
    %769 = arith.muli %c4_i32_193, %c8_i32_194 : i32
    %770 = tpu.assume_multiple %769, 8 : i32
    %771 = arith.index_cast %770 : i32 to index
    %c0_195 = arith.constant 0 : index
    %772 = vector.load %arg17[%771, %c0_195] : memref<64x384xf32, #tpu.memory_space<vmem>>, vector<8x384xf32>
    %773 = arith.truncf %768 : vector<8x128xf32> to vector<8x128xbf16>
    %cst_196 = arith.constant dense<0.000000e+00> : vector<8x384xf32>
    %774 = tpu.matmul %773, %624, %cst_196 {dimension_numbers = #tpu.dot_dimension_numbers<[1], [0], [0], [1], [0, 0, 1, 1], [], []>} : vector<8x128xbf16>, vector<128x384xbf16>, vector<8x384xf32> -> vector<8x384xf32>
    %775 = vector.extract_strided_slice %772 {offsets = [0, 0], sizes = [8, 128], strides = [1, 1]} : vector<8x384xf32> to vector<8x128xf32>
    %776 = vector.extract_strided_slice %774 {offsets = [0, 0], sizes = [8, 128], strides = [1, 1]} : vector<8x384xf32> to vector<8x128xf32>
    %777 = arith.addf %775, %776 : vector<8x128xf32>
    %778 = arith.negf %777 : vector<8x128xf32>
    %779 = math.exp %778 : vector<8x128xf32>
    %cst_197 = arith.constant 1.000000e+00 : f32
    %780 = vector.broadcast %cst_197 : f32 to vector<8x128xf32>
    %781 = arith.addf %780, %779 : vector<8x128xf32>
    %782 = arith.divf %780, %781 : vector<8x128xf32>
    %783 = vector.extract_strided_slice %772 {offsets = [0, 128], sizes = [8, 128], strides = [1, 1]} : vector<8x384xf32> to vector<8x128xf32>
    %784 = vector.extract_strided_slice %774 {offsets = [0, 128], sizes = [8, 128], strides = [1, 1]} : vector<8x384xf32> to vector<8x128xf32>
    %785 = arith.addf %783, %784 : vector<8x128xf32>
    %786 = arith.negf %785 : vector<8x128xf32>
    %787 = math.exp %786 : vector<8x128xf32>
    %cst_198 = arith.constant 1.000000e+00 : f32
    %788 = vector.broadcast %cst_198 : f32 to vector<8x128xf32>
    %789 = arith.addf %788, %787 : vector<8x128xf32>
    %790 = arith.divf %788, %789 : vector<8x128xf32>
    %791 = vector.extract_strided_slice %772 {offsets = [0, 256], sizes = [8, 128], strides = [1, 1]} : vector<8x384xf32> to vector<8x128xf32>
    %792 = vector.extract_strided_slice %774 {offsets = [0, 256], sizes = [8, 128], strides = [1, 1]} : vector<8x384xf32> to vector<8x128xf32>
    %793 = arith.addf %792, %627 : vector<8x128xf32>
    %794 = arith.mulf %782, %793 : vector<8x128xf32>
    %795 = arith.addf %791, %794 : vector<8x128xf32>
    %796 = math.tanh %795 : vector<8x128xf32>
    %cst_199 = arith.constant 1.000000e+00 : f32
    %797 = vector.broadcast %cst_199 : f32 to vector<8x128xf32>
    %798 = arith.subf %797, %790 : vector<8x128xf32>
    %799 = arith.mulf %798, %796 : vector<8x128xf32>
    %800 = arith.mulf %790, %768 : vector<8x128xf32>
    %801 = arith.addf %799, %800 : vector<8x128xf32>
    %c5_i32_200 = arith.constant 5 : i32
    %c8_i32_201 = arith.constant 8 : i32
    %802 = arith.muli %c5_i32_200, %c8_i32_201 : i32
    %803 = tpu.assume_multiple %802, 8 : i32
    %804 = arith.index_cast %803 : i32 to index
    %c0_202 = arith.constant 0 : index
    %805 = vector.load %arg17[%804, %c0_202] : memref<64x384xf32, #tpu.memory_space<vmem>>, vector<8x384xf32>
    %806 = arith.truncf %801 : vector<8x128xf32> to vector<8x128xbf16>
    %cst_203 = arith.constant dense<0.000000e+00> : vector<8x384xf32>
    %807 = tpu.matmul %806, %624, %cst_203 {dimension_numbers = #tpu.dot_dimension_numbers<[1], [0], [0], [1], [0, 0, 1, 1], [], []>} : vector<8x128xbf16>, vector<128x384xbf16>, vector<8x384xf32> -> vector<8x384xf32>
    %808 = vector.extract_strided_slice %805 {offsets = [0, 0], sizes = [8, 128], strides = [1, 1]} : vector<8x384xf32> to vector<8x128xf32>
    %809 = vector.extract_strided_slice %807 {offsets = [0, 0], sizes = [8, 128], strides = [1, 1]} : vector<8x384xf32> to vector<8x128xf32>
    %810 = arith.addf %808, %809 : vector<8x128xf32>
    %811 = arith.negf %810 : vector<8x128xf32>
    %812 = math.exp %811 : vector<8x128xf32>
    %cst_204 = arith.constant 1.000000e+00 : f32
    %813 = vector.broadcast %cst_204 : f32 to vector<8x128xf32>
    %814 = arith.addf %813, %812 : vector<8x128xf32>
    %815 = arith.divf %813, %814 : vector<8x128xf32>
    %816 = vector.extract_strided_slice %805 {offsets = [0, 128], sizes = [8, 128], strides = [1, 1]} : vector<8x384xf32> to vector<8x128xf32>
    %817 = vector.extract_strided_slice %807 {offsets = [0, 128], sizes = [8, 128], strides = [1, 1]} : vector<8x384xf32> to vector<8x128xf32>
    %818 = arith.addf %816, %817 : vector<8x128xf32>
    %819 = arith.negf %818 : vector<8x128xf32>
    %820 = math.exp %819 : vector<8x128xf32>
    %cst_205 = arith.constant 1.000000e+00 : f32
    %821 = vector.broadcast %cst_205 : f32 to vector<8x128xf32>
    %822 = arith.addf %821, %820 : vector<8x128xf32>
    %823 = arith.divf %821, %822 : vector<8x128xf32>
    %824 = vector.extract_strided_slice %805 {offsets = [0, 256], sizes = [8, 128], strides = [1, 1]} : vector<8x384xf32> to vector<8x128xf32>
    %825 = vector.extract_strided_slice %807 {offsets = [0, 256], sizes = [8, 128], strides = [1, 1]} : vector<8x384xf32> to vector<8x128xf32>
    %826 = arith.addf %825, %627 : vector<8x128xf32>
    %827 = arith.mulf %815, %826 : vector<8x128xf32>
    %828 = arith.addf %824, %827 : vector<8x128xf32>
    %829 = math.tanh %828 : vector<8x128xf32>
    %cst_206 = arith.constant 1.000000e+00 : f32
    %830 = vector.broadcast %cst_206 : f32 to vector<8x128xf32>
    %831 = arith.subf %830, %823 : vector<8x128xf32>
    %832 = arith.mulf %831, %829 : vector<8x128xf32>
    %833 = arith.mulf %823, %801 : vector<8x128xf32>
    %834 = arith.addf %832, %833 : vector<8x128xf32>
    %c6_i32_207 = arith.constant 6 : i32
    %c8_i32_208 = arith.constant 8 : i32
    %835 = arith.muli %c6_i32_207, %c8_i32_208 : i32
    %836 = tpu.assume_multiple %835, 8 : i32
    %837 = arith.index_cast %836 : i32 to index
    %c0_209 = arith.constant 0 : index
    %838 = vector.load %arg17[%837, %c0_209] : memref<64x384xf32, #tpu.memory_space<vmem>>, vector<8x384xf32>
    %839 = arith.truncf %834 : vector<8x128xf32> to vector<8x128xbf16>
    %cst_210 = arith.constant dense<0.000000e+00> : vector<8x384xf32>
    %840 = tpu.matmul %839, %624, %cst_210 {dimension_numbers = #tpu.dot_dimension_numbers<[1], [0], [0], [1], [0, 0, 1, 1], [], []>} : vector<8x128xbf16>, vector<128x384xbf16>, vector<8x384xf32> -> vector<8x384xf32>
    %841 = vector.extract_strided_slice %838 {offsets = [0, 0], sizes = [8, 128], strides = [1, 1]} : vector<8x384xf32> to vector<8x128xf32>
    %842 = vector.extract_strided_slice %840 {offsets = [0, 0], sizes = [8, 128], strides = [1, 1]} : vector<8x384xf32> to vector<8x128xf32>
    %843 = arith.addf %841, %842 : vector<8x128xf32>
    %844 = arith.negf %843 : vector<8x128xf32>
    %845 = math.exp %844 : vector<8x128xf32>
    %cst_211 = arith.constant 1.000000e+00 : f32
    %846 = vector.broadcast %cst_211 : f32 to vector<8x128xf32>
    %847 = arith.addf %846, %845 : vector<8x128xf32>
    %848 = arith.divf %846, %847 : vector<8x128xf32>
    %849 = vector.extract_strided_slice %838 {offsets = [0, 128], sizes = [8, 128], strides = [1, 1]} : vector<8x384xf32> to vector<8x128xf32>
    %850 = vector.extract_strided_slice %840 {offsets = [0, 128], sizes = [8, 128], strides = [1, 1]} : vector<8x384xf32> to vector<8x128xf32>
    %851 = arith.addf %849, %850 : vector<8x128xf32>
    %852 = arith.negf %851 : vector<8x128xf32>
    %853 = math.exp %852 : vector<8x128xf32>
    %cst_212 = arith.constant 1.000000e+00 : f32
    %854 = vector.broadcast %cst_212 : f32 to vector<8x128xf32>
    %855 = arith.addf %854, %853 : vector<8x128xf32>
    %856 = arith.divf %854, %855 : vector<8x128xf32>
    %857 = vector.extract_strided_slice %838 {offsets = [0, 256], sizes = [8, 128], strides = [1, 1]} : vector<8x384xf32> to vector<8x128xf32>
    %858 = vector.extract_strided_slice %840 {offsets = [0, 256], sizes = [8, 128], strides = [1, 1]} : vector<8x384xf32> to vector<8x128xf32>
    %859 = arith.addf %858, %627 : vector<8x128xf32>
    %860 = arith.mulf %848, %859 : vector<8x128xf32>
    %861 = arith.addf %857, %860 : vector<8x128xf32>
    %862 = math.tanh %861 : vector<8x128xf32>
    %cst_213 = arith.constant 1.000000e+00 : f32
    %863 = vector.broadcast %cst_213 : f32 to vector<8x128xf32>
    %864 = arith.subf %863, %856 : vector<8x128xf32>
    %865 = arith.mulf %864, %862 : vector<8x128xf32>
    %866 = arith.mulf %856, %834 : vector<8x128xf32>
    %867 = arith.addf %865, %866 : vector<8x128xf32>
    %c7_i32_214 = arith.constant 7 : i32
    %c8_i32_215 = arith.constant 8 : i32
    %868 = arith.muli %c7_i32_214, %c8_i32_215 : i32
    %869 = tpu.assume_multiple %868, 8 : i32
    %870 = arith.index_cast %869 : i32 to index
    %c0_216 = arith.constant 0 : index
    %871 = vector.load %arg17[%870, %c0_216] : memref<64x384xf32, #tpu.memory_space<vmem>>, vector<8x384xf32>
    %872 = arith.truncf %867 : vector<8x128xf32> to vector<8x128xbf16>
    %cst_217 = arith.constant dense<0.000000e+00> : vector<8x384xf32>
    %873 = tpu.matmul %872, %624, %cst_217 {dimension_numbers = #tpu.dot_dimension_numbers<[1], [0], [0], [1], [0, 0, 1, 1], [], []>} : vector<8x128xbf16>, vector<128x384xbf16>, vector<8x384xf32> -> vector<8x384xf32>
    %874 = vector.extract_strided_slice %871 {offsets = [0, 0], sizes = [8, 128], strides = [1, 1]} : vector<8x384xf32> to vector<8x128xf32>
    %875 = vector.extract_strided_slice %873 {offsets = [0, 0], sizes = [8, 128], strides = [1, 1]} : vector<8x384xf32> to vector<8x128xf32>
    %876 = arith.addf %874, %875 : vector<8x128xf32>
    %877 = arith.negf %876 : vector<8x128xf32>
    %878 = math.exp %877 : vector<8x128xf32>
    %cst_218 = arith.constant 1.000000e+00 : f32
    %879 = vector.broadcast %cst_218 : f32 to vector<8x128xf32>
    %880 = arith.addf %879, %878 : vector<8x128xf32>
    %881 = arith.divf %879, %880 : vector<8x128xf32>
    %882 = vector.extract_strided_slice %871 {offsets = [0, 128], sizes = [8, 128], strides = [1, 1]} : vector<8x384xf32> to vector<8x128xf32>
    %883 = vector.extract_strided_slice %873 {offsets = [0, 128], sizes = [8, 128], strides = [1, 1]} : vector<8x384xf32> to vector<8x128xf32>
    %884 = arith.addf %882, %883 : vector<8x128xf32>
    %885 = arith.negf %884 : vector<8x128xf32>
    %886 = math.exp %885 : vector<8x128xf32>
    %cst_219 = arith.constant 1.000000e+00 : f32
    %887 = vector.broadcast %cst_219 : f32 to vector<8x128xf32>
    %888 = arith.addf %887, %886 : vector<8x128xf32>
    %889 = arith.divf %887, %888 : vector<8x128xf32>
    %890 = vector.extract_strided_slice %871 {offsets = [0, 256], sizes = [8, 128], strides = [1, 1]} : vector<8x384xf32> to vector<8x128xf32>
    %891 = vector.extract_strided_slice %873 {offsets = [0, 256], sizes = [8, 128], strides = [1, 1]} : vector<8x384xf32> to vector<8x128xf32>
    %892 = arith.addf %891, %627 : vector<8x128xf32>
    %893 = arith.mulf %881, %892 : vector<8x128xf32>
    %894 = arith.addf %890, %893 : vector<8x128xf32>
    %895 = math.tanh %894 : vector<8x128xf32>
    %cst_220 = arith.constant 1.000000e+00 : f32
    %896 = vector.broadcast %cst_220 : f32 to vector<8x128xf32>
    %897 = arith.subf %896, %889 : vector<8x128xf32>
    %898 = arith.mulf %897, %895 : vector<8x128xf32>
    %899 = arith.mulf %889, %867 : vector<8x128xf32>
    %900 = arith.addf %898, %899 : vector<8x128xf32>
    %c8_i32_221 = arith.constant 8 : i32
    %c1_i32_222 = arith.constant 1 : i32
    %c0_223 = arith.constant 0 : index
    %c0_224 = arith.constant 0 : index
    %901 = vector.load %arg13[%c0_223, %c0_224] : memref<128x2xf32, #tpu.memory_space<vmem>>, vector<128x2xf32>
    %cst_225 = arith.constant dense<0.000000e+00> : vector<8x2xf32>
    %902 = tpu.matmul %900, %901, %cst_225 {dimension_numbers = #tpu.dot_dimension_numbers<[1], [0], [0], [1], [0, 0, 1, 1], [], []>} : vector<8x128xf32>, vector<128x2xf32>, vector<8x2xf32> -> vector<8x2xf32>
    %c0_226 = arith.constant 0 : index
    %c0_227 = arith.constant 0 : index
    %903 = vector.load %arg14[%c0_226, %c0_227] : memref<1x2xf32, #tpu.memory_space<vmem>>, vector<1x2xf32>
    %904 = vector.broadcast %903 : vector<1x2xf32> to vector<8x2xf32>
    %905 = arith.addf %902, %904 : vector<8x2xf32>
    %c0_228 = arith.constant 0 : index
    %c0_229 = arith.constant 0 : index
    %906 = vector.load %arg15[%c0_228, %c0_229] : memref<8x2xf32, #tpu.memory_space<vmem>>, vector<8x2xf32>
    tpu.vector_store %arg15[%c0_228, %c0_229], %905 {strides = array<i32>} : memref<8x2xf32, #tpu.memory_space<vmem>>, vector<8x2xf32>,
    return
  }
}

</mosaic_0001>

<llo_original>
// kernel: bpnet_forward.1
$region0: #{bpnet_forward.1}
  #allocation0 [shape = 'u32[]', space=smem, size = 0x4, offset = 0x4, fixed_abs, tag = 'smem constant byte address 0x4 - core index']
  #allocation1 [shape = 'u32[144,128]{1,0:T(1,128)}', space=vmem, size = 0x12000, scoped, tag = 'internal scratch']
  #allocation2 [shape = 'bf16[64,128]{1,0:T(8,128)(2,1)}', space=vmem, size = 0x4000, scoped, tag = 'scratch operand']
  #allocation3 [shape = 'f32[64,384]{1,0:T(8,128)}', space=vmem, size = 0x18000, scoped, tag = 'scratch operand']
  %s0 = inlined_call_operand.vmem [shape: f32[64,8], index: 0, kind: input, shape index: {}]
  %s1 = inlined_call_operand.vmem [shape: f32[8,384], index: 1, kind: input, shape index: {}]
  %s2 = inlined_call_operand.vmem [shape: f32[1,384], index: 2, kind: input, shape index: {}]
  %s3 = inlined_call_operand.vmem [shape: bf16[128,384], index: 3, kind: input, shape index: {}]
  %s4 = inlined_call_operand.vmem [shape: f32[1,128], index: 4, kind: input, shape index: {}]
  %s5 = inlined_call_operand.hbm [shape: bf16[128,384], index: 5, kind: input, shape index: {}]
  %s6 = inlined_call_operand.vmem [shape: f32[1,384], index: 6, kind: input, shape index: {}]
  %s7 = inlined_call_operand.hbm [shape: bf16[128,384], index: 7, kind: input, shape index: {}]
  %s8 = inlined_call_operand.vmem [shape: f32[1,128], index: 8, kind: input, shape index: {}]
  %s9 = inlined_call_operand.hbm [shape: bf16[128,384], index: 9, kind: input, shape index: {}]
  %s10 = inlined_call_operand.vmem [shape: f32[1,384], index: 10, kind: input, shape index: {}]
  %s11 = inlined_call_operand.hbm [shape: bf16[128,384], index: 11, kind: input, shape index: {}]
  %s12 = inlined_call_operand.vmem [shape: f32[1,128], index: 12, kind: input, shape index: {}]
  %s13 = inlined_call_operand.vmem [shape: f32[128,2], index: 13, kind: input, shape index: {}]
  %s14 = inlined_call_operand.vmem [shape: f32[1,2], index: 14, kind: input, shape index: {}]
  %s15 = inlined_call_operand.vmem [shape: f32[8,2], index: 15, kind: output, shape index: {}]
  %s16 = sld [smem:[#allocation0]]
  $region86: #{bpnet_forward.1} parent=0
    _
  %s18 = ssub.s32 1, %s16
  %s19 = scalar_select 0, %s18, %s16
  $region1: #{bpnet_forward.1} parent=0
    #allocation4 [shape = 'u8[98304]{0}', space=vmem, size = 0x18000, scoped, tag = 'input window, operand 5, single buffered']
    #allocation5 [shape = 's32[1]{0}', space=sflag, size = 0x4, scoped, tag = 'scoped memory for bpnet_forward.1']
    #allocation6 [shape = 'u8[98304]{0}', space=vmem, size = 0x18000, scoped, tag = 'input window, operand 7, single buffered']
    #allocation7 [shape = 's32[1]{0}', space=sflag, size = 0x4, scoped, tag = 'scoped memory for bpnet_forward.1']
    #allocation8 [shape = 'u8[98304]{0}', space=vmem, size = 0x18000, scoped, tag = 'input window, operand 9, single buffered']
    #allocation9 [shape = 'u8[98304]{0}', space=vmem, size = 0x18000, scoped, tag = 'input window, operand 11, single buffered']
    #allocation10 [shape = 's32[1]{0}', space=sflag, size = 0x4, scoped, tag = 'scoped memory for bpnet_forward.1']
    %20 = vsyncpa [#allocation5], 0
    %21 = vsyncpa [#allocation7], 0
    %22 = vsyncpa [#allocation10], 0
    // Predicated region
    $region2: #{bpnet_forward.1} parent=1 // pred_check
      _
    $region3: #{bpnet_forward.1} parent=1 // pred_check_branch
      %24 = sbr.rel (0) target = $region5
    $region4: #{bpnet_forward.1} parent=1 // pred_region
      _
    $region5: #{bpnet_forward.1} parent=1 // pred_fallthru
      _
    // Predicated region
    $region6: #{bpnet_forward.1} parent=1 // pred_check
      _
    $region7: #{bpnet_forward.1} parent=1 // pred_check_branch
      %26 = sbr.rel (0) target = $region9
    $region8: #{bpnet_forward.1} parent=1 // pred_region
      _
    $region9: #{bpnet_forward.1} parent=1 // pred_fallthru
      _
    // Predicated region
    $region10: #{bpnet_forward.1} parent=1 // pred_check
      _
    $region11: #{bpnet_forward.1} parent=1 // pred_check_branch
      %28 = sbr.rel (0) target = $region13
    $region12: #{bpnet_forward.1} parent=1 // pred_region
      _
    $region13: #{bpnet_forward.1} parent=1 // pred_fallthru
      _
    // Predicated region
    $region14: #{bpnet_forward.1} parent=1 // pred_check
      _
    $region15: #{bpnet_forward.1} parent=1 // pred_check_branch
      %30 = sbr.rel (0) target = $region17
    $region16: #{bpnet_forward.1} parent=1 // pred_region
      _
    $region17: #{bpnet_forward.1} parent=1 // pred_fallthru
      _
    // Predicated region
    $region18: #{bpnet_forward.1} parent=1 // pred_check
      _
    $region19: #{bpnet_forward.1} parent=1 // pred_check_branch
      %32 = sbr.rel (0) target = $region21
    $region20: #{bpnet_forward.1} parent=1 // pred_region
      _
    $region21: #{bpnet_forward.1} parent=1 // pred_fallthru
      _
    // Predicated region
    $region22: #{bpnet_forward.1} parent=1 // pred_check
      _
    $region23: #{bpnet_forward.1} parent=1 // pred_check_branch
      %34 = sbr.rel (0) target = $region25
    $region24: #{bpnet_forward.1} parent=1 // pred_region
      %s36 = ssub.s32 3072, 3072
      %37 = vsyncadd [#allocation5], %s36
      %s38 = sshll.u32 [#allocation4], 4
      %s39 = int_to_ptr.vmem [resolvable:$true] %s38
      %44 = dma.hbm_to_vmem [thread:$0]  %s5, 3072, %s39, [#allocation5], 192, 192, 12
    $region25: #{bpnet_forward.1} parent=1 // pred_fallthru
      _
    // Predicated region
    $region26: #{bpnet_forward.1} parent=1 // pred_check
      _
    $region27: #{bpnet_forward.1} parent=1 // pred_check_branch
      %46 = sbr.rel (0) target = $region29
    $region28: #{bpnet_forward.1} parent=1 // pred_region
      _
    $region29: #{bpnet_forward.1} parent=1 // pred_fallthru
      _
    // Predicated region
    $region30: #{bpnet_forward.1} parent=1 // pred_check
      _
    $region31: #{bpnet_forward.1} parent=1 // pred_check_branch
      %48 = sbr.rel (0) target = $region33
    $region32: #{bpnet_forward.1} parent=1 // pred_region
      %s50 = ssub.s32 3072, 3072
      %51 = vsyncadd [#allocation7], %s50
      %s52 = sshll.u32 [#allocation6], 4
      %s53 = int_to_ptr.vmem [resolvable:$true] %s52
      %58 = dma.hbm_to_vmem [thread:$0]  %s7, 3072, %s53, [#allocation7], 192, 192, 12
    $region33: #{bpnet_forward.1} parent=1 // pred_fallthru
      _
    // Predicated region
    $region34: #{bpnet_forward.1} parent=1 // pred_check
      _
    $region35: #{bpnet_forward.1} parent=1 // pred_check_branch
      %60 = sbr.rel (0) target = $region37
    $region36: #{bpnet_forward.1} parent=1 // pred_region
      _
    $region37: #{bpnet_forward.1} parent=1 // pred_fallthru
      _
    // Predicated region
    $region38: #{bpnet_forward.1} parent=1 // pred_check
      _
    $region39: #{bpnet_forward.1} parent=1 // pred_check_branch
      %62 = sbr.rel (0) target = $region41
    $region40: #{bpnet_forward.1} parent=1 // pred_region
      %s64 = ssub.s32 3072, 3072
      %65 = vsyncadd [#allocation7], %s64
      %s66 = sshll.u32 [#allocation8], 4
      %s67 = int_to_ptr.vmem [resolvable:$true] %s66
      %72 = dma.hbm_to_vmem [thread:$0]  %s9, 3072, %s67, [#allocation7], 192, 192, 12
    $region41: #{bpnet_forward.1} parent=1 // pred_fallthru
      _
    // Predicated region
    $region42: #{bpnet_forward.1} parent=1 // pred_check
      _
    $region43: #{bpnet_forward.1} parent=1 // pred_check_branch
      %74 = sbr.rel (0) target = $region45
    $region44: #{bpnet_forward.1} parent=1 // pred_region
      _
    $region45: #{bpnet_forward.1} parent=1 // pred_fallthru
      _
    // Predicated region
    $region46: #{bpnet_forward.1} parent=1 // pred_check
      _
    $region47: #{bpnet_forward.1} parent=1 // pred_check_branch
      %76 = sbr.rel (0) target = $region49
    $region48: #{bpnet_forward.1} parent=1 // pred_region
      %s78 = ssub.s32 3072, 3072
      %79 = vsyncadd [#allocation10], %s78
      %s80 = sshll.u32 [#allocation9], 4
      %s81 = int_to_ptr.vmem [resolvable:$true] %s80
      %86 = dma.hbm_to_vmem [thread:$0]  %s11, 3072, %s81, [#allocation10], 192, 192, 12
    $region49: #{bpnet_forward.1} parent=1 // pred_fallthru
      _
    // Predicated region
    $region50: #{bpnet_forward.1} parent=1 // pred_check
      _
    $region51: #{bpnet_forward.1} parent=1 // pred_check_branch
      %88 = sbr.rel (0) target = $region53
    $region52: #{bpnet_forward.1} parent=1 // pred_region
      _
    $region53: #{bpnet_forward.1} parent=1 // pred_fallthru
      _
    // Predicated region
    $region54: #{bpnet_forward.1} parent=1 // pred_check
      _
    $region55: #{bpnet_forward.1} parent=1 // pred_check_branch
      %90 = sbr.rel (0) target = $region57
    $region56: #{bpnet_forward.1} parent=1 // pred_region
      _
    $region57: #{bpnet_forward.1} parent=1 // pred_fallthru
      _
    // Predicated region
    $region58: #{bpnet_forward.1} parent=1 // pred_check
      _
    $region59: #{bpnet_forward.1} parent=1 // pred_check_branch
      %92 = sbr.rel (0) target = $region61
    $region60: #{bpnet_forward.1} parent=1 // pred_region
      _
    $region61: #{bpnet_forward.1} parent=1 // pred_fallthru
      _
    // Predicated region
    $region62: #{bpnet_forward.1} parent=1 // pred_check
      _
    $region63: #{bpnet_forward.1} parent=1 // pred_check_branch
      %94 = sbr.rel (0) target = $region65
    $region64: #{bpnet_forward.1} parent=1 // pred_region
      %95 = dma.done [#allocation5], 3072
    $region65: #{bpnet_forward.1} parent=1 // pred_fallthru
      _
    // Predicated region
    $region66: #{bpnet_forward.1} parent=1 // pred_check
      _
    $region67: #{bpnet_forward.1} parent=1 // pred_check_branch
      %97 = sbr.rel (0) target = $region69
    $region68: #{bpnet_forward.1} parent=1 // pred_region
      %98 = dma.done [#allocation7], 3072
    $region69: #{bpnet_forward.1} parent=1 // pred_fallthru
      _
    // Predicated region
    $region70: #{bpnet_forward.1} parent=1 // pred_check
      _
    $region71: #{bpnet_forward.1} parent=1 // pred_check_branch
      %100 = sbr.rel (0) target = $region73
    $region72: #{bpnet_forward.1} parent=1 // pred_region
      %101 = dma.done [#allocation7], 3072
    $region73: #{bpnet_forward.1} parent=1 // pred_fallthru
      _
    // Predicated region
    $region74: #{bpnet_forward.1} parent=1 // pred_check
      _
    $region75: #{bpnet_forward.1} parent=1 // pred_check_branch
      %103 = sbr.rel (0) target = $region77
    $region76: #{bpnet_forward.1} parent=1 // pred_region
      %104 = dma.done [#allocation10], 3072
    $region77: #{bpnet_forward.1} parent=1 // pred_fallthru
      _
    %v106 = vld [vmem:[%s1] sm:$0xff]
    %v107 = vld [vmem:[%s1 + $0x8] sm:$0xff]
    %v108 = vld [vmem:[%s1 + $0x10] sm:$0xff]
    %v109 = vld [vmem:[%s2] sm:$0x7]
    %v110 = vld [vmem:[%s3] sm:$0xff]
    %v111 = vld [vmem:[%s3 + $0x8] sm:$0xf]
    %v112 = vld [vmem:[%s3 + $0xc] sm:$0xff]
    %v113 = vld [vmem:[%s3 + $0x14] sm:$0xf]
    %v114 = vld [vmem:[%s3 + $0x18] sm:$0xff]
    %v115 = vld [vmem:[%s3 + $0x20] sm:$0xf]
    %v116 = vld [vmem:[%s3 + $0x24] sm:$0xff]
    %v117 = vld [vmem:[%s3 + $0x2c] sm:$0xf]
    %v118 = vld [vmem:[%s3 + $0x30] sm:$0xff]
    %v119 = vld [vmem:[%s3 + $0x38] sm:$0xf]
    %v120 = vld [vmem:[%s3 + $0x3c] sm:$0xff]
    %v121 = vld [vmem:[%s3 + $0x44] sm:$0xf]
    %v122 = vld [vmem:[%s3 + $0x48] sm:$0xff]
    %v123 = vld [vmem:[%s3 + $0x50] sm:$0xf]
    %v124 = vld [vmem:[%s3 + $0x54] sm:$0xff]
    %v125 = vld [vmem:[%s3 + $0x5c] sm:$0xf]
    %v126 = vld [vmem:[%s3 + $0x60] sm:$0xff]
    %v127 = vld [vmem:[%s3 + $0x68] sm:$0xf]
    %v128 = vld [vmem:[%s3 + $0x6c] sm:$0xff]
    %v129 = vld [vmem:[%s3 + $0x74] sm:$0xf]
    %v130 = vld [vmem:[%s3 + $0x78] sm:$0xff]
    %v131 = vld [vmem:[%s3 + $0x80] sm:$0xf]
    %v132 = vld [vmem:[%s3 + $0x84] sm:$0xff]
    %v133 = vld [vmem:[%s3 + $0x8c] sm:$0xf]
    %v134 = vld [vmem:[%s3 + $0x90] sm:$0xff]
    %v135 = vld [vmem:[%s3 + $0x98] sm:$0xf]
    %v136 = vld [vmem:[%s3 + $0x9c] sm:$0xff]
    %v137 = vld [vmem:[%s3 + $0xa4] sm:$0xf]
    %v138 = vld [vmem:[%s3 + $0xa8] sm:$0xff]
    %v139 = vld [vmem:[%s3 + $0xb0] sm:$0xf]
    %v140 = vld [vmem:[%s3 + $0xb4] sm:$0xff]
    %v141 = vld [vmem:[%s3 + $0xbc] sm:$0xf]
    %v142 = vld [vmem:[%s4] sm:$0x1]
    %v144 = vlaneseq
    %v145 = vshrl.u32 %v144, 7
    %v146 = vsub.s32 0, %v145
    %v147 = vrot.slane %v142, %v146
    %v149 = vld [vmem:[%s0] sm:$0xff]
    %v150 = vld [vmem:[%s0 + $0x8] sm:$0xff]
    %v151 = vld [vmem:[%s0 + $0x10] sm:$0xff]
    %v152 = vld [vmem:[%s0 + $0x18] sm:$0xff]
    %v153 = vld [vmem:[%s0 + $0x20] sm:$0xff]
    %v154 = vld [vmem:[%s0 + $0x28] sm:$0xff]
    %v155 = vld [vmem:[%s0 + $0x30] sm:$0xff]
    %v156 = vld [vmem:[%s0 + $0x38] sm:$0xff]
    %v158 = vlaneseq
    %v159 = vshrl.u32 %v158, 7
    %v160 = vsub.s32 0, %v159
    %v161 = vrot.slane %v109, %v160
    %v162 = vlaneseq
    %v163 = vshrl.u32 %v162, 7
    %v164 = vsub.s32 1, %v163
    %v165 = vrot.slane %v109, %v164
    %v166 = vlaneseq
    %v167 = vshrl.u32 %v166, 7
    %v168 = vsub.s32 2, %v167
    %v169 = vrot.slane %v109, %v168
    %vm173 = vcmask 64512
    %v175 = vsel %vm173, %v149, 0
    %v178 = vsel %vm173, %v150, 0
    %v181 = vsel %vm173, %v151, 0
    %v184 = vsel %vm173, %v152, 0
    %v187 = vsel %vm173, %v153, 0
    %v190 = vsel %vm173, %v154, 0
    %v193 = vsel %vm173, %v155, 0
    %v196 = vsel %vm173, %v156, 0
    %198 = vmatprep.subr.mxu0 0.0
    %199 = vmatpush1.msra.mxu0 0.0
    %200 = vmatprep.subr.mxu0 0.0
    %201 = vmatpush1.msra.mxu0 0.0
    %202 = vmatprep.subr.mxu0 0.0
    %203 = vmatpush1.msra.mxu0 0.0
    %204 = vmatprep.subr.mxu0 0.0
    %205 = vmatpush1.msra.mxu0 0.0
    %206 = vmatprep.subr.mxu0 0.0
    %207 = vmatpush1.msra.mxu0 0.0
    %208 = vmatprep.subr.mxu0 0.0
    %209 = vmatpush1.msra.mxu0 0.0
    %210 = vmatprep.subr.mxu0 0.0
    %211 = vmatpush1.msra.mxu0 0.0
    %212 = vmatprep.subr.mxu0 0.0
    %213 = vmatpush1.msra.mxu0 0.0
    %214 = vmatprep.subr.mxu0 0.0
    %215 = vmatpush1.msra.mxu0 0.0
    %216 = vmatprep.subr.mxu0 0.0
    %217 = vmatpush1.msra.mxu0 0.0
    %218 = vmatprep.subr.mxu0 0.0
    %219 = vmatpush1.msra.mxu0 0.0
    %220 = vmatprep.subr.mxu0 0.0
    %221 = vmatpush1.msra.mxu0 0.0
    %222 = vmatprep.subr.mxu0 0.0
    %223 = vmatpush1.msra.mxu0 0.0
    %224 = vmatprep.subr.mxu0 0.0
    %225 = vmatpush1.msra.mxu0 0.0
    %226 = vmatprep.subr.mxu0 0.0
    %227 = vmatpush1.msra.mxu0 0.0
    %228 = vmatprep.subr.mxu0 %v107
    %229 = vmatpush1.msra.mxu0 %v106
    %230 = vmatprep.subr.mxu0 0.0
    %231 = vmatpush2.msra.mxu0 0.0
    %232 = vmatprep.subr.mxu0 0.0
    %233 = vmatpush2.msra.mxu0 0.0
    %234 = vmatprep.subr.mxu0 0.0
    %235 = vmatpush2.msra.mxu0 0.0
    %236 = vmatprep.subr.mxu0 0.0
    %237 = vmatpush2.msra.mxu0 0.0
    %238 = vmatprep.subr.mxu0 0.0
    %239 = vmatpush2.msra.mxu0 0.0
    %240 = vmatprep.subr.mxu0 0.0
    %241 = vmatpush2.msra.mxu0 0.0
    %242 = vmatprep.subr.mxu0 0.0
    %243 = vmatpush2.msra.mxu0 0.0
    %244 = vmatprep.subr.mxu0 0.0
    %245 = vmatpush2.msra.mxu0 0.0
    %246 = vmatprep.subr.mxu0 0.0
    %247 = vmatpush2.msra.mxu0 0.0
    %248 = vmatprep.subr.mxu0 0.0
    %249 = vmatpush2.msra.mxu0 0.0
    %250 = vmatprep.subr.mxu0 0.0
    %251 = vmatpush2.msra.mxu0 0.0
    %252 = vmatprep.subr.mxu0 0.0
    %253 = vmatpush2.msra.mxu0 0.0
    %254 = vmatprep.subr.mxu0 0.0
    %255 = vmatpush2.msra.mxu0 0.0
    %256 = vmatprep.subr.mxu0 0.0
    %257 = vmatpush2.msra.mxu0 0.0
    %258 = vmatprep.subr.mxu0 0.0
    %259 = vmatpush2.msra.mxu0 0.0
    %260 = vmatprep.subr.mxu0 0.0
    %261 = vmatpush2.msra.mxu0 0.0
    %262 = vmatprep.mubr.f32.mxu0 0.0
    %263 = vmatmul.mubr.f32.gmra.mxu0 %v175
    %v264 = vpop.f32.mrf.mxu0
    %v265 = vadd.f32 %v161, %v264
    %v266 = vpop.f32.mrf.mxu0
    %v267 = vadd.f32 %v165, %v266
    %268 = vmatprep.mubr.f32.mxu0 0.0
    %269 = vmatmul.mubr.f32.gmra.mxu0 %v178
    %v270 = vpop.f32.mrf.mxu0
    %v271 = vadd.f32 %v161, %v270
    %v272 = vpop.f32.mrf.mxu0
    %v273 = vadd.f32 %v165, %v272
    %274 = vmatprep.mubr.f32.mxu0 0.0
    %275 = vmatmul.mubr.f32.gmra.mxu0 %v181
    %v276 = vpop.f32.mrf.mxu0
    %v277 = vadd.f32 %v161, %v276
    %v278 = vpop.f32.mrf.mxu0
    %v279 = vadd.f32 %v165, %v278
    %280 = vmatprep.mubr.f32.mxu0 0.0
    %281 = vmatmul.mubr.f32.gmra.mxu0 %v184
    %v282 = vpop.f32.mrf.mxu0
    %v283 = vadd.f32 %v161, %v282
    %v284 = vpop.f32.mrf.mxu0
    %v285 = vadd.f32 %v165, %v284
    %286 = vmatprep.mubr.f32.mxu0 0.0
    %287 = vmatmul.mubr.f32.gmra.mxu0 %v187
    %v288 = vpop.f32.mrf.mxu0
    %v289 = vadd.f32 %v161, %v288
    %v290 = vpop.f32.mrf.mxu0
    %v291 = vadd.f32 %v165, %v290
    %292 = vmatprep.mubr.f32.mxu0 0.0
    %293 = vmatmul.mubr.f32.gmra.mxu0 %v190
    %v294 = vpop.f32.mrf.mxu0
    %v295 = vadd.f32 %v161, %v294
    %v296 = vpop.f32.mrf.mxu0
    %v297 = vadd.f32 %v165, %v296
    %298 = vmatprep.mubr.f32.mxu0 0.0
    %299 = vmatmul.mubr.f32.gmra.mxu0 %v193
    %v300 = vpop.f32.mrf.mxu0
    %v301 = vadd.f32 %v161, %v300
    %v302 = vpop.f32.mrf.mxu0
    %v303 = vadd.f32 %v165, %v302
    %304 = vmatprep.mubr.f32.mxu0 0.0
    %305 = vmatmul.mubr.f32.gmra.mxu0 %v196
    %v306 = vpop.f32.mrf.mxu0
    %v307 = vadd.f32 %v161, %v306
    %v308 = vpop.f32.mrf.mxu0
    %v309 = vadd.f32 %v165, %v308
    %310 = vdwg.mxu0
    %311 = vmatprep.subr.mxu0 0.0
    %312 = vmatpush1.msra.mxu0 0.0
    %313 = vmatprep.subr.mxu0 0.0
    %314 = vmatpush1.msra.mxu0 0.0
    %315 = vmatprep.subr.mxu0 0.0
    %316 = vmatpush1.msra.mxu0 0.0
    %317 = vmatprep.subr.mxu0 0.0
    %318 = vmatpush1.msra.mxu0 0.0
    %319 = vmatprep.subr.mxu0 0.0
    %320 = vmatpush1.msra.mxu0 0.0
    %321 = vmatprep.subr.mxu0 0.0
    %322 = vmatpush1.msra.mxu0 0.0
    %323 = vmatprep.subr.mxu0 0.0
    %324 = vmatpush1.msra.mxu0 0.0
    %325 = vmatprep.subr.mxu0 0.0
    %326 = vmatpush1.msra.mxu0 0.0
    %327 = vmatprep.subr.mxu0 0.0
    %328 = vmatpush1.msra.mxu0 0.0
    %329 = vmatprep.subr.mxu0 0.0
    %330 = vmatpush1.msra.mxu0 0.0
    %331 = vmatprep.subr.mxu0 0.0
    %332 = vmatpush1.msra.mxu0 0.0
    %333 = vmatprep.subr.mxu0 0.0
    %334 = vmatpush1.msra.mxu0 0.0
    %335 = vmatprep.subr.mxu0 0.0
    %336 = vmatpush1.msra.mxu0 0.0
    %337 = vmatprep.subr.mxu0 0.0
    %338 = vmatpush1.msra.mxu0 0.0
    %339 = vmatprep.subr.mxu0 0.0
    %340 = vmatpush1.msra.mxu0 0.0
    %341 = vmatprep.subr.mxu0 0.0
    %342 = vmatpush1.msra.mxu0 %v108
    %343 = vmatprep.subr.mxu0 0.0
    %344 = vmatpush2.msra.mxu0 0.0
    %345 = vmatprep.subr.mxu0 0.0
    %346 = vmatpush2.msra.mxu0 0.0
    %347 = vmatprep.subr.mxu0 0.0
    %348 = vmatpush2.msra.mxu0 0.0
    %349 = vmatprep.subr.mxu0 0.0
    %350 = vmatpush2.msra.mxu0 0.0
    %351 = vmatprep.subr.mxu0 0.0
    %352 = vmatpush2.msra.mxu0 0.0
    %353 = vmatprep.subr.mxu0 0.0
    %354 = vmatpush2.msra.mxu0 0.0
    %355 = vmatprep.subr.mxu0 0.0
    %356 = vmatpush2.msra.mxu0 0.0
    %357 = vmatprep.subr.mxu0 0.0
    %358 = vmatpush2.msra.mxu0 0.0
    %359 = vmatprep.subr.mxu0 0.0
    %360 = vmatpush2.msra.mxu0 0.0
    %361 = vmatprep.subr.mxu0 0.0
    %362 = vmatpush2.msra.mxu0 0.0
    %363 = vmatprep.subr.mxu0 0.0
    %364 = vmatpush2.msra.mxu0 0.0
    %365 = vmatprep.subr.mxu0 0.0
    %366 = vmatpush2.msra.mxu0 0.0
    %367 = vmatprep.subr.mxu0 0.0
    %368 = vmatpush2.msra.mxu0 0.0
    %369 = vmatprep.subr.mxu0 0.0
    %370 = vmatpush2.msra.mxu0 0.0
    %371 = vmatprep.subr.mxu0 0.0
    %372 = vmatpush2.msra.mxu0 0.0
    %373 = vmatprep.subr.mxu0 0.0
    %374 = vmatpush2.msra.mxu0 0.0
    %375 = vmatprep.mubr.f32.mxu0 0.0
    %376 = vmatmul.mubr.f32.gmra.mxu0 %v175
    %v377 = vpop.f32.mrf.mxu0
    %v378 = vadd.f32 %v169, %v377
    %v379 = vpop.f32.mrf.mxu0
    %380 = vmatprep.mubr.f32.mxu0 0.0
    %381 = vmatmul.mubr.f32.gmra.mxu0 %v178
    %v382 = vpop.f32.mrf.mxu0
    %v383 = vadd.f32 %v169, %v382
    %v384 = vpop.f32.mrf.mxu0
    %385 = vmatprep.mubr.f32.mxu0 0.0
    %386 = vmatmul.mubr.f32.gmra.mxu0 %v181
    %v387 = vpop.f32.mrf.mxu0
    %v388 = vadd.f32 %v169, %v387
    %v389 = vpop.f32.mrf.mxu0
    %390 = vmatprep.mubr.f32.mxu0 0.0
    %391 = vmatmul.mubr.f32.gmra.mxu0 %v184
    %v392 = vpop.f32.mrf.mxu0
    %v393 = vadd.f32 %v169, %v392
    %v394 = vpop.f32.mrf.mxu0
    %395 = vmatprep.mubr.f32.mxu0 0.0
    %396 = vmatmul.mubr.f32.gmra.mxu0 %v187
    %v397 = vpop.f32.mrf.mxu0
    %v398 = vadd.f32 %v169, %v397
    %v399 = vpop.f32.mrf.mxu0
    %400 = vmatprep.mubr.f32.mxu0 0.0
    %401 = vmatmul.mubr.f32.gmra.mxu0 %v190
    %v402 = vpop.f32.mrf.mxu0
    %v403 = vadd.f32 %v169, %v402
    %v404 = vpop.f32.mrf.mxu0
    %405 = vmatprep.mubr.f32.mxu0 0.0
    %406 = vmatmul.mubr.f32.gmra.mxu0 %v193
    %v407 = vpop.f32.mrf.mxu0
    %v408 = vadd.f32 %v169, %v407
    %v409 = vpop.f32.mrf.mxu0
    %410 = vmatprep.mubr.f32.mxu0 0.0
    %411 = vmatmul.mubr.f32.gmra.mxu0 %v196
    %v412 = vpop.f32.mrf.mxu0
    %v413 = vadd.f32 %v169, %v412
    %v414 = vpop.f32.mrf.mxu0
    %415 = vdwg.mxu0
    %416 = vst [vmem:[#allocation3] sm:$0xff] %v265
    %417 = vst [vmem:[#allocation3 + $0x8] sm:$0xff] %v267
    %418 = vst [vmem:[#allocation3 + $0x10] sm:$0xff] %v378
    %419 = vst [vmem:[#allocation3 + $0x18] sm:$0xff] %v271
    %420 = vst [vmem:[#allocation3 + $0x20] sm:$0xff] %v273
    %421 = vst [vmem:[#allocation3 + $0x28] sm:$0xff] %v383
    %422 = vst [vmem:[#allocation3 + $0x30] sm:$0xff] %v277
    %423 = vst [vmem:[#allocation3 + $0x38] sm:$0xff] %v279
    %424 = vst [vmem:[#allocation3 + $0x40] sm:$0xff] %v388
    %425 = vst [vmem:[#allocation3 + $0x48] sm:$0xff] %v283
    %426 = vst [vmem:[#allocation3 + $0x50] sm:$0xff] %v285
    %427 = vst [vmem:[#allocation3 + $0x58] sm:$0xff] %v393
    %428 = vst [vmem:[#allocation3 + $0x60] sm:$0xff] %v289
    %429 = vst [vmem:[#allocation3 + $0x68] sm:$0xff] %v291
    %430 = vst [vmem:[#allocation3 + $0x70] sm:$0xff] %v398
    %431 = vst [vmem:[#allocation3 + $0x78] sm:$0xff] %v295
    %432 = vst [vmem:[#allocation3 + $0x80] sm:$0xff] %v297
    %433 = vst [vmem:[#allocation3 + $0x88] sm:$0xff] %v403
    %434 = vst [vmem:[#allocation3 + $0x90] sm:$0xff] %v301
    %435 = vst [vmem:[#allocation3 + $0x98] sm:$0xff] %v303
    %436 = vst [vmem:[#allocation3 + $0xa0] sm:$0xff] %v408
    %437 = vst [vmem:[#allocation3 + $0xa8] sm:$0xff] %v307
    %438 = vst [vmem:[#allocation3 + $0xb0] sm:$0xff] %v309
    %439 = vst [vmem:[#allocation3 + $0xb8] sm:$0xff] %v413
    %s440 = smul.u32 0, 3
    %s441 = smul.addr %s440, 8
    %s442 = scalar_lea.vmem [#allocation3], %s441
    %v443 = vld [vmem:[%s442] sm:$0xff]
    %v444 = vld [vmem:[%s442 + $0x8] sm:$0xff]
    %v445 = vld [vmem:[%s442 + $0x10] sm:$0xff]
    %v478 = vunpack.c.l.b16 %v110
    %v479 = vunpack.c.h.b16 %v110
    %v480 = vunpack.c.l.b16 %v111
    %v481 = vunpack.c.l.b16 %v112
    %v482 = vunpack.c.h.b16 %v112
    %v483 = vunpack.c.l.b16 %v113
    %v484 = vunpack.c.l.b16 %v114
    %v485 = vunpack.c.h.b16 %v114
    %v486 = vunpack.c.l.b16 %v115
    %v487 = vunpack.c.l.b16 %v116
    %v488 = vunpack.c.h.b16 %v116
    %v489 = vunpack.c.l.b16 %v117
    %v490 = vunpack.c.l.b16 %v118
    %v491 = vunpack.c.h.b16 %v118
    %v492 = vunpack.c.l.b16 %v119
    %v493 = vunpack.c.l.b16 %v120
    %v494 = vunpack.c.h.b16 %v120
    %v495 = vunpack.c.l.b16 %v121
    %v496 = vunpack.c.l.b16 %v122
    %v497 = vunpack.c.h.b16 %v122
    %v498 = vunpack.c.l.b16 %v123
    %v499 = vunpack.c.l.b16 %v124
    %v500 = vunpack.c.h.b16 %v124
    %v501 = vunpack.c.l.b16 %v125
    %v502 = vunpack.c.l.b16 %v126
    %v503 = vunpack.c.h.b16 %v126
    %v504 = vunpack.c.l.b16 %v127
    %v505 = vunpack.c.l.b16 %v128
    %v506 = vunpack.c.h.b16 %v128
    %v507 = vunpack.c.l.b16 %v129
    %v508 = vunpack.c.l.b16 %v130
    %v509 = vunpack.c.h.b16 %v130
    %v510 = vunpack.c.l.b16 %v131
    %v511 = vunpack.c.l.b16 %v132
    %v512 = vunpack.c.h.b16 %v132
    %v513 = vunpack.c.l.b16 %v133
    %v514 = vunpack.c.l.b16 %v134
    %v515 = vunpack.c.h.b16 %v134
    %v516 = vunpack.c.l.b16 %v135
    %v517 = vunpack.c.l.b16 %v136
    %v518 = vunpack.c.h.b16 %v136
    %v519 = vunpack.c.l.b16 %v137
    %v520 = vunpack.c.l.b16 %v138
    %v521 = vunpack.c.h.b16 %v138
    %v522 = vunpack.c.l.b16 %v139
    %v523 = vunpack.c.l.b16 %v140
    %v524 = vunpack.c.h.b16 %v140
    %v525 = vunpack.c.l.b16 %v141
    %v526 = vpack.c.b16 %v481, %v478
    %v527 = vpack.c.b16 %v482, %v479
    %v528 = vpack.c.b16 %v483, %v480
    %v529 = vpack.c.b16 %v487, %v484
    %v530 = vpack.c.b16 %v488, %v485
    %v531 = vpack.c.b16 %v489, %v486
    %v532 = vpack.c.b16 %v493, %v490
    %v533 = vpack.c.b16 %v494, %v491
    %v534 = vpack.c.b16 %v495, %v492
    %v535 = vpack.c.b16 %v499, %v496
    %v536 = vpack.c.b16 %v500, %v497
    %v537 = vpack.c.b16 %v501, %v498
    %v538 = vpack.c.b16 %v505, %v502
    %v539 = vpack.c.b16 %v506, %v503
    %v540 = vpack.c.b16 %v507, %v504
    %v541 = vpack.c.b16 %v511, %v508
    %v542 = vpack.c.b16 %v512, %v509
    %v543 = vpack.c.b16 %v513, %v510
    %v544 = vpack.c.b16 %v517, %v514
    %v545 = vpack.c.b16 %v518, %v515
    %v546 = vpack.c.b16 %v519, %v516
    %v547 = vpack.c.b16 %v523, %v520
    %v548 = vpack.c.b16 %v524, %v521
    %v549 = vpack.c.b16 %v525, %v522
    %574 = vmatprep.subr.bf16.mxu0 %v548
    %575 = vmatpush1.bf16.msra.mxu0 %v547
    %576 = vmatprep.subr.bf16.mxu0 %v545
    %577 = vmatpush1.bf16.msra.mxu0 %v544
    %578 = vmatprep.subr.bf16.mxu0 %v542
    %579 = vmatpush1.bf16.msra.mxu0 %v541
    %580 = vmatprep.subr.bf16.mxu0 %v539
    %581 = vmatpush1.bf16.msra.mxu0 %v538
    %582 = vmatprep.subr.bf16.mxu0 %v536
    %583 = vmatpush1.bf16.msra.mxu0 %v535
    %584 = vmatprep.subr.bf16.mxu0 %v533
    %585 = vmatpush1.bf16.msra.mxu0 %v532
    %586 = vmatprep.subr.bf16.mxu0 %v530
    %587 = vmatpush1.bf16.msra.mxu0 %v529
    %588 = vmatprep.subr.bf16.mxu0 %v527
    %589 = vmatpush1.bf16.msra.mxu0 %v526
    %590 = vmatprep.subr.bf16.mxu0 0
    %591 = vmatpush2.bf16.msra.mxu0 0
    %592 = vmatprep.subr.bf16.mxu0 0
    %593 = vmatpush2.bf16.msra.mxu0 0
    %594 = vmatprep.subr.bf16.mxu0 0
    %595 = vmatpush2.bf16.msra.mxu0 0
    %596 = vmatprep.subr.bf16.mxu0 0
    %597 = vmatpush2.bf16.msra.mxu0 0
    %598 = vmatprep.subr.bf16.mxu0 0
    %599 = vmatpush2.bf16.msra.mxu0 0
    %600 = vmatprep.subr.bf16.mxu0 0
    %601 = vmatpush2.bf16.msra.mxu0 0
    %602 = vmatprep.subr.bf16.mxu0 0
    %603 = vmatpush2.bf16.msra.mxu0 0
    %604 = vmatprep.subr.bf16.mxu0 0
    %605 = vmatpush2.bf16.msra.mxu0 0
    %606 = vmatprep.mubr.bf16.mxu0 0
    %607 = vmatmul.mubr.bf16.gmra.mxu0 0
    %v608 = vpop.f32.mrf.mxu0
    %v609 = vadd.f32 0.0, %v608
    %v610 = vpop.f32.mrf.mxu0
    %v611 = vadd.f32 0.0, %v610
    %v612 = vpop.f32.mrf.mxu0
    %v613 = vpop.f32.mrf.mxu0
    %614 = vdwg.mxu0
    %615 = vmatprep.subr.bf16.mxu0 0
    %616 = vmatpush1.bf16.msra.mxu0 %v549
    %617 = vmatprep.subr.bf16.mxu0 0
    %618 = vmatpush1.bf16.msra.mxu0 %v546
    %619 = vmatprep.subr.bf16.mxu0 0
    %620 = vmatpush1.bf16.msra.mxu0 %v543
    %621 = vmatprep.subr.bf16.mxu0 0
    %622 = vmatpush1.bf16.msra.mxu0 %v540
    %623 = vmatprep.subr.bf16.mxu0 0
    %624 = vmatpush1.bf16.msra.mxu0 %v537
    %625 = vmatprep.subr.bf16.mxu0 0
    %626 = vmatpush1.bf16.msra.mxu0 %v534
    %627 = vmatprep.subr.bf16.mxu0 0
    %628 = vmatpush1.bf16.msra.mxu0 %v531
    %629 = vmatprep.subr.bf16.mxu0 0
    %630 = vmatpush1.bf16.msra.mxu0 %v528
    %631 = vmatprep.subr.bf16.mxu0 0
    %632 = vmatpush2.bf16.msra.mxu0 0
    %633 = vmatprep.subr.bf16.mxu0 0
    %634 = vmatpush2.bf16.msra.mxu0 0
    %635 = vmatprep.subr.bf16.mxu0 0
    %636 = vmatpush2.bf16.msra.mxu0 0
    %637 = vmatprep.subr.bf16.mxu0 0
    %638 = vmatpush2.bf16.msra.mxu0 0
    %639 = vmatprep.subr.bf16.mxu0 0
    %640 = vmatpush2.bf16.msra.mxu0 0
    %641 = vmatprep.subr.bf16.mxu0 0
    %642 = vmatpush2.bf16.msra.mxu0 0
    %643 = vmatprep.subr.bf16.mxu0 0
    %644 = vmatpush2.bf16.msra.mxu0 0
    %645 = vmatprep.subr.bf16.mxu0 0
    %646 = vmatpush2.bf16.msra.mxu0 0
    %647 = vmatprep.mubr.bf16.mxu0 0
    %648 = vmatmul.mubr.bf16.gmra.mxu0 0
    %v649 = vpop.f32.mrf.mxu0
    %v650 = vadd.f32 0.0, %v649
    %v651 = vpop.f32.mrf.mxu0
    %v652 = vpop.f32.mrf.mxu0
    %v653 = vpop.f32.mrf.mxu0
    %654 = vdwg.mxu0
    %v655 = vadd.f32 %v443, %v609
    %v656 = vxor.u32 %v655, 2147483648
    %v657 = vmul.f32 %v656, 1.442695
    %v658 = vpow.pop %v657
    %v659 = vadd.f32 %v658, 1.0
    %v660 = vrcp.pop %v659
    %v661 = vmul.f32 1.0, %v660
    %v662 = vadd.f32 %v444, %v611
    %v663 = vxor.u32 %v662, 2147483648
    %v664 = vmul.f32 %v663, 1.442695
    %v665 = vpow.pop %v664
    %v666 = vadd.f32 %v665, 1.0
    %v667 = vrcp.pop %v666
    %v668 = vmul.f32 1.0, %v667
    %v669 = vadd.f32 %v650, %v147
    %v670 = vmul.f32 %v661, %v669
    %v671 = vadd.f32 %v445, %v670
    %v672 = vtanh.pop %v671
    %v673 = vsub.f32 1.0, %v668
    %v674 = vmul.f32 %v673, %v672
    %v675 = vmul.f32 %v668, 0.0
    %v676 = vadd.f32 %v674, %v675
    %v677 = vpack.c.bf16 %v676, %v676
    %s678 = sadd.s32 0, 0
    %s679 = sshra.s32 %s678, 3
    %s680 = sand.u32 %s678, 7
    %s681 = smul.addr %s679, 4
    %s682 = scalar_lea.vmem [#allocation2], %s681
    %683 = vst [vmem:[%s682] sm:$0xf] %v677
    %s684 = smul.u32 1, 3
    %s685 = smul.addr %s684, 8
    %s686 = scalar_lea.vmem [#allocation3], %s685
    %v687 = vld [vmem:[%s686] sm:$0xff]
    %v688 = vld [vmem:[%s686 + $0x8] sm:$0xff]
    %v689 = vld [vmem:[%s686 + $0x10] sm:$0xff]
    %690 = vmatprep.subr.bf16.mxu0 %v548
    %691 = vmatpush1.bf16.msra.mxu0 %v547
    %692 = vmatprep.subr.bf16.mxu0 %v545
    %693 = vmatpush1.bf16.msra.mxu0 %v544
    %694 = vmatprep.subr.bf16.mxu0 %v542
    %695 = vmatpush1.bf16.msra.mxu0 %v541
    %696 = vmatprep.subr.bf16.mxu0 %v539
    %697 = vmatpush1.bf16.msra.mxu0 %v538
    %698 = vmatprep.subr.bf16.mxu0 %v536
    %699 = vmatpush1.bf16.msra.mxu0 %v535
    %700 = vmatprep.subr.bf16.mxu0 %v533
    %701 = vmatpush1.bf16.msra.mxu0 %v532
    %702 = vmatprep.subr.bf16.mxu0 %v530
    %703 = vmatpush1.bf16.msra.mxu0 %v529
    %704 = vmatprep.subr.bf16.mxu0 %v527
    %705 = vmatpush1.bf16.msra.mxu0 %v526
    %706 = vmatprep.subr.bf16.mxu0 0
    %707 = vmatpush2.bf16.msra.mxu0 0
    %708 = vmatprep.subr.bf16.mxu0 0
    %709 = vmatpush2.bf16.msra.mxu0 0
    %710 = vmatprep.subr.bf16.mxu0 0
    %711 = vmatpush2.bf16.msra.mxu0 0
    %712 = vmatprep.subr.bf16.mxu0 0
    %713 = vmatpush2.bf16.msra.mxu0 0
    %714 = vmatprep.subr.bf16.mxu0 0
    %715 = vmatpush2.bf16.msra.mxu0 0
    %716 = vmatprep.subr.bf16.mxu0 0
    %717 = vmatpush2.bf16.msra.mxu0 0
    %718 = vmatprep.subr.bf16.mxu0 0
    %719 = vmatpush2.bf16.msra.mxu0 0
    %720 = vmatprep.subr.bf16.mxu0 0
    %721 = vmatpush2.bf16.msra.mxu0 0
    %722 = vmatprep.mubr.bf16.mxu0 0
    %723 = vmatmul.mubr.bf16.gmra.mxu0 %v677
    %v724 = vpop.f32.mrf.mxu0
    %v725 = vadd.f32 0.0, %v724
    %v726 = vpop.f32.mrf.mxu0
    %v727 = vadd.f32 0.0, %v726
    %v728 = vpop.f32.mrf.mxu0
    %v729 = vpop.f32.mrf.mxu0
    %730 = vdwg.mxu0
    %731 = vmatprep.subr.bf16.mxu0 0
    %732 = vmatpush1.bf16.msra.mxu0 %v549
    %733 = vmatprep.subr.bf16.mxu0 0
    %734 = vmatpush1.bf16.msra.mxu0 %v546
    %735 = vmatprep.subr.bf16.mxu0 0
    %736 = vmatpush1.bf16.msra.mxu0 %v543
    %737 = vmatprep.subr.bf16.mxu0 0
    %738 = vmatpush1.bf16.msra.mxu0 %v540
    %739 = vmatprep.subr.bf16.mxu0 0
    %740 = vmatpush1.bf16.msra.mxu0 %v537
    %741 = vmatprep.subr.bf16.mxu0 0
    %742 = vmatpush1.bf16.msra.mxu0 %v534
    %743 = vmatprep.subr.bf16.mxu0 0
    %744 = vmatpush1.bf16.msra.mxu0 %v531
    %745 = vmatprep.subr.bf16.mxu0 0
    %746 = vmatpush1.bf16.msra.mxu0 %v528
    %747 = vmatprep.subr.bf16.mxu0 0
    %748 = vmatpush2.bf16.msra.mxu0 0
    %749 = vmatprep.subr.bf16.mxu0 0
    %750 = vmatpush2.bf16.msra.mxu0 0
    %751 = vmatprep.subr.bf16.mxu0 0
    %752 = vmatpush2.bf16.msra.mxu0 0
    %753 = vmatprep.subr.bf16.mxu0 0
    %754 = vmatpush2.bf16.msra.mxu0 0
    %755 = vmatprep.subr.bf16.mxu0 0
    %756 = vmatpush2.bf16.msra.mxu0 0
    %757 = vmatprep.subr.bf16.mxu0 0
    %758 = vmatpush2.bf16.msra.mxu0 0
    %759 = vmatprep.subr.bf16.mxu0 0
    %760 = vmatpush2.bf16.msra.mxu0 0
    %761 = vmatprep.subr.bf16.mxu0 0
    %762 = vmatpush2.bf16.msra.mxu0 0
    %763 = vmatprep.mubr.bf16.mxu0 0
    %764 = vmatmul.mubr.bf16.gmra.mxu0 %v677
    %v765 = vpop.f32.mrf.mxu0
    %v766 = vadd.f32 0.0, %v765
    %v767 = vpop.f32.mrf.mxu0
    %v768 = vpop.f32.mrf.mxu0
    %v769 = vpop.f32.mrf.mxu0
    %770 = vdwg.mxu0
    %v771 = vadd.f32 %v687, %v725
    %v772 = vxor.u32 %v771, 2147483648
    %v773 = vmul.f32 %v772, 1.442695
    %v774 = vpow.pop %v773
    %v775 = vadd.f32 %v774, 1.0
    %v776 = vrcp.pop %v775
    %v777 = vmul.f32 1.0, %v776
    %v778 = vadd.f32 %v688, %v727
    %v779 = vxor.u32 %v778, 2147483648
    %v780 = vmul.f32 %v779, 1.442695
    %v781 = vpow.pop %v780
    %v782 = vadd.f32 %v781, 1.0
    %v783 = vrcp.pop %v782
    %v784 = vmul.f32 1.0, %v783
    %v785 = vadd.f32 %v766, %v147
    %v786 = vmul.f32 %v777, %v785
    %v787 = vadd.f32 %v689, %v786
    %v788 = vtanh.pop %v787
    %v789 = vsub.f32 1.0, %v784
    %v790 = vmul.f32 %v789, %v788
    %v791 = vmul.f32 %v784, %v676
    %v792 = vadd.f32 %v790, %v791
    %v793 = vpack.c.bf16 %v792, %v792
    %s794 = sadd.s32 0, 8
    %s795 = sshra.s32 %s794, 3
    %s796 = sand.u32 %s794, 7
    %s797 = smul.addr %s795, 4
    %s798 = scalar_lea.vmem [#allocation2], %s797
    %799 = vst [vmem:[%s798] sm:$0xf] %v793
    %s800 = smul.u32 2, 3
    %s801 = smul.addr %s800, 8
    %s802 = scalar_lea.vmem [#allocation3], %s801
    %v803 = vld [vmem:[%s802] sm:$0xff]
    %v804 = vld [vmem:[%s802 + $0x8] sm:$0xff]
    %v805 = vld [vmem:[%s802 + $0x10] sm:$0xff]
    %806 = vmatprep.subr.bf16.mxu0 %v548
    %807 = vmatpush1.bf16.msra.mxu0 %v547
    %808 = vmatprep.subr.bf16.mxu0 %v545
    %809 = vmatpush1.bf16.msra.mxu0 %v544
    %810 = vmatprep.subr.bf16.mxu0 %v542
    %811 = vmatpush1.bf16.msra.mxu0 %v541
    %812 = vmatprep.subr.bf16.mxu0 %v539
    %813 = vmatpush1.bf16.msra.mxu0 %v538
    %814 = vmatprep.subr.bf16.mxu0 %v536
    %815 = vmatpush1.bf16.msra.mxu0 %v535
    %816 = vmatprep.subr.bf16.mxu0 %v533
    %817 = vmatpush1.bf16.msra.mxu0 %v532
    %818 = vmatprep.subr.bf16.mxu0 %v530
    %819 = vmatpush1.bf16.msra.mxu0 %v529
    %820 = vmatprep.subr.bf16.mxu0 %v527
    %821 = vmatpush1.bf16.msra.mxu0 %v526
    %822 = vmatprep.subr.bf16.mxu0 0
    %823 = vmatpush2.bf16.msra.mxu0 0
    %824 = vmatprep.subr.bf16.mxu0 0
    %825 = vmatpush2.bf16.msra.mxu0 0
    %826 = vmatprep.subr.bf16.mxu0 0
    %827 = vmatpush2.bf16.msra.mxu0 0
    %828 = vmatprep.subr.bf16.mxu0 0
    %829 = vmatpush2.bf16.msra.mxu0 0
    %830 = vmatprep.subr.bf16.mxu0 0
    %831 = vmatpush2.bf16.msra.mxu0 0
    %832 = vmatprep.subr.bf16.mxu0 0
    %833 = vmatpush2.bf16.msra.mxu0 0
    %834 = vmatprep.subr.bf16.mxu0 0
    %835 = vmatpush2.bf16.msra.mxu0 0
    %836 = vmatprep.subr.bf16.mxu0 0
    %837 = vmatpush2.bf16.msra.mxu0 0
    %838 = vmatprep.mubr.bf16.mxu0 0
    %839 = vmatmul.mubr.bf16.gmra.mxu0 %v793
    %v840 = vpop.f32.mrf.mxu0
    %v841 = vadd.f32 0.0, %v840
    %v842 = vpop.f32.mrf.mxu0
    %v843 = vadd.f32 0.0, %v842
    %v844 = vpop.f32.mrf.mxu0
    %v845 = vpop.f32.mrf.mxu0
    %846 = vdwg.mxu0
    %847 = vmatprep.subr.bf16.mxu0 0
    %848 = vmatpush1.bf16.msra.mxu0 %v549
    %849 = vmatprep.subr.bf16.mxu0 0
    %850 = vmatpush1.bf16.msra.mxu0 %v546
    %851 = vmatprep.subr.bf16.mxu0 0
    %852 = vmatpush1.bf16.msra.mxu0 %v543
    %853 = vmatprep.subr.bf16.mxu0 0
    %854 = vmatpush1.bf16.msra.mxu0 %v540
    %855 = vmatprep.subr.bf16.mxu0 0
    %856 = vmatpush1.bf16.msra.mxu0 %v537
    %857 = vmatprep.subr.bf16.mxu0 0
    %858 = vmatpush1.bf16.msra.mxu0 %v534
    %859 = vmatprep.subr.bf16.mxu0 0
    %860 = vmatpush1.bf16.msra.mxu0 %v531
    %861 = vmatprep.subr.bf16.mxu0 0
    %862 = vmatpush1.bf16.msra.mxu0 %v528
    %863 = vmatprep.subr.bf16.mxu0 0
    %864 = vmatpush2.bf16.msra.mxu0 0
    %865 = vmatprep.subr.bf16.mxu0 0
    %866 = vmatpush2.bf16.msra.mxu0 0
    %867 = vmatprep.subr.bf16.mxu0 0
    %868 = vmatpush2.bf16.msra.mxu0 0
    %869 = vmatprep.subr.bf16.mxu0 0
    %870 = vmatpush2.bf16.msra.mxu0 0
    %871 = vmatprep.subr.bf16.mxu0 0
    %872 = vmatpush2.bf16.msra.mxu0 0
    %873 = vmatprep.subr.bf16.mxu0 0
    %874 = vmatpush2.bf16.msra.mxu0 0
    %875 = vmatprep.subr.bf16.mxu0 0
    %876 = vmatpush2.bf16.msra.mxu0 0
    %877 = vmatprep.subr.bf16.mxu0 0
    %878 = vmatpush2.bf16.msra.mxu0 0
    %879 = vmatprep.mubr.bf16.mxu0 0
    %880 = vmatmul.mubr.bf16.gmra.mxu0 %v793
    %v881 = vpop.f32.mrf.mxu0
    %v882 = vadd.f32 0.0, %v881
    %v883 = vpop.f32.mrf.mxu0
    %v884 = vpop.f32.mrf.mxu0
    %v885 = vpop.f32.mrf.mxu0
    %886 = vdwg.mxu0
    %v887 = vadd.f32 %v803, %v841
    %v888 = vxor.u32 %v887, 2147483648
    %v889 = vmul.f32 %v888, 1.442695
    %v890 = vpow.pop %v889
    %v891 = vadd.f32 %v890, 1.0
    %v892 = vrcp.pop %v891
    %v893 = vmul.f32 1.0, %v892
    %v894 = vadd.f32 %v804, %v843
    %v895 = vxor.u32 %v894, 2147483648
    %v896 = vmul.f32 %v895, 1.442695
    %v897 = vpow.pop %v896
    %v898 = vadd.f32 %v897, 1.0
    %v899 = vrcp.pop %v898
    %v900 = vmul.f32 1.0, %v899
    %v901 = vadd.f32 %v882, %v147
    %v902 = vmul.f32 %v893, %v901
    %v903 = vadd.f32 %v805, %v902
    %v904 = vtanh.pop %v903
    %v905 = vsub.f32 1.0, %v900
    %v906 = vmul.f32 %v905, %v904
    %v907 = vmul.f32 %v900, %v792
    %v908 = vadd.f32 %v906, %v907
    %v909 = vpack.c.bf16 %v908, %v908
    %s910 = sadd.s32 0, 16
    %s911 = sshra.s32 %s910, 3
    %s912 = sand.u32 %s910, 7
    %s913 = smul.addr %s911, 4
    %s914 = scalar_lea.vmem [#allocation2], %s913
    %915 = vst [vmem:[%s914] sm:$0xf] %v909
    %s916 = smul.u32 3, 3
    %s917 = smul.addr %s916, 8
    %s918 = scalar_lea.vmem [#allocation3], %s917
    %v919 = vld [vmem:[%s918] sm:$0xff]
    %v920 = vld [vmem:[%s918 + $0x8] sm:$0xff]
    %v921 = vld [vmem:[%s918 + $0x10] sm:$0xff]
    %922 = vmatprep.subr.bf16.mxu0 %v548
    %923 = vmatpush1.bf16.msra.mxu0 %v547
    %924 = vmatprep.subr.bf16.mxu0 %v545
    %925 = vmatpush1.bf16.msra.mxu0 %v544
    %926 = vmatprep.subr.bf16.mxu0 %v542
    %927 = vmatpush1.bf16.msra.mxu0 %v541
    %928 = vmatprep.subr.bf16.mxu0 %v539
    %929 = vmatpush1.bf16.msra.mxu0 %v538
    %930 = vmatprep.subr.bf16.mxu0 %v536
    %931 = vmatpush1.bf16.msra.mxu0 %v535
    %932 = vmatprep.subr.bf16.mxu0 %v533
    %933 = vmatpush1.bf16.msra.mxu0 %v532
    %934 = vmatprep.subr.bf16.mxu0 %v530
    %935 = vmatpush1.bf16.msra.mxu0 %v529
    %936 = vmatprep.subr.bf16.mxu0 %v527
    %937 = vmatpush1.bf16.msra.mxu0 %v526
    %938 = vmatprep.subr.bf16.mxu0 0
    %939 = vmatpush2.bf16.msra.mxu0 0
    %940 = vmatprep.subr.bf16.mxu0 0
    %941 = vmatpush2.bf16.msra.mxu0 0
    %942 = vmatprep.subr.bf16.mxu0 0
    %943 = vmatpush2.bf16.msra.mxu0 0
    %944 = vmatprep.subr.bf16.mxu0 0
    %945 = vmatpush2.bf16.msra.mxu0 0
    %946 = vmatprep.subr.bf16.mxu0 0
    %947 = vmatpush2.bf16.msra.mxu0 0
    %948 = vmatprep.subr.bf16.mxu0 0
    %949 = vmatpush2.bf16.msra.mxu0 0
    %950 = vmatprep.subr.bf16.mxu0 0
    %951 = vmatpush2.bf16.msra.mxu0 0
    %952 = vmatprep.subr.bf16.mxu0 0
    %953 = vmatpush2.bf16.msra.mxu0 0
    %954 = vmatprep.mubr.bf16.mxu0 0
    %955 = vmatmul.mubr.bf16.gmra.mxu0 %v909
    %v956 = vpop.f32.mrf.mxu0
    %v957 = vadd.f32 0.0, %v956
    %v958 = vpop.f32.mrf.mxu0
    %v959 = vadd.f32 0.0, %v958
    %v960 = vpop.f32.mrf.mxu0
    %v961 = vpop.f32.mrf.mxu0
    %962 = vdwg.mxu0
    %963 = vmatprep.subr.bf16.mxu0 0
    %964 = vmatpush1.bf16.msra.mxu0 %v549
    %965 = vmatprep.subr.bf16.mxu0 0
    %966 = vmatpush1.bf16.msra.mxu0 %v546
    %967 = vmatprep.subr.bf16.mxu0 0
    %968 = vmatpush1.bf16.msra.mxu0 %v543
    %969 = vmatprep.subr.bf16.mxu0 0
    %970 = vmatpush1.bf16.msra.mxu0 %v540
    %971 = vmatprep.subr.bf16.mxu0 0
    %972 = vmatpush1.bf16.msra.mxu0 %v537
    %973 = vmatprep.subr.bf16.mxu0 0
    %974 = vmatpush1.bf16.msra.mxu0 %v534
    %975 = vmatprep.subr.bf16.mxu0 0
    %976 = vmatpush1.bf16.msra.mxu0 %v531
    %977 = vmatprep.subr.bf16.mxu0 0
    %978 = vmatpush1.bf16.msra.mxu0 %v528
    %979 = vmatprep.subr.bf16.mxu0 0
    %980 = vmatpush2.bf16.msra.mxu0 0
    %981 = vmatprep.subr.bf16.mxu0 0
    %982 = vmatpush2.bf16.msra.mxu0 0
    %983 = vmatprep.subr.bf16.mxu0 0
    %984 = vmatpush2.bf16.msra.mxu0 0
    %985 = vmatprep.subr.bf16.mxu0 0
    %986 = vmatpush2.bf16.msra.mxu0 0
    %987 = vmatprep.subr.bf16.mxu0 0
    %988 = vmatpush2.bf16.msra.mxu0 0
    %989 = vmatprep.subr.bf16.mxu0 0
    %990 = vmatpush2.bf16.msra.mxu0 0
    %991 = vmatprep.subr.bf16.mxu0 0
    %992 = vmatpush2.bf16.msra.mxu0 0
    %993 = vmatprep.subr.bf16.mxu0 0
    %994 = vmatpush2.bf16.msra.mxu0 0
    %995 = vmatprep.mubr.bf16.mxu0 0
    %996 = vmatmul.mubr.bf16.gmra.mxu0 %v909
    %v997 = vpop.f32.mrf.mxu0
    %v998 = vadd.f32 0.0, %v997
    %v999 = vpop.f32.mrf.mxu0
    %v1000 = vpop.f32.mrf.mxu0
    %v1001 = vpop.f32.mrf.mxu0
    %1002 = vdwg.mxu0
    %v1003 = vadd.f32 %v919, %v957
    %v1004 = vxor.u32 %v1003, 2147483648
    %v1005 = vmul.f32 %v1004, 1.442695
    %v1006 = vpow.pop %v1005
    %v1007 = vadd.f32 %v1006, 1.0
    %v1008 = vrcp.pop %v1007
    %v1009 = vmul.f32 1.0, %v1008
    %v1010 = vadd.f32 %v920, %v959
    %v1011 = vxor.u32 %v1010, 2147483648
    %v1012 = vmul.f32 %v1011, 1.442695
    %v1013 = vpow.pop %v1012
    %v1014 = vadd.f32 %v1013, 1.0
    %v1015 = vrcp.pop %v1014
    %v1016 = vmul.f32 1.0, %v1015
    %v1017 = vadd.f32 %v998, %v147
    %v1018 = vmul.f32 %v1009, %v1017
    %v1019 = vadd.f32 %v921, %v1018
    %v1020 = vtanh.pop %v1019
    %v1021 = vsub.f32 1.0, %v1016
    %v1022 = vmul.f32 %v1021, %v1020
    %v1023 = vmul.f32 %v1016, %v908
    %v1024 = vadd.f32 %v1022, %v1023
    %v1025 = vpack.c.bf16 %v1024, %v1024
    %s1026 = sadd.s32 0, 24
    %s1027 = sshra.s32 %s1026, 3
    %s1028 = sand.u32 %s1026, 7
    %s1029 = smul.addr %s1027, 4
    %s1030 = scalar_lea.vmem [#allocation2], %s1029
    %1031 = vst [vmem:[%s1030] sm:$0xf] %v1025
    %s1032 = smul.u32 4, 3
    %s1033 = smul.addr %s1032, 8
    %s1034 = scalar_lea.vmem [#allocation3], %s1033
    %v1035 = vld [vmem:[%s1034] sm:$0xff]
    %v1036 = vld [vmem:[%s1034 + $0x8] sm:$0xff]
    %v1037 = vld [vmem:[%s1034 + $0x10] sm:$0xff]
    %1038 = vmatprep.subr.bf16.mxu0 %v548
    %1039 = vmatpush1.bf16.msra.mxu0 %v547
    %1040 = vmatprep.subr.bf16.mxu0 %v545
    %1041 = vmatpush1.bf16.msra.mxu0 %v544
    %1042 = vmatprep.subr.bf16.mxu0 %v542
    %1043 = vmatpush1.bf16.msra.mxu0 %v541
    %1044 = vmatprep.subr.bf16.mxu0 %v539
    %1045 = vmatpush1.bf16.msra.mxu0 %v538
    %1046 = vmatprep.subr.bf16.mxu0 %v536
    %1047 = vmatpush1.bf16.msra.mxu0 %v535
    %1048 = vmatprep.subr.bf16.mxu0 %v533
    %1049 = vmatpush1.bf16.msra.mxu0 %v532
    %1050 = vmatprep.subr.bf16.mxu0 %v530
    %1051 = vmatpush1.bf16.msra.mxu0 %v529
    %1052 = vmatprep.subr.bf16.mxu0 %v527
    %1053 = vmatpush1.bf16.msra.mxu0 %v526
    %1054 = vmatprep.subr.bf16.mxu0 0
    %1055 = vmatpush2.bf16.msra.mxu0 0
    %1056 = vmatprep.subr.bf16.mxu0 0
    %1057 = vmatpush2.bf16.msra.mxu0 0
    %1058 = vmatprep.subr.bf16.mxu0 0
    %1059 = vmatpush2.bf16.msra.mxu0 0
    %1060 = vmatprep.subr.bf16.mxu0 0
    %1061 = vmatpush2.bf16.msra.mxu0 0
    %1062 = vmatprep.subr.bf16.mxu0 0
    %1063 = vmatpush2.bf16.msra.mxu0 0
    %1064 = vmatprep.subr.bf16.mxu0 0
    %1065 = vmatpush2.bf16.msra.mxu0 0
    %1066 = vmatprep.subr.bf16.mxu0 0
    %1067 = vmatpush2.bf16.msra.mxu0 0
    %1068 = vmatprep.subr.bf16.mxu0 0
    %1069 = vmatpush2.bf16.msra.mxu0 0
    %1070 = vmatprep.mubr.bf16.mxu0 0
    %1071 = vmatmul.mubr.bf16.gmra.mxu0 %v1025
    %v1072 = vpop.f32.mrf.mxu0
    %v1073 = vadd.f32 0.0, %v1072
    %v1074 = vpop.f32.mrf.mxu0
    %v1075 = vadd.f32 0.0, %v1074
    %v1076 = vpop.f32.mrf.mxu0
    %v1077 = vpop.f32.mrf.mxu0
    %1078 = vdwg.mxu0
    %1079 = vmatprep.subr.bf16.mxu0 0
    %1080 = vmatpush1.bf16.msra.mxu0 %v549
    %1081 = vmatprep.subr.bf16.mxu0 0
    %1082 = vmatpush1.bf16.msra.mxu0 %v546
    %1083 = vmatprep.subr.bf16.mxu0 0
    %1084 = vmatpush1.bf16.msra.mxu0 %v543
    %1085 = vmatprep.subr.bf16.mxu0 0
    %1086 = vmatpush1.bf16.msra.mxu0 %v540
    %1087 = vmatprep.subr.bf16.mxu0 0
    %1088 = vmatpush1.bf16.msra.mxu0 %v537
    %1089 = vmatprep.subr.bf16.mxu0 0
    %1090 = vmatpush1.bf16.msra.mxu0 %v534
    %1091 = vmatprep.subr.bf16.mxu0 0
    %1092 = vmatpush1.bf16.msra.mxu0 %v531
    %1093 = vmatprep.subr.bf16.mxu0 0
    %1094 = vmatpush1.bf16.msra.mxu0 %v528
    %1095 = vmatprep.subr.bf16.mxu0 0
    %1096 = vmatpush2.bf16.msra.mxu0 0
    %1097 = vmatprep.subr.bf16.mxu0 0
    %1098 = vmatpush2.bf16.msra.mxu0 0
    %1099 = vmatprep.subr.bf16.mxu0 0
    %1100 = vmatpush2.bf16.msra.mxu0 0
    %1101 = vmatprep.subr.bf16.mxu0 0
    %1102 = vmatpush2.bf16.msra.mxu0 0
    %1103 = vmatprep.subr.bf16.mxu0 0
    %1104 = vmatpush2.bf16.msra.mxu0 0
    %1105 = vmatprep.subr.bf16.mxu0 0
    %1106 = vmatpush2.bf16.msra.mxu0 0
    %1107 = vmatprep.subr.bf16.mxu0 0
    %1108 = vmatpush2.bf16.msra.mxu0 0
    %1109 = vmatprep.subr.bf16.mxu0 0
    %1110 = vmatpush2.bf16.msra.mxu0 0
    %1111 = vmatprep.mubr.bf16.mxu0 0
    %1112 = vmatmul.mubr.bf16.gmra.mxu0 %v1025
    %v1113 = vpop.f32.mrf.mxu0
    %v1114 = vadd.f32 0.0, %v1113
    %v1115 = vpop.f32.mrf.mxu0
    %v1116 = vpop.f32.mrf.mxu0
    %v1117 = vpop.f32.mrf.mxu0
    %1118 = vdwg.mxu0
    %v1119 = vadd.f32 %v1035, %v1073
    %v1120 = vxor.u32 %v1119, 2147483648
    %v1121 = vmul.f32 %v1120, 1.442695
    %v1122 = vpow.pop %v1121
    %v1123 = vadd.f32 %v1122, 1.0
    %v1124 = vrcp.pop %v1123
    %v1125 = vmul.f32 1.0, %v1124
    %v1126 = vadd.f32 %v1036, %v1075
    %v1127 = vxor.u32 %v1126, 2147483648
    %v1128 = vmul.f32 %v1127, 1.442695
    %v1129 = vpow.pop %v1128
    %v1130 = vadd.f32 %v1129, 1.0
    %v1131 = vrcp.pop %v1130
    %v1132 = vmul.f32 1.0, %v1131
    %v1133 = vadd.f32 %v1114, %v147
    %v1134 = vmul.f32 %v1125, %v1133
    %v1135 = vadd.f32 %v1037, %v1134
    %v1136 = vtanh.pop %v1135
    %v1137 = vsub.f32 1.0, %v1132
    %v1138 = vmul.f32 %v1137, %v1136
    %v1139 = vmul.f32 %v1132, %v1024
    %v1140 = vadd.f32 %v1138, %v1139
    %v1141 = vpack.c.bf16 %v1140, %v1140
    %s1142 = sadd.s32 0, 32
    %s1143 = sshra.s32 %s1142, 3
    %s1144 = sand.u32 %s1142, 7
    %s1145 = smul.addr %s1143, 4
    %s1146 = scalar_lea.vmem [#allocation2], %s1145
    %1147 = vst [vmem:[%s1146] sm:$0xf] %v1141
    %s1148 = smul.u32 5, 3
    %s1149 = smul.addr %s1148, 8
    %s1150 = scalar_lea.vmem [#allocation3], %s1149
    %v1151 = vld [vmem:[%s1150] sm:$0xff]
    %v1152 = vld [vmem:[%s1150 + $0x8] sm:$0xff]
    %v1153 = vld [vmem:[%s1150 + $0x10] sm:$0xff]
    %1154 = vmatprep.subr.bf16.mxu0 %v548
    %1155 = vmatpush1.bf16.msra.mxu0 %v547
    %1156 = vmatprep.subr.bf16.mxu0 %v545
    %1157 = vmatpush1.bf16.msra.mxu0 %v544
    %1158 = vmatprep.subr.bf16.mxu0 %v542
    %1159 = vmatpush1.bf16.msra.mxu0 %v541
    %1160 = vmatprep.subr.bf16.mxu0 %v539
    %1161 = vmatpush1.bf16.msra.mxu0 %v538
    %1162 = vmatprep.subr.bf16.mxu0 %v536
    %1163 = vmatpush1.bf16.msra.mxu0 %v535
    %1164 = vmatprep.subr.bf16.mxu0 %v533
    %1165 = vmatpush1.bf16.msra.mxu0 %v532
    %1166 = vmatprep.subr.bf16.mxu0 %v530
    %1167 = vmatpush1.bf16.msra.mxu0 %v529
    %1168 = vmatprep.subr.bf16.mxu0 %v527
    %1169 = vmatpush1.bf16.msra.mxu0 %v526
    %1170 = vmatprep.subr.bf16.mxu0 0
    %1171 = vmatpush2.bf16.msra.mxu0 0
    %1172 = vmatprep.subr.bf16.mxu0 0
    %1173 = vmatpush2.bf16.msra.mxu0 0
    %1174 = vmatprep.subr.bf16.mxu0 0
    %1175 = vmatpush2.bf16.msra.mxu0 0
    %1176 = vmatprep.subr.bf16.mxu0 0
    %1177 = vmatpush2.bf16.msra.mxu0 0
    %1178 = vmatprep.subr.bf16.mxu0 0
    %1179 = vmatpush2.bf16.msra.mxu0 0
    %1180 = vmatprep.subr.bf16.mxu0 0
    %1181 = vmatpush2.bf16.msra.mxu0 0
    %1182 = vmatprep.subr.bf16.mxu0 0
    %1183 = vmatpush2.bf16.msra.mxu0 0
    %1184 = vmatprep.subr.bf16.mxu0 0
    %1185 = vmatpush2.bf16.msra.mxu0 0
    %1186 = vmatprep.mubr.bf16.mxu0 0
    %1187 = vmatmul.mubr.bf16.gmra.mxu0 %v1141
    %v1188 = vpop.f32.mrf.mxu0
    %v1189 = vadd.f32 0.0, %v1188
    %v1190 = vpop.f32.mrf.mxu0
    %v1191 = vadd.f32 0.0, %v1190
    %v1192 = vpop.f32.mrf.mxu0
    %v1193 = vpop.f32.mrf.mxu0
    %1194 = vdwg.mxu0
    %1195 = vmatprep.subr.bf16.mxu0 0
    %1196 = vmatpush1.bf16.msra.mxu0 %v549
    %1197 = vmatprep.subr.bf16.mxu0 0
    %1198 = vmatpush1.bf16.msra.mxu0 %v546
    %1199 = vmatprep.subr.bf16.mxu0 0
    %1200 = vmatpush1.bf16.msra.mxu0 %v543
    %1201 = vmatprep.subr.bf16.mxu0 0
    %1202 = vmatpush1.bf16.msra.mxu0 %v540
    %1203 = vmatprep.subr.bf16.mxu0 0
    %1204 = vmatpush1.bf16.msra.mxu0 %v537
    %1205 = vmatprep.subr.bf16.mxu0 0
    %1206 = vmatpush1.bf16.msra.mxu0 %v534
    %1207 = vmatprep.subr.bf16.mxu0 0
    %1208 = vmatpush1.bf16.msra.mxu0 %v531
    %1209 = vmatprep.subr.bf16.mxu0 0
    %1210 = vmatpush1.bf16.msra.mxu0 %v528
    %1211 = vmatprep.subr.bf16.mxu0 0
    %1212 = vmatpush2.bf16.msra.mxu0 0
    %1213 = vmatprep.subr.bf16.mxu0 0
    %1214 = vmatpush2.bf16.msra.mxu0 0
    %1215 = vmatprep.subr.bf16.mxu0 0
    %1216 = vmatpush2.bf16.msra.mxu0 0
    %1217 = vmatprep.subr.bf16.mxu0 0
    %1218 = vmatpush2.bf16.msra.mxu0 0
    %1219 = vmatprep.subr.bf16.mxu0 0
    %1220 = vmatpush2.bf16.msra.mxu0 0
    %1221 = vmatprep.subr.bf16.mxu0 0
    %1222 = vmatpush2.bf16.msra.mxu0 0
    %1223 = vmatprep.subr.bf16.mxu0 0
    %1224 = vmatpush2.bf16.msra.mxu0 0
    %1225 = vmatprep.subr.bf16.mxu0 0
    %1226 = vmatpush2.bf16.msra.mxu0 0
    %1227 = vmatprep.mubr.bf16.mxu0 0
    %1228 = vmatmul.mubr.bf16.gmra.mxu0 %v1141
    %v1229 = vpop.f32.mrf.mxu0
    %v1230 = vadd.f32 0.0, %v1229
    %v1231 = vpop.f32.mrf.mxu0
    %v1232 = vpop.f32.mrf.mxu0
    %v1233 = vpop.f32.mrf.mxu0
    %1234 = vdwg.mxu0
    %v1235 = vadd.f32 %v1151, %v1189
    %v1236 = vxor.u32 %v1235, 2147483648
    %v1237 = vmul.f32 %v1236, 1.442695
    %v1238 = vpow.pop %v1237
    %v1239 = vadd.f32 %v1238, 1.0
    %v1240 = vrcp.pop %v1239
    %v1241 = vmul.f32 1.0, %v1240
    %v1242 = vadd.f32 %v1152, %v1191
    %v1243 = vxor.u32 %v1242, 2147483648
    %v1244 = vmul.f32 %v1243, 1.442695
    %v1245 = vpow.pop %v1244
    %v1246 = vadd.f32 %v1245, 1.0
    %v1247 = vrcp.pop %v1246
    %v1248 = vmul.f32 1.0, %v1247
    %v1249 = vadd.f32 %v1230, %v147
    %v1250 = vmul.f32 %v1241, %v1249
    %v1251 = vadd.f32 %v1153, %v1250
    %v1252 = vtanh.pop %v1251
    %v1253 = vsub.f32 1.0, %v1248
    %v1254 = vmul.f32 %v1253, %v1252
    %v1255 = vmul.f32 %v1248, %v1140
    %v1256 = vadd.f32 %v1254, %v1255
    %v1257 = vpack.c.bf16 %v1256, %v1256
    %s1258 = sadd.s32 0, 40
    %s1259 = sshra.s32 %s1258, 3
    %s1260 = sand.u32 %s1258, 7
    %s1261 = smul.addr %s1259, 4
    %s1262 = scalar_lea.vmem [#allocation2], %s1261
    %1263 = vst [vmem:[%s1262] sm:$0xf] %v1257
    %s1264 = smul.u32 6, 3
    %s1265 = smul.addr %s1264, 8
    %s1266 = scalar_lea.vmem [#allocation3], %s1265
    %v1267 = vld [vmem:[%s1266] sm:$0xff]
    %v1268 = vld [vmem:[%s1266 + $0x8] sm:$0xff]
    %v1269 = vld [vmem:[%s1266 + $0x10] sm:$0xff]
    %1270 = vmatprep.subr.bf16.mxu0 %v548
    %1271 = vmatpush1.bf16.msra.mxu0 %v547
    %1272 = vmatprep.subr.bf16.mxu0 %v545
    %1273 = vmatpush1.bf16.msra.mxu0 %v544
    %1274 = vmatprep.subr.bf16.mxu0 %v542
    %1275 = vmatpush1.bf16.msra.mxu0 %v541
    %1276 = vmatprep.subr.bf16.mxu0 %v539
    %1277 = vmatpush1.bf16.msra.mxu0 %v538
    %1278 = vmatprep.subr.bf16.mxu0 %v536
    %1279 = vmatpush1.bf16.msra.mxu0 %v535
    %1280 = vmatprep.subr.bf16.mxu0 %v533
    %1281 = vmatpush1.bf16.msra.mxu0 %v532
    %1282 = vmatprep.subr.bf16.mxu0 %v530
    %1283 = vmatpush1.bf16.msra.mxu0 %v529
    %1284 = vmatprep.subr.bf16.mxu0 %v527
    %1285 = vmatpush1.bf16.msra.mxu0 %v526
    %1286 = vmatprep.subr.bf16.mxu0 0
    %1287 = vmatpush2.bf16.msra.mxu0 0
    %1288 = vmatprep.subr.bf16.mxu0 0
    %1289 = vmatpush2.bf16.msra.mxu0 0
    %1290 = vmatprep.subr.bf16.mxu0 0
    %1291 = vmatpush2.bf16.msra.mxu0 0
    %1292 = vmatprep.subr.bf16.mxu0 0
    %1293 = vmatpush2.bf16.msra.mxu0 0
    %1294 = vmatprep.subr.bf16.mxu0 0
    %1295 = vmatpush2.bf16.msra.mxu0 0
    %1296 = vmatprep.subr.bf16.mxu0 0
    %1297 = vmatpush2.bf16.msra.mxu0 0
    %1298 = vmatprep.subr.bf16.mxu0 0
    %1299 = vmatpush2.bf16.msra.mxu0 0
    %1300 = vmatprep.subr.bf16.mxu0 0
    %1301 = vmatpush2.bf16.msra.mxu0 0
    %1302 = vmatprep.mubr.bf16.mxu0 0
    %1303 = vmatmul.mubr.bf16.gmra.mxu0 %v1257
    %v1304 = vpop.f32.mrf.mxu0
    %v1305 = vadd.f32 0.0, %v1304
    %v1306 = vpop.f32.mrf.mxu0
    %v1307 = vadd.f32 0.0, %v1306
    %v1308 = vpop.f32.mrf.mxu0
    %v1309 = vpop.f32.mrf.mxu0
    %1310 = vdwg.mxu0
    %1311 = vmatprep.subr.bf16.mxu0 0
    %1312 = vmatpush1.bf16.msra.mxu0 %v549
    %1313 = vmatprep.subr.bf16.mxu0 0
    %1314 = vmatpush1.bf16.msra.mxu0 %v546
    %1315 = vmatprep.subr.bf16.mxu0 0
    %1316 = vmatpush1.bf16.msra.mxu0 %v543
    %1317 = vmatprep.subr.bf16.mxu0 0
    %1318 = vmatpush1.bf16.msra.mxu0 %v540
    %1319 = vmatprep.subr.bf16.mxu0 0
    %1320 = vmatpush1.bf16.msra.mxu0 %v537
    %1321 = vmatprep.subr.bf16.mxu0 0
    %1322 = vmatpush1.bf16.msra.mxu0 %v534
    %1323 = vmatprep.subr.bf16.mxu0 0
    %1324 = vmatpush1.bf16.msra.mxu0 %v531
    %1325 = vmatprep.subr.bf16.mxu0 0
    %1326 = vmatpush1.bf16.msra.mxu0 %v528
    %1327 = vmatprep.subr.bf16.mxu0 0
    %1328 = vmatpush2.bf16.msra.mxu0 0
    %1329 = vmatprep.subr.bf16.mxu0 0
    %1330 = vmatpush2.bf16.msra.mxu0 0
    %1331 = vmatprep.subr.bf16.mxu0 0
    %1332 = vmatpush2.bf16.msra.mxu0 0
    %1333 = vmatprep.subr.bf16.mxu0 0
    %1334 = vmatpush2.bf16.msra.mxu0 0
    %1335 = vmatprep.subr.bf16.mxu0 0
    %1336 = vmatpush2.bf16.msra.mxu0 0
    %1337 = vmatprep.subr.bf16.mxu0 0
    %1338 = vmatpush2.bf16.msra.mxu0 0
    %1339 = vmatprep.subr.bf16.mxu0 0
    %1340 = vmatpush2.bf16.msra.mxu0 0
    %1341 = vmatprep.subr.bf16.mxu0 0
    %1342 = vmatpush2.bf16.msra.mxu0 0
    %1343 = vmatprep.mubr.bf16.mxu0 0
    %1344 = vmatmul.mubr.bf16.gmra.mxu0 %v1257
    %v1345 = vpop.f32.mrf.mxu0
    %v1346 = vadd.f32 0.0, %v1345
    %v1347 = vpop.f32.mrf.mxu0
    %v1348 = vpop.f32.mrf.mxu0
    %v1349 = vpop.f32.mrf.mxu0
    %1350 = vdwg.mxu0
    %v1351 = vadd.f32 %v1267, %v1305
    %v1352 = vxor.u32 %v1351, 2147483648
    %v1353 = vmul.f32 %v1352, 1.442695
    %v1354 = vpow.pop %v1353
    %v1355 = vadd.f32 %v1354, 1.0
    %v1356 = vrcp.pop %v1355
    %v1357 = vmul.f32 1.0, %v1356
    %v1358 = vadd.f32 %v1268, %v1307
    %v1359 = vxor.u32 %v1358, 2147483648
    %v1360 = vmul.f32 %v1359, 1.442695
    %v1361 = vpow.pop %v1360
    %v1362 = vadd.f32 %v1361, 1.0
    %v1363 = vrcp.pop %v1362
    %v1364 = vmul.f32 1.0, %v1363
    %v1365 = vadd.f32 %v1346, %v147
    %v1366 = vmul.f32 %v1357, %v1365
    %v1367 = vadd.f32 %v1269, %v1366
    %v1368 = vtanh.pop %v1367
    %v1369 = vsub.f32 1.0, %v1364
    %v1370 = vmul.f32 %v1369, %v1368
    %v1371 = vmul.f32 %v1364, %v1256
    %v1372 = vadd.f32 %v1370, %v1371
    %v1373 = vpack.c.bf16 %v1372, %v1372
    %s1374 = sadd.s32 0, 48
    %s1375 = sshra.s32 %s1374, 3
    %s1376 = sand.u32 %s1374, 7
    %s1377 = smul.addr %s1375, 4
    %s1378 = scalar_lea.vmem [#allocation2], %s1377
    %1379 = vst [vmem:[%s1378] sm:$0xf] %v1373
    %s1380 = smul.u32 7, 3
    %s1381 = smul.addr %s1380, 8
    %s1382 = scalar_lea.vmem [#allocation3], %s1381
    %v1383 = vld [vmem:[%s1382] sm:$0xff]
    %v1384 = vld [vmem:[%s1382 + $0x8] sm:$0xff]
    %v1385 = vld [vmem:[%s1382 + $0x10] sm:$0xff]
    %1386 = vmatprep.subr.bf16.mxu0 %v548
    %1387 = vmatpush1.bf16.msra.mxu0 %v547
    %1388 = vmatprep.subr.bf16.mxu0 %v545
    %1389 = vmatpush1.bf16.msra.mxu0 %v544
    %1390 = vmatprep.subr.bf16.mxu0 %v542
    %1391 = vmatpush1.bf16.msra.mxu0 %v541
    %1392 = vmatprep.subr.bf16.mxu0 %v539
    %1393 = vmatpush1.bf16.msra.mxu0 %v538
    %1394 = vmatprep.subr.bf16.mxu0 %v536
    %1395 = vmatpush1.bf16.msra.mxu0 %v535
    %1396 = vmatprep.subr.bf16.mxu0 %v533
    %1397 = vmatpush1.bf16.msra.mxu0 %v532
    %1398 = vmatprep.subr.bf16.mxu0 %v530
    %1399 = vmatpush1.bf16.msra.mxu0 %v529
    %1400 = vmatprep.subr.bf16.mxu0 %v527
    %1401 = vmatpush1.bf16.msra.mxu0 %v526
    %1402 = vmatprep.subr.bf16.mxu0 0
    %1403 = vmatpush2.bf16.msra.mxu0 0
    %1404 = vmatprep.subr.bf16.mxu0 0
    %1405 = vmatpush2.bf16.msra.mxu0 0
    %1406 = vmatprep.subr.bf16.mxu0 0
    %1407 = vmatpush2.bf16.msra.mxu0 0
    %1408 = vmatprep.subr.bf16.mxu0 0
    %1409 = vmatpush2.bf16.msra.mxu0 0
    %1410 = vmatprep.subr.bf16.mxu0 0
    %1411 = vmatpush2.bf16.msra.mxu0 0
    %1412 = vmatprep.subr.bf16.mxu0 0
    %1413 = vmatpush2.bf16.msra.mxu0 0
    %1414 = vmatprep.subr.bf16.mxu0 0
    %1415 = vmatpush2.bf16.msra.mxu0 0
    %1416 = vmatprep.subr.bf16.mxu0 0
    %1417 = vmatpush2.bf16.msra.mxu0 0
    %1418 = vmatprep.mubr.bf16.mxu0 0
    %1419 = vmatmul.mubr.bf16.gmra.mxu0 %v1373
    %v1420 = vpop.f32.mrf.mxu0
    %v1421 = vadd.f32 0.0, %v1420
    %v1422 = vpop.f32.mrf.mxu0
    %v1423 = vadd.f32 0.0, %v1422
    %v1424 = vpop.f32.mrf.mxu0
    %v1425 = vpop.f32.mrf.mxu0
    %1426 = vdwg.mxu0
    %1427 = vmatprep.subr.bf16.mxu0 0
    %1428 = vmatpush1.bf16.msra.mxu0 %v549
    %1429 = vmatprep.subr.bf16.mxu0 0
    %1430 = vmatpush1.bf16.msra.mxu0 %v546
    %1431 = vmatprep.subr.bf16.mxu0 0
    %1432 = vmatpush1.bf16.msra.mxu0 %v543
    %1433 = vmatprep.subr.bf16.mxu0 0
    %1434 = vmatpush1.bf16.msra.mxu0 %v540
    %1435 = vmatprep.subr.bf16.mxu0 0
    %1436 = vmatpush1.bf16.msra.mxu0 %v537
    %1437 = vmatprep.subr.bf16.mxu0 0
    %1438 = vmatpush1.bf16.msra.mxu0 %v534
    %1439 = vmatprep.subr.bf16.mxu0 0
    %1440 = vmatpush1.bf16.msra.mxu0 %v531
    %1441 = vmatprep.subr.bf16.mxu0 0
    %1442 = vmatpush1.bf16.msra.mxu0 %v528
    %1443 = vmatprep.subr.bf16.mxu0 0
    %1444 = vmatpush2.bf16.msra.mxu0 0
    %1445 = vmatprep.subr.bf16.mxu0 0
    %1446 = vmatpush2.bf16.msra.mxu0 0
    %1447 = vmatprep.subr.bf16.mxu0 0
    %1448 = vmatpush2.bf16.msra.mxu0 0
    %1449 = vmatprep.subr.bf16.mxu0 0
    %1450 = vmatpush2.bf16.msra.mxu0 0
    %1451 = vmatprep.subr.bf16.mxu0 0
    %1452 = vmatpush2.bf16.msra.mxu0 0
    %1453 = vmatprep.subr.bf16.mxu0 0
    %1454 = vmatpush2.bf16.msra.mxu0 0
    %1455 = vmatprep.subr.bf16.mxu0 0
    %1456 = vmatpush2.bf16.msra.mxu0 0
    %1457 = vmatprep.subr.bf16.mxu0 0
    %1458 = vmatpush2.bf16.msra.mxu0 0
    %1459 = vmatprep.mubr.bf16.mxu0 0
    %1460 = vmatmul.mubr.bf16.gmra.mxu0 %v1373
    %v1461 = vpop.f32.mrf.mxu0
    %v1462 = vadd.f32 0.0, %v1461
    %v1463 = vpop.f32.mrf.mxu0
    %v1464 = vpop.f32.mrf.mxu0
    %v1465 = vpop.f32.mrf.mxu0
    %1466 = vdwg.mxu0
    %v1467 = vadd.f32 %v1383, %v1421
    %v1468 = vxor.u32 %v1467, 2147483648
    %v1469 = vmul.f32 %v1468, 1.442695
    %v1470 = vpow.pop %v1469
    %v1471 = vadd.f32 %v1470, 1.0
    %v1472 = vrcp.pop %v1471
    %v1473 = vmul.f32 1.0, %v1472
    %v1474 = vadd.f32 %v1384, %v1423
    %v1475 = vxor.u32 %v1474, 2147483648
    %v1476 = vmul.f32 %v1475, 1.442695
    %v1477 = vpow.pop %v1476
    %v1478 = vadd.f32 %v1477, 1.0
    %v1479 = vrcp.pop %v1478
    %v1480 = vmul.f32 1.0, %v1479
    %v1481 = vadd.f32 %v1462, %v147
    %v1482 = vmul.f32 %v1473, %v1481
    %v1483 = vadd.f32 %v1385, %v1482
    %v1484 = vtanh.pop %v1483
    %v1485 = vsub.f32 1.0, %v1480
    %v1486 = vmul.f32 %v1485, %v1484
    %v1487 = vmul.f32 %v1480, %v1372
    %v1488 = vadd.f32 %v1486, %v1487
    %v1489 = vpack.c.bf16 %v1488, %v1488
    %s1490 = sadd.s32 0, 56
    %s1491 = sshra.s32 %s1490, 3
    %s1492 = sand.u32 %s1490, 7
    %s1493 = smul.addr %s1491, 4
    %s1494 = scalar_lea.vmem [#allocation2], %s1493
    %1495 = vst [vmem:[%s1494] sm:$0xf] %v1489
    %v1496 = vld [vmem:[#allocation4] sm:$0xff]
    %v1497 = vld [vmem:[#allocation4 + $0x8] sm:$0xf]
    %v1498 = vld [vmem:[#allocation4 + $0xc] sm:$0xff]
    %v1499 = vld [vmem:[#allocation4 + $0x14] sm:$0xf]
    %v1500 = vld [vmem:[#allocation4 + $0x18] sm:$0xff]
    %v1501 = vld [vmem:[#allocation4 + $0x20] sm:$0xf]
    %v1502 = vld [vmem:[#allocation4 + $0x24] sm:$0xff]
    %v1503 = vld [vmem:[#allocation4 + $0x2c] sm:$0xf]
    %v1504 = vld [vmem:[#allocation4 + $0x30] sm:$0xff]
    %v1505 = vld [vmem:[#allocation4 + $0x38] sm:$0xf]
    %v1506 = vld [vmem:[#allocation4 + $0x3c] sm:$0xff]
    %v1507 = vld [vmem:[#allocation4 + $0x44] sm:$0xf]
    %v1508 = vld [vmem:[#allocation4 + $0x48] sm:$0xff]
    %v1509 = vld [vmem:[#allocation4 + $0x50] sm:$0xf]
    %v1510 = vld [vmem:[#allocation4 + $0x54] sm:$0xff]
    %v1511 = vld [vmem:[#allocation4 + $0x5c] sm:$0xf]
    %v1512 = vld [vmem:[#allocation4 + $0x60] sm:$0xff]
    %v1513 = vld [vmem:[#allocation4 + $0x68] sm:$0xf]
    %v1514 = vld [vmem:[#allocation4 + $0x6c] sm:$0xff]
    %v1515 = vld [vmem:[#allocation4 + $0x74] sm:$0xf]
    %v1516 = vld [vmem:[#allocation4 + $0x78] sm:$0xff]
    %v1517 = vld [vmem:[#allocation4 + $0x80] sm:$0xf]
    %v1518 = vld [vmem:[#allocation4 + $0x84] sm:$0xff]
    %v1519 = vld [vmem:[#allocation4 + $0x8c] sm:$0xf]
    %v1520 = vld [vmem:[#allocation4 + $0x90] sm:$0xff]
    %v1521 = vld [vmem:[#allocation4 + $0x98] sm:$0xf]
    %v1522 = vld [vmem:[#allocation4 + $0x9c] sm:$0xff]
    %v1523 = vld [vmem:[#allocation4 + $0xa4] sm:$0xf]
    %v1524 = vld [vmem:[#allocation4 + $0xa8] sm:$0xff]
    %v1525 = vld [vmem:[#allocation4 + $0xb0] sm:$0xf]
    %v1526 = vld [vmem:[#allocation4 + $0xb4] sm:$0xff]
    %v1527 = vld [vmem:[#allocation4 + $0xbc] sm:$0xf]
    %v1528 = vld [vmem:[%s6] sm:$0x7]
    %v1529 = vld [vmem:[#allocation6] sm:$0xff]
    %v1530 = vld [vmem:[#allocation6 + $0x8] sm:$0xf]
    %v1531 = vld [vmem:[#allocation6 + $0xc] sm:$0xff]
    %v1532 = vld [vmem:[#allocation6 + $0x14] sm:$0xf]
    %v1533 = vld [vmem:[#allocation6 + $0x18] sm:$0xff]
    %v1534 = vld [vmem:[#allocation6 + $0x20] sm:$0xf]
    %v1535 = vld [vmem:[#allocation6 + $0x24] sm:$0xff]
    %v1536 = vld [vmem:[#allocation6 + $0x2c] sm:$0xf]
    %v1537 = vld [vmem:[#allocation6 + $0x30] sm:$0xff]
    %v1538 = vld [vmem:[#allocation6 + $0x38] sm:$0xf]
    %v1539 = vld [vmem:[#allocation6 + $0x3c] sm:$0xff]
    %v1540 = vld [vmem:[#allocation6 + $0x44] sm:$0xf]
    %v1541 = vld [vmem:[#allocation6 + $0x48] sm:$0xff]
    %v1542 = vld [vmem:[#allocation6 + $0x50] sm:$0xf]
    %v1543 = vld [vmem:[#allocation6 + $0x54] sm:$0xff]
    %v1544 = vld [vmem:[#allocation6 + $0x5c] sm:$0xf]
    %v1545 = vld [vmem:[#allocation6 + $0x60] sm:$0xff]
    %v1546 = vld [vmem:[#allocation6 + $0x68] sm:$0xf]
    %v1547 = vld [vmem:[#allocation6 + $0x6c] sm:$0xff]
    %v1548 = vld [vmem:[#allocation6 + $0x74] sm:$0xf]
    %v1549 = vld [vmem:[#allocation6 + $0x78] sm:$0xff]
    %v1550 = vld [vmem:[#allocation6 + $0x80] sm:$0xf]
    %v1551 = vld [vmem:[#allocation6 + $0x84] sm:$0xff]
    %v1552 = vld [vmem:[#allocation6 + $0x8c] sm:$0xf]
    %v1553 = vld [vmem:[#allocation6 + $0x90] sm:$0xff]
    %v1554 = vld [vmem:[#allocation6 + $0x98] sm:$0xf]
    %v1555 = vld [vmem:[#allocation6 + $0x9c] sm:$0xff]
    %v1556 = vld [vmem:[#allocation6 + $0xa4] sm:$0xf]
    %v1557 = vld [vmem:[#allocation6 + $0xa8] sm:$0xff]
    %v1558 = vld [vmem:[#allocation6 + $0xb0] sm:$0xf]
    %v1559 = vld [vmem:[#allocation6 + $0xb4] sm:$0xff]
    %v1560 = vld [vmem:[#allocation6 + $0xbc] sm:$0xf]
    %v1561 = vld [vmem:[%s8] sm:$0x1]
    %v1563 = vlaneseq
    %v1564 = vshrl.u32 %v1563, 7
    %v1565 = vsub.s32 0, %v1564
    %v1566 = vrot.slane %v1561, %v1565
    %v1568 = vld [vmem:[#allocation2] sm:$0xf]
    %v1569 = vld [vmem:[#allocation2 + $0x4] sm:$0xf]
    %v1570 = vld [vmem:[#allocation2 + $0x8] sm:$0xf]
    %v1571 = vld [vmem:[#allocation2 + $0xc] sm:$0xf]
    %v1572 = vld [vmem:[#allocation2 + $0x10] sm:$0xf]
    %v1573 = vld [vmem:[#allocation2 + $0x14] sm:$0xf]
    %v1574 = vld [vmem:[#allocation2 + $0x18] sm:$0xf]
    %v1575 = vld [vmem:[#allocation2 + $0x1c] sm:$0xf]
    %v1577 = vlaneseq
    %v1578 = vshrl.u32 %v1577, 7
    %v1579 = vsub.s32 0, %v1578
    %v1580 = vrot.slane %v1528, %v1579
    %v1581 = vlaneseq
    %v1582 = vshrl.u32 %v1581, 7
    %v1583 = vsub.s32 1, %v1582
    %v1584 = vrot.slane %v1528, %v1583
    %v1585 = vlaneseq
    %v1586 = vshrl.u32 %v1585, 7
    %v1587 = vsub.s32 2, %v1586
    %v1588 = vrot.slane %v1528, %v1587
    %v1600 = vunpack.c.l.b16 %v1568
    %v1601 = vunpack.c.l.b16 %v1569
    %v1602 = vunpack.c.l.b16 %v1570
    %v1603 = vunpack.c.l.b16 %v1571
    %v1604 = vunpack.c.l.b16 %v1572
    %v1605 = vunpack.c.l.b16 %v1573
    %v1606 = vunpack.c.l.b16 %v1574
    %v1607 = vunpack.c.l.b16 %v1575
    %v1608 = vpack.c.b16 %v1601, %v1600
    %v1609 = vpack.c.b16 %v1603, %v1602
    %v1610 = vpack.c.b16 %v1605, %v1604
    %v1611 = vpack.c.b16 %v1607, %v1606
    %v1648 = vunpack.c.l.b16 %v1496
    %v1649 = vunpack.c.h.b16 %v1496
    %v1650 = vunpack.c.l.b16 %v1497
    %v1651 = vunpack.c.l.b16 %v1498
    %v1652 = vunpack.c.h.b16 %v1498
    %v1653 = vunpack.c.l.b16 %v1499
    %v1654 = vunpack.c.l.b16 %v1500
    %v1655 = vunpack.c.h.b16 %v1500
    %v1656 = vunpack.c.l.b16 %v1501
    %v1657 = vunpack.c.l.b16 %v1502
    %v1658 = vunpack.c.h.b16 %v1502
    %v1659 = vunpack.c.l.b16 %v1503
    %v1660 = vunpack.c.l.b16 %v1504
    %v1661 = vunpack.c.h.b16 %v1504
    %v1662 = vunpack.c.l.b16 %v1505
    %v1663 = vunpack.c.l.b16 %v1506
    %v1664 = vunpack.c.h.b16 %v1506
    %v1665 = vunpack.c.l.b16 %v1507
    %v1666 = vunpack.c.l.b16 %v1508
    %v1667 = vunpack.c.h.b16 %v1508
    %v1668 = vunpack.c.l.b16 %v1509
    %v1669 = vunpack.c.l.b16 %v1510
    %v1670 = vunpack.c.h.b16 %v1510
    %v1671 = vunpack.c.l.b16 %v1511
    %v1672 = vunpack.c.l.b16 %v1512
    %v1673 = vunpack.c.h.b16 %v1512
    %v1674 = vunpack.c.l.b16 %v1513
    %v1675 = vunpack.c.l.b16 %v1514
    %v1676 = vunpack.c.h.b16 %v1514
    %v1677 = vunpack.c.l.b16 %v1515
    %v1678 = vunpack.c.l.b16 %v1516
    %v1679 = vunpack.c.h.b16 %v1516
    %v1680 = vunpack.c.l.b16 %v1517
    %v1681 = vunpack.c.l.b16 %v1518
    %v1682 = vunpack.c.h.b16 %v1518
    %v1683 = vunpack.c.l.b16 %v1519
    %v1684 = vunpack.c.l.b16 %v1520
    %v1685 = vunpack.c.h.b16 %v1520
    %v1686 = vunpack.c.l.b16 %v1521
    %v1687 = vunpack.c.l.b16 %v1522
    %v1688 = vunpack.c.h.b16 %v1522
    %v1689 = vunpack.c.l.b16 %v1523
    %v1690 = vunpack.c.l.b16 %v1524
    %v1691 = vunpack.c.h.b16 %v1524
    %v1692 = vunpack.c.l.b16 %v1525
    %v1693 = vunpack.c.l.b16 %v1526
    %v1694 = vunpack.c.h.b16 %v1526
    %v1695 = vunpack.c.l.b16 %v1527
    %v1696 = vpack.c.b16 %v1651, %v1648
    %v1697 = vpack.c.b16 %v1652, %v1649
    %v1698 = vpack.c.b16 %v1653, %v1650
    %v1699 = vpack.c.b16 %v1657, %v1654
    %v1700 = vpack.c.b16 %v1658, %v1655
    %v1701 = vpack.c.b16 %v1659, %v1656
    %v1702 = vpack.c.b16 %v1663, %v1660
    %v1703 = vpack.c.b16 %v1664, %v1661
    %v1704 = vpack.c.b16 %v1665, %v1662
    %v1705 = vpack.c.b16 %v1669, %v1666
    %v1706 = vpack.c.b16 %v1670, %v1667
    %v1707 = vpack.c.b16 %v1671, %v1668
    %v1708 = vpack.c.b16 %v1675, %v1672
    %v1709 = vpack.c.b16 %v1676, %v1673
    %v1710 = vpack.c.b16 %v1677, %v1674
    %v1711 = vpack.c.b16 %v1681, %v1678
    %v1712 = vpack.c.b16 %v1682, %v1679
    %v1713 = vpack.c.b16 %v1683, %v1680
    %v1714 = vpack.c.b16 %v1687, %v1684
    %v1715 = vpack.c.b16 %v1688, %v1685
    %v1716 = vpack.c.b16 %v1689, %v1686
    %v1717 = vpack.c.b16 %v1693, %v1690
    %v1718 = vpack.c.b16 %v1694, %v1691
    %v1719 = vpack.c.b16 %v1695, %v1692
    %1744 = vmatprep.subr.bf16.mxu0 %v1718
    %1745 = vmatpush1.bf16.msra.mxu0 %v1717
    %1746 = vmatprep.subr.bf16.mxu0 %v1715
    %1747 = vmatpush1.bf16.msra.mxu0 %v1714
    %1748 = vmatprep.subr.bf16.mxu0 %v1712
    %1749 = vmatpush1.bf16.msra.mxu0 %v1711
    %1750 = vmatprep.subr.bf16.mxu0 %v1709
    %1751 = vmatpush1.bf16.msra.mxu0 %v1708
    %1752 = vmatprep.subr.bf16.mxu0 %v1706
    %1753 = vmatpush1.bf16.msra.mxu0 %v1705
    %1754 = vmatprep.subr.bf16.mxu0 %v1703
    %1755 = vmatpush1.bf16.msra.mxu0 %v1702
    %1756 = vmatprep.subr.bf16.mxu0 %v1700
    %1757 = vmatpush1.bf16.msra.mxu0 %v1699
    %1758 = vmatprep.subr.bf16.mxu0 %v1697
    %1759 = vmatpush1.bf16.msra.mxu0 %v1696
    %1760 = vmatprep.subr.bf16.mxu0 0
    %1761 = vmatpush2.bf16.msra.mxu0 0
    %1762 = vmatprep.subr.bf16.mxu0 0
    %1763 = vmatpush2.bf16.msra.mxu0 0
    %1764 = vmatprep.subr.bf16.mxu0 0
    %1765 = vmatpush2.bf16.msra.mxu0 0
    %1766 = vmatprep.subr.bf16.mxu0 0
    %1767 = vmatpush2.bf16.msra.mxu0 0
    %1768 = vmatprep.subr.bf16.mxu0 0
    %1769 = vmatpush2.bf16.msra.mxu0 0
    %1770 = vmatprep.subr.bf16.mxu0 0
    %1771 = vmatpush2.bf16.msra.mxu0 0
    %1772 = vmatprep.subr.bf16.mxu0 0
    %1773 = vmatpush2.bf16.msra.mxu0 0
    %1774 = vmatprep.subr.bf16.mxu0 0
    %1775 = vmatpush2.bf16.msra.mxu0 0
    %1776 = vmatprep.mubr.bf16.mxu0 0
    %1777 = vmatmul.mubr.bf16.gmra.mxu0 %v1608
    %v1778 = vpop.f32.mrf.mxu0
    %v1779 = vadd.f32 %v1580, %v1778
    %v1780 = vpop.f32.mrf.mxu0
    %v1781 = vadd.f32 %v1584, %v1780
    %v1782 = vpop.f32.mrf.mxu0
    %v1783 = vadd.f32 %v1580, %v1782
    %v1784 = vpop.f32.mrf.mxu0
    %v1785 = vadd.f32 %v1584, %v1784
    %1786 = vmatprep.mubr.bf16.mxu0 0
    %1787 = vmatmul.mubr.bf16.gmra.mxu0 %v1609
    %v1788 = vpop.f32.mrf.mxu0
    %v1789 = vadd.f32 %v1580, %v1788
    %v1790 = vpop.f32.mrf.mxu0
    %v1791 = vadd.f32 %v1584, %v1790
    %v1792 = vpop.f32.mrf.mxu0
    %v1793 = vadd.f32 %v1580, %v1792
    %v1794 = vpop.f32.mrf.mxu0
    %v1795 = vadd.f32 %v1584, %v1794
    %1796 = vmatprep.mubr.bf16.mxu0 0
    %1797 = vmatmul.mubr.bf16.gmra.mxu0 %v1610
    %v1798 = vpop.f32.mrf.mxu0
    %v1799 = vadd.f32 %v1580, %v1798
    %v1800 = vpop.f32.mrf.mxu0
    %v1801 = vadd.f32 %v1584, %v1800
    %v1802 = vpop.f32.mrf.mxu0
    %v1803 = vadd.f32 %v1580, %v1802
    %v1804 = vpop.f32.mrf.mxu0
    %v1805 = vadd.f32 %v1584, %v1804
    %1806 = vmatprep.mubr.bf16.mxu0 0
    %1807 = vmatmul.mubr.bf16.gmra.mxu0 %v1611
    %v1808 = vpop.f32.mrf.mxu0
    %v1809 = vadd.f32 %v1580, %v1808
    %v1810 = vpop.f32.mrf.mxu0
    %v1811 = vadd.f32 %v1584, %v1810
    %v1812 = vpop.f32.mrf.mxu0
    %v1813 = vadd.f32 %v1580, %v1812
    %v1814 = vpop.f32.mrf.mxu0
    %v1815 = vadd.f32 %v1584, %v1814
    %1816 = vdwg.mxu0
    %1817 = vmatprep.subr.bf16.mxu0 0
    %1818 = vmatpush1.bf16.msra.mxu0 %v1719
    %1819 = vmatprep.subr.bf16.mxu0 0
    %1820 = vmatpush1.bf16.msra.mxu0 %v1716
    %1821 = vmatprep.subr.bf16.mxu0 0
    %1822 = vmatpush1.bf16.msra.mxu0 %v1713
    %1823 = vmatprep.subr.bf16.mxu0 0
    %1824 = vmatpush1.bf16.msra.mxu0 %v1710
    %1825 = vmatprep.subr.bf16.mxu0 0
    %1826 = vmatpush1.bf16.msra.mxu0 %v1707
    %1827 = vmatprep.subr.bf16.mxu0 0
    %1828 = vmatpush1.bf16.msra.mxu0 %v1704
    %1829 = vmatprep.subr.bf16.mxu0 0
    %1830 = vmatpush1.bf16.msra.mxu0 %v1701
    %1831 = vmatprep.subr.bf16.mxu0 0
    %1832 = vmatpush1.bf16.msra.mxu0 %v1698
    %1833 = vmatprep.subr.bf16.mxu0 0
    %1834 = vmatpush2.bf16.msra.mxu0 0
    %1835 = vmatprep.subr.bf16.mxu0 0
    %1836 = vmatpush2.bf16.msra.mxu0 0
    %1837 = vmatprep.subr.bf16.mxu0 0
    %1838 = vmatpush2.bf16.msra.mxu0 0
    %1839 = vmatprep.subr.bf16.mxu0 0
    %1840 = vmatpush2.bf16.msra.mxu0 0
    %1841 = vmatprep.subr.bf16.mxu0 0
    %1842 = vmatpush2.bf16.msra.mxu0 0
    %1843 = vmatprep.subr.bf16.mxu0 0
    %1844 = vmatpush2.bf16.msra.mxu0 0
    %1845 = vmatprep.subr.bf16.mxu0 0
    %1846 = vmatpush2.bf16.msra.mxu0 0
    %1847 = vmatprep.subr.bf16.mxu0 0
    %1848 = vmatpush2.bf16.msra.mxu0 0
    %1849 = vmatprep.mubr.bf16.mxu0 0
    %1850 = vmatmul.mubr.bf16.gmra.mxu0 %v1608
    %v1851 = vpop.f32.mrf.mxu0
    %v1852 = vadd.f32 %v1588, %v1851
    %v1853 = vpop.f32.mrf.mxu0
    %v1854 = vpop.f32.mrf.mxu0
    %v1855 = vadd.f32 %v1588, %v1854
    %v1856 = vpop.f32.mrf.mxu0
    %1857 = vmatprep.mubr.bf16.mxu0 0
    %1858 = vmatmul.mubr.bf16.gmra.mxu0 %v1609
    %v1859 = vpop.f32.mrf.mxu0
    %v1860 = vadd.f32 %v1588, %v1859
    %v1861 = vpop.f32.mrf.mxu0
    %v1862 = vpop.f32.mrf.mxu0
    %v1863 = vadd.f32 %v1588, %v1862
    %v1864 = vpop.f32.mrf.mxu0
    %1865 = vmatprep.mubr.bf16.mxu0 0
    %1866 = vmatmul.mubr.bf16.gmra.mxu0 %v1610
    %v1867 = vpop.f32.mrf.mxu0
    %v1868 = vadd.f32 %v1588, %v1867
    %v1869 = vpop.f32.mrf.mxu0
    %v1870 = vpop.f32.mrf.mxu0
    %v1871 = vadd.f32 %v1588, %v1870
    %v1872 = vpop.f32.mrf.mxu0
    %1873 = vmatprep.mubr.bf16.mxu0 0
    %1874 = vmatmul.mubr.bf16.gmra.mxu0 %v1611
    %v1875 = vpop.f32.mrf.mxu0
    %v1876 = vadd.f32 %v1588, %v1875
    %v1877 = vpop.f32.mrf.mxu0
    %v1878 = vpop.f32.mrf.mxu0
    %v1879 = vadd.f32 %v1588, %v1878
    %v1880 = vpop.f32.mrf.mxu0
    %1881 = vdwg.mxu0
    %1882 = vst [vmem:[#allocation3] sm:$0xff] %v1779
    %1883 = vst [vmem:[#allocation3 + $0x8] sm:$0xff] %v1781
    %1884 = vst [vmem:[#allocation3 + $0x10] sm:$0xff] %v1852
    %1885 = vst [vmem:[#allocation3 + $0x18] sm:$0xff] %v1783
    %1886 = vst [vmem:[#allocation3 + $0x20] sm:$0xff] %v1785
    %1887 = vst [vmem:[#allocation3 + $0x28] sm:$0xff] %v1855
    %1888 = vst [vmem:[#allocation3 + $0x30] sm:$0xff] %v1789
    %1889 = vst [vmem:[#allocation3 + $0x38] sm:$0xff] %v1791
    %1890 = vst [vmem:[#allocation3 + $0x40] sm:$0xff] %v1860
    %1891 = vst [vmem:[#allocation3 + $0x48] sm:$0xff] %v1793
    %1892 = vst [vmem:[#allocation3 + $0x50] sm:$0xff] %v1795
    %1893 = vst [vmem:[#allocation3 + $0x58] sm:$0xff] %v1863
    %1894 = vst [vmem:[#allocation3 + $0x60] sm:$0xff] %v1799
    %1895 = vst [vmem:[#allocation3 + $0x68] sm:$0xff] %v1801
    %1896 = vst [vmem:[#allocation3 + $0x70] sm:$0xff] %v1868
    %1897 = vst [vmem:[#allocation3 + $0x78] sm:$0xff] %v1803
    %1898 = vst [vmem:[#allocation3 + $0x80] sm:$0xff] %v1805
    %1899 = vst [vmem:[#allocation3 + $0x88] sm:$0xff] %v1871
    %1900 = vst [vmem:[#allocation3 + $0x90] sm:$0xff] %v1809
    %1901 = vst [vmem:[#allocation3 + $0x98] sm:$0xff] %v1811
    %1902 = vst [vmem:[#allocation3 + $0xa0] sm:$0xff] %v1876
    %1903 = vst [vmem:[#allocation3 + $0xa8] sm:$0xff] %v1813
    %1904 = vst [vmem:[#allocation3 + $0xb0] sm:$0xff] %v1815
    %1905 = vst [vmem:[#allocation3 + $0xb8] sm:$0xff] %v1879
    %v1906 = vld [vmem:[%s442] sm:$0xff]
    %v1907 = vld [vmem:[%s442 + $0x8] sm:$0xff]
    %v1908 = vld [vmem:[%s442 + $0x10] sm:$0xff]
    %v1941 = vunpack.c.l.b16 %v1529
    %v1942 = vunpack.c.h.b16 %v1529
    %v1943 = vunpack.c.l.b16 %v1530
    %v1944 = vunpack.c.l.b16 %v1531
    %v1945 = vunpack.c.h.b16 %v1531
    %v1946 = vunpack.c.l.b16 %v1532
    %v1947 = vunpack.c.l.b16 %v1533
    %v1948 = vunpack.c.h.b16 %v1533
    %v1949 = vunpack.c.l.b16 %v1534
    %v1950 = vunpack.c.l.b16 %v1535
    %v1951 = vunpack.c.h.b16 %v1535
    %v1952 = vunpack.c.l.b16 %v1536
    %v1953 = vunpack.c.l.b16 %v1537
    %v1954 = vunpack.c.h.b16 %v1537
    %v1955 = vunpack.c.l.b16 %v1538
    %v1956 = vunpack.c.l.b16 %v1539
    %v1957 = vunpack.c.h.b16 %v1539
    %v1958 = vunpack.c.l.b16 %v1540
    %v1959 = vunpack.c.l.b16 %v1541
    %v1960 = vunpack.c.h.b16 %v1541
    %v1961 = vunpack.c.l.b16 %v1542
    %v1962 = vunpack.c.l.b16 %v1543
    %v1963 = vunpack.c.h.b16 %v1543
    %v1964 = vunpack.c.l.b16 %v1544
    %v1965 = vunpack.c.l.b16 %v1545
    %v1966 = vunpack.c.h.b16 %v1545
    %v1967 = vunpack.c.l.b16 %v1546
    %v1968 = vunpack.c.l.b16 %v1547
    %v1969 = vunpack.c.h.b16 %v1547
    %v1970 = vunpack.c.l.b16 %v1548
    %v1971 = vunpack.c.l.b16 %v1549
    %v1972 = vunpack.c.h.b16 %v1549
    %v1973 = vunpack.c.l.b16 %v1550
    %v1974 = vunpack.c.l.b16 %v1551
    %v1975 = vunpack.c.h.b16 %v1551
    %v1976 = vunpack.c.l.b16 %v1552
    %v1977 = vunpack.c.l.b16 %v1553
    %v1978 = vunpack.c.h.b16 %v1553
    %v1979 = vunpack.c.l.b16 %v1554
    %v1980 = vunpack.c.l.b16 %v1555
    %v1981 = vunpack.c.h.b16 %v1555
    %v1982 = vunpack.c.l.b16 %v1556
    %v1983 = vunpack.c.l.b16 %v1557
    %v1984 = vunpack.c.h.b16 %v1557
    %v1985 = vunpack.c.l.b16 %v1558
    %v1986 = vunpack.c.l.b16 %v1559
    %v1987 = vunpack.c.h.b16 %v1559
    %v1988 = vunpack.c.l.b16 %v1560
    %v1989 = vpack.c.b16 %v1944, %v1941
    %v1990 = vpack.c.b16 %v1945, %v1942
    %v1991 = vpack.c.b16 %v1946, %v1943
    %v1992 = vpack.c.b16 %v1950, %v1947
    %v1993 = vpack.c.b16 %v1951, %v1948
    %v1994 = vpack.c.b16 %v1952, %v1949
    %v1995 = vpack.c.b16 %v1956, %v1953
    %v1996 = vpack.c.b16 %v1957, %v1954
    %v1997 = vpack.c.b16 %v1958, %v1955
    %v1998 = vpack.c.b16 %v1962, %v1959
    %v1999 = vpack.c.b16 %v1963, %v1960
    %v2000 = vpack.c.b16 %v1964, %v1961
    %v2001 = vpack.c.b16 %v1968, %v1965
    %v2002 = vpack.c.b16 %v1969, %v1966
    %v2003 = vpack.c.b16 %v1970, %v1967
    %v2004 = vpack.c.b16 %v1974, %v1971
    %v2005 = vpack.c.b16 %v1975, %v1972
    %v2006 = vpack.c.b16 %v1976, %v1973
    %v2007 = vpack.c.b16 %v1980, %v1977
    %v2008 = vpack.c.b16 %v1981, %v1978
    %v2009 = vpack.c.b16 %v1982, %v1979
    %v2010 = vpack.c.b16 %v1986, %v1983
    %v2011 = vpack.c.b16 %v1987, %v1984
    %v2012 = vpack.c.b16 %v1988, %v1985
    %2037 = vmatprep.subr.bf16.mxu0 %v2011
    %2038 = vmatpush1.bf16.msra.mxu0 %v2010
    %2039 = vmatprep.subr.bf16.mxu0 %v2008
    %2040 = vmatpush1.bf16.msra.mxu0 %v2007
    %2041 = vmatprep.subr.bf16.mxu0 %v2005
    %2042 = vmatpush1.bf16.msra.mxu0 %v2004
    %2043 = vmatprep.subr.bf16.mxu0 %v2002
    %2044 = vmatpush1.bf16.msra.mxu0 %v2001
    %2045 = vmatprep.subr.bf16.mxu0 %v1999
    %2046 = vmatpush1.bf16.msra.mxu0 %v1998
    %2047 = vmatprep.subr.bf16.mxu0 %v1996
    %2048 = vmatpush1.bf16.msra.mxu0 %v1995
    %2049 = vmatprep.subr.bf16.mxu0 %v1993
    %2050 = vmatpush1.bf16.msra.mxu0 %v1992
    %2051 = vmatprep.subr.bf16.mxu0 %v1990
    %2052 = vmatpush1.bf16.msra.mxu0 %v1989
    %2053 = vmatprep.subr.bf16.mxu0 0
    %2054 = vmatpush2.bf16.msra.mxu0 0
    %2055 = vmatprep.subr.bf16.mxu0 0
    %2056 = vmatpush2.bf16.msra.mxu0 0
    %2057 = vmatprep.subr.bf16.mxu0 0
    %2058 = vmatpush2.bf16.msra.mxu0 0
    %2059 = vmatprep.subr.bf16.mxu0 0
    %2060 = vmatpush2.bf16.msra.mxu0 0
    %2061 = vmatprep.subr.bf16.mxu0 0
    %2062 = vmatpush2.bf16.msra.mxu0 0
    %2063 = vmatprep.subr.bf16.mxu0 0
    %2064 = vmatpush2.bf16.msra.mxu0 0
    %2065 = vmatprep.subr.bf16.mxu0 0
    %2066 = vmatpush2.bf16.msra.mxu0 0
    %2067 = vmatprep.subr.bf16.mxu0 0
    %2068 = vmatpush2.bf16.msra.mxu0 0
    %2069 = vmatprep.mubr.bf16.mxu0 0
    %2070 = vmatmul.mubr.bf16.gmra.mxu0 0
    %v2071 = vpop.f32.mrf.mxu0
    %v2072 = vadd.f32 0.0, %v2071
    %v2073 = vpop.f32.mrf.mxu0
    %v2074 = vadd.f32 0.0, %v2073
    %v2075 = vpop.f32.mrf.mxu0
    %v2076 = vpop.f32.mrf.mxu0
    %2077 = vdwg.mxu0
    %2078 = vmatprep.subr.bf16.mxu0 0
    %2079 = vmatpush1.bf16.msra.mxu0 %v2012
    %2080 = vmatprep.subr.bf16.mxu0 0
    %2081 = vmatpush1.bf16.msra.mxu0 %v2009
    %2082 = vmatprep.subr.bf16.mxu0 0
    %2083 = vmatpush1.bf16.msra.mxu0 %v2006
    %2084 = vmatprep.subr.bf16.mxu0 0
    %2085 = vmatpush1.bf16.msra.mxu0 %v2003
    %2086 = vmatprep.subr.bf16.mxu0 0
    %2087 = vmatpush1.bf16.msra.mxu0 %v2000
    %2088 = vmatprep.subr.bf16.mxu0 0
    %2089 = vmatpush1.bf16.msra.mxu0 %v1997
    %2090 = vmatprep.subr.bf16.mxu0 0
    %2091 = vmatpush1.bf16.msra.mxu0 %v1994
    %2092 = vmatprep.subr.bf16.mxu0 0
    %2093 = vmatpush1.bf16.msra.mxu0 %v1991
    %2094 = vmatprep.subr.bf16.mxu0 0
    %2095 = vmatpush2.bf16.msra.mxu0 0
    %2096 = vmatprep.subr.bf16.mxu0 0
    %2097 = vmatpush2.bf16.msra.mxu0 0
    %2098 = vmatprep.subr.bf16.mxu0 0
    %2099 = vmatpush2.bf16.msra.mxu0 0
    %2100 = vmatprep.subr.bf16.mxu0 0
    %2101 = vmatpush2.bf16.msra.mxu0 0
    %2102 = vmatprep.subr.bf16.mxu0 0
    %2103 = vmatpush2.bf16.msra.mxu0 0
    %2104 = vmatprep.subr.bf16.mxu0 0
    %2105 = vmatpush2.bf16.msra.mxu0 0
    %2106 = vmatprep.subr.bf16.mxu0 0
    %2107 = vmatpush2.bf16.msra.mxu0 0
    %2108 = vmatprep.subr.bf16.mxu0 0
    %2109 = vmatpush2.bf16.msra.mxu0 0
    %2110 = vmatprep.mubr.bf16.mxu0 0
    %2111 = vmatmul.mubr.bf16.gmra.mxu0 0
    %v2112 = vpop.f32.mrf.mxu0
    %v2113 = vadd.f32 0.0, %v2112
    %v2114 = vpop.f32.mrf.mxu0
    %v2115 = vpop.f32.mrf.mxu0
    %v2116 = vpop.f32.mrf.mxu0
    %2117 = vdwg.mxu0
    %v2118 = vadd.f32 %v1906, %v2072
    %v2119 = vxor.u32 %v2118, 2147483648
    %v2120 = vmul.f32 %v2119, 1.442695
    %v2121 = vpow.pop %v2120
    %v2122 = vadd.f32 %v2121, 1.0
    %v2123 = vrcp.pop %v2122
    %v2124 = vmul.f32 1.0, %v2123
    %v2125 = vadd.f32 %v1907, %v2074
    %v2126 = vxor.u32 %v2125, 2147483648
    %v2127 = vmul.f32 %v2126, 1.442695
    %v2128 = vpow.pop %v2127
    %v2129 = vadd.f32 %v2128, 1.0
    %v2130 = vrcp.pop %v2129
    %v2131 = vmul.f32 1.0, %v2130
    %v2132 = vadd.f32 %v2113, %v1566
    %v2133 = vmul.f32 %v2124, %v2132
    %v2134 = vadd.f32 %v1908, %v2133
    %v2135 = vtanh.pop %v2134
    %v2136 = vsub.f32 1.0, %v2131
    %v2137 = vmul.f32 %v2136, %v2135
    %v2138 = vmul.f32 %v2131, 0.0
    %v2139 = vadd.f32 %v2137, %v2138
    %v2140 = vpack.c.bf16 %v2139, %v2139
    %2141 = vst [vmem:[%s682] sm:$0xf] %v2140
    %v2142 = vld [vmem:[%s686] sm:$0xff]
    %v2143 = vld [vmem:[%s686 + $0x8] sm:$0xff]
    %v2144 = vld [vmem:[%s686 + $0x10] sm:$0xff]
    %2145 = vmatprep.subr.bf16.mxu0 %v2011
    %2146 = vmatpush1.bf16.msra.mxu0 %v2010
    %2147 = vmatprep.subr.bf16.mxu0 %v2008
    %2148 = vmatpush1.bf16.msra.mxu0 %v2007
    %2149 = vmatprep.subr.bf16.mxu0 %v2005
    %2150 = vmatpush1.bf16.msra.mxu0 %v2004
    %2151 = vmatprep.subr.bf16.mxu0 %v2002
    %2152 = vmatpush1.bf16.msra.mxu0 %v2001
    %2153 = vmatprep.subr.bf16.mxu0 %v1999
    %2154 = vmatpush1.bf16.msra.mxu0 %v1998
    %2155 = vmatprep.subr.bf16.mxu0 %v1996
    %2156 = vmatpush1.bf16.msra.mxu0 %v1995
    %2157 = vmatprep.subr.bf16.mxu0 %v1993
    %2158 = vmatpush1.bf16.msra.mxu0 %v1992
    %2159 = vmatprep.subr.bf16.mxu0 %v1990
    %2160 = vmatpush1.bf16.msra.mxu0 %v1989
    %2161 = vmatprep.subr.bf16.mxu0 0
    %2162 = vmatpush2.bf16.msra.mxu0 0
    %2163 = vmatprep.subr.bf16.mxu0 0
    %2164 = vmatpush2.bf16.msra.mxu0 0
    %2165 = vmatprep.subr.bf16.mxu0 0
    %2166 = vmatpush2.bf16.msra.mxu0 0
    %2167 = vmatprep.subr.bf16.mxu0 0
    %2168 = vmatpush2.bf16.msra.mxu0 0
    %2169 = vmatprep.subr.bf16.mxu0 0
    %2170 = vmatpush2.bf16.msra.mxu0 0
    %2171 = vmatprep.subr.bf16.mxu0 0
    %2172 = vmatpush2.bf16.msra.mxu0 0
    %2173 = vmatprep.subr.bf16.mxu0 0
    %2174 = vmatpush2.bf16.msra.mxu0 0
    %2175 = vmatprep.subr.bf16.mxu0 0
    %2176 = vmatpush2.bf16.msra.mxu0 0
    %2177 = vmatprep.mubr.bf16.mxu0 0
    %2178 = vmatmul.mubr.bf16.gmra.mxu0 %v2140
    %v2179 = vpop.f32.mrf.mxu0
    %v2180 = vadd.f32 0.0, %v2179
    %v2181 = vpop.f32.mrf.mxu0
    %v2182 = vadd.f32 0.0, %v2181
    %v2183 = vpop.f32.mrf.mxu0
    %v2184 = vpop.f32.mrf.mxu0
    %2185 = vdwg.mxu0
    %2186 = vmatprep.subr.bf16.mxu0 0
    %2187 = vmatpush1.bf16.msra.mxu0 %v2012
    %2188 = vmatprep.subr.bf16.mxu0 0
    %2189 = vmatpush1.bf16.msra.mxu0 %v2009
    %2190 = vmatprep.subr.bf16.mxu0 0
    %2191 = vmatpush1.bf16.msra.mxu0 %v2006
    %2192 = vmatprep.subr.bf16.mxu0 0
    %2193 = vmatpush1.bf16.msra.mxu0 %v2003
    %2194 = vmatprep.subr.bf16.mxu0 0
    %2195 = vmatpush1.bf16.msra.mxu0 %v2000
    %2196 = vmatprep.subr.bf16.mxu0 0
    %2197 = vmatpush1.bf16.msra.mxu0 %v1997
    %2198 = vmatprep.subr.bf16.mxu0 0
    %2199 = vmatpush1.bf16.msra.mxu0 %v1994
    %2200 = vmatprep.subr.bf16.mxu0 0
    %2201 = vmatpush1.bf16.msra.mxu0 %v1991
    %2202 = vmatprep.subr.bf16.mxu0 0
    %2203 = vmatpush2.bf16.msra.mxu0 0
    %2204 = vmatprep.subr.bf16.mxu0 0
    %2205 = vmatpush2.bf16.msra.mxu0 0
    %2206 = vmatprep.subr.bf16.mxu0 0
    %2207 = vmatpush2.bf16.msra.mxu0 0
    %2208 = vmatprep.subr.bf16.mxu0 0
    %2209 = vmatpush2.bf16.msra.mxu0 0
    %2210 = vmatprep.subr.bf16.mxu0 0
    %2211 = vmatpush2.bf16.msra.mxu0 0
    %2212 = vmatprep.subr.bf16.mxu0 0
    %2213 = vmatpush2.bf16.msra.mxu0 0
    %2214 = vmatprep.subr.bf16.mxu0 0
    %2215 = vmatpush2.bf16.msra.mxu0 0
    %2216 = vmatprep.subr.bf16.mxu0 0
    %2217 = vmatpush2.bf16.msra.mxu0 0
    %2218 = vmatprep.mubr.bf16.mxu0 0
    %2219 = vmatmul.mubr.bf16.gmra.mxu0 %v2140
    %v2220 = vpop.f32.mrf.mxu0
    %v2221 = vadd.f32 0.0, %v2220
    %v2222 = vpop.f32.mrf.mxu0
    %v2223 = vpop.f32.mrf.mxu0
    %v2224 = vpop.f32.mrf.mxu0
    %2225 = vdwg.mxu0
    %v2226 = vadd.f32 %v2142, %v2180
    %v2227 = vxor.u32 %v2226, 2147483648
    %v2228 = vmul.f32 %v2227, 1.442695
    %v2229 = vpow.pop %v2228
    %v2230 = vadd.f32 %v2229, 1.0
    %v2231 = vrcp.pop %v2230
    %v2232 = vmul.f32 1.0, %v2231
    %v2233 = vadd.f32 %v2143, %v2182
    %v2234 = vxor.u32 %v2233, 2147483648
    %v2235 = vmul.f32 %v2234, 1.442695
    %v2236 = vpow.pop %v2235
    %v2237 = vadd.f32 %v2236, 1.0
    %v2238 = vrcp.pop %v2237
    %v2239 = vmul.f32 1.0, %v2238
    %v2240 = vadd.f32 %v2221, %v1566
    %v2241 = vmul.f32 %v2232, %v2240
    %v2242 = vadd.f32 %v2144, %v2241
    %v2243 = vtanh.pop %v2242
    %v2244 = vsub.f32 1.0, %v2239
    %v2245 = vmul.f32 %v2244, %v2243
    %v2246 = vmul.f32 %v2239, %v2139
    %v2247 = vadd.f32 %v2245, %v2246
    %v2248 = vpack.c.bf16 %v2247, %v2247
    %2249 = vst [vmem:[%s798] sm:$0xf] %v2248
    %v2250 = vld [vmem:[%s802] sm:$0xff]
    %v2251 = vld [vmem:[%s802 + $0x8] sm:$0xff]
    %v2252 = vld [vmem:[%s802 + $0x10] sm:$0xff]
    %2253 = vmatprep.subr.bf16.mxu0 %v2011
    %2254 = vmatpush1.bf16.msra.mxu0 %v2010
    %2255 = vmatprep.subr.bf16.mxu0 %v2008
    %2256 = vmatpush1.bf16.msra.mxu0 %v2007
    %2257 = vmatprep.subr.bf16.mxu0 %v2005
    %2258 = vmatpush1.bf16.msra.mxu0 %v2004
    %2259 = vmatprep.subr.bf16.mxu0 %v2002
    %2260 = vmatpush1.bf16.msra.mxu0 %v2001
    %2261 = vmatprep.subr.bf16.mxu0 %v1999
    %2262 = vmatpush1.bf16.msra.mxu0 %v1998
    %2263 = vmatprep.subr.bf16.mxu0 %v1996
    %2264 = vmatpush1.bf16.msra.mxu0 %v1995
    %2265 = vmatprep.subr.bf16.mxu0 %v1993
    %2266 = vmatpush1.bf16.msra.mxu0 %v1992
    %2267 = vmatprep.subr.bf16.mxu0 %v1990
    %2268 = vmatpush1.bf16.msra.mxu0 %v1989
    %2269 = vmatprep.subr.bf16.mxu0 0
    %2270 = vmatpush2.bf16.msra.mxu0 0
    %2271 = vmatprep.subr.bf16.mxu0 0
    %2272 = vmatpush2.bf16.msra.mxu0 0
    %2273 = vmatprep.subr.bf16.mxu0 0
    %2274 = vmatpush2.bf16.msra.mxu0 0
    %2275 = vmatprep.subr.bf16.mxu0 0
    %2276 = vmatpush2.bf16.msra.mxu0 0
    %2277 = vmatprep.subr.bf16.mxu0 0
    %2278 = vmatpush2.bf16.msra.mxu0 0
    %2279 = vmatprep.subr.bf16.mxu0 0
    %2280 = vmatpush2.bf16.msra.mxu0 0
    %2281 = vmatprep.subr.bf16.mxu0 0
    %2282 = vmatpush2.bf16.msra.mxu0 0
    %2283 = vmatprep.subr.bf16.mxu0 0
    %2284 = vmatpush2.bf16.msra.mxu0 0
    %2285 = vmatprep.mubr.bf16.mxu0 0
    %2286 = vmatmul.mubr.bf16.gmra.mxu0 %v2248
    %v2287 = vpop.f32.mrf.mxu0
    %v2288 = vadd.f32 0.0, %v2287
    %v2289 = vpop.f32.mrf.mxu0
    %v2290 = vadd.f32 0.0, %v2289
    %v2291 = vpop.f32.mrf.mxu0
    %v2292 = vpop.f32.mrf.mxu0
    %2293 = vdwg.mxu0
    %2294 = vmatprep.subr.bf16.mxu0 0
    %2295 = vmatpush1.bf16.msra.mxu0 %v2012
    %2296 = vmatprep.subr.bf16.mxu0 0
    %2297 = vmatpush1.bf16.msra.mxu0 %v2009
    %2298 = vmatprep.subr.bf16.mxu0 0
    %2299 = vmatpush1.bf16.msra.mxu0 %v2006
    %2300 = vmatprep.subr.bf16.mxu0 0
    %2301 = vmatpush1.bf16.msra.mxu0 %v2003
    %2302 = vmatprep.subr.bf16.mxu0 0
    %2303 = vmatpush1.bf16.msra.mxu0 %v2000
    %2304 = vmatprep.subr.bf16.mxu0 0
    %2305 = vmatpush1.bf16.msra.mxu0 %v1997
    %2306 = vmatprep.subr.bf16.mxu0 0
    %2307 = vmatpush1.bf16.msra.mxu0 %v1994
    %2308 = vmatprep.subr.bf16.mxu0 0
    %2309 = vmatpush1.bf16.msra.mxu0 %v1991
    %2310 = vmatprep.subr.bf16.mxu0 0
    %2311 = vmatpush2.bf16.msra.mxu0 0
    %2312 = vmatprep.subr.bf16.mxu0 0
    %2313 = vmatpush2.bf16.msra.mxu0 0
    %2314 = vmatprep.subr.bf16.mxu0 0
    %2315 = vmatpush2.bf16.msra.mxu0 0
    %2316 = vmatprep.subr.bf16.mxu0 0
    %2317 = vmatpush2.bf16.msra.mxu0 0
    %2318 = vmatprep.subr.bf16.mxu0 0
    %2319 = vmatpush2.bf16.msra.mxu0 0
    %2320 = vmatprep.subr.bf16.mxu0 0
    %2321 = vmatpush2.bf16.msra.mxu0 0
    %2322 = vmatprep.subr.bf16.mxu0 0
    %2323 = vmatpush2.bf16.msra.mxu0 0
    %2324 = vmatprep.subr.bf16.mxu0 0
    %2325 = vmatpush2.bf16.msra.mxu0 0
    %2326 = vmatprep.mubr.bf16.mxu0 0
    %2327 = vmatmul.mubr.bf16.gmra.mxu0 %v2248
    %v2328 = vpop.f32.mrf.mxu0
    %v2329 = vadd.f32 0.0, %v2328
    %v2330 = vpop.f32.mrf.mxu0
    %v2331 = vpop.f32.mrf.mxu0
    %v2332 = vpop.f32.mrf.mxu0
    %2333 = vdwg.mxu0
    %v2334 = vadd.f32 %v2250, %v2288
    %v2335 = vxor.u32 %v2334, 2147483648
    %v2336 = vmul.f32 %v2335, 1.442695
    %v2337 = vpow.pop %v2336
    %v2338 = vadd.f32 %v2337, 1.0
    %v2339 = vrcp.pop %v2338
    %v2340 = vmul.f32 1.0, %v2339
    %v2341 = vadd.f32 %v2251, %v2290
    %v2342 = vxor.u32 %v2341, 2147483648
    %v2343 = vmul.f32 %v2342, 1.442695
    %v2344 = vpow.pop %v2343
    %v2345 = vadd.f32 %v2344, 1.0
    %v2346 = vrcp.pop %v2345
    %v2347 = vmul.f32 1.0, %v2346
    %v2348 = vadd.f32 %v2329, %v1566
    %v2349 = vmul.f32 %v2340, %v2348
    %v2350 = vadd.f32 %v2252, %v2349
    %v2351 = vtanh.pop %v2350
    %v2352 = vsub.f32 1.0, %v2347
    %v2353 = vmul.f32 %v2352, %v2351
    %v2354 = vmul.f32 %v2347, %v2247
    %v2355 = vadd.f32 %v2353, %v2354
    %v2356 = vpack.c.bf16 %v2355, %v2355
    %2357 = vst [vmem:[%s914] sm:$0xf] %v2356
    %v2358 = vld [vmem:[%s918] sm:$0xff]
    %v2359 = vld [vmem:[%s918 + $0x8] sm:$0xff]
    %v2360 = vld [vmem:[%s918 + $0x10] sm:$0xff]
    %2361 = vmatprep.subr.bf16.mxu0 %v2011
    %2362 = vmatpush1.bf16.msra.mxu0 %v2010
    %2363 = vmatprep.subr.bf16.mxu0 %v2008
    %2364 = vmatpush1.bf16.msra.mxu0 %v2007
    %2365 = vmatprep.subr.bf16.mxu0 %v2005
    %2366 = vmatpush1.bf16.msra.mxu0 %v2004
    %2367 = vmatprep.subr.bf16.mxu0 %v2002
    %2368 = vmatpush1.bf16.msra.mxu0 %v2001
    %2369 = vmatprep.subr.bf16.mxu0 %v1999
    %2370 = vmatpush1.bf16.msra.mxu0 %v1998
    %2371 = vmatprep.subr.bf16.mxu0 %v1996
    %2372 = vmatpush1.bf16.msra.mxu0 %v1995
    %2373 = vmatprep.subr.bf16.mxu0 %v1993
    %2374 = vmatpush1.bf16.msra.mxu0 %v1992
    %2375 = vmatprep.subr.bf16.mxu0 %v1990
    %2376 = vmatpush1.bf16.msra.mxu0 %v1989
    %2377 = vmatprep.subr.bf16.mxu0 0
    %2378 = vmatpush2.bf16.msra.mxu0 0
    %2379 = vmatprep.subr.bf16.mxu0 0
    %2380 = vmatpush2.bf16.msra.mxu0 0
    %2381 = vmatprep.subr.bf16.mxu0 0
    %2382 = vmatpush2.bf16.msra.mxu0 0
    %2383 = vmatprep.subr.bf16.mxu0 0
    %2384 = vmatpush2.bf16.msra.mxu0 0
    %2385 = vmatprep.subr.bf16.mxu0 0
    %2386 = vmatpush2.bf16.msra.mxu0 0
    %2387 = vmatprep.subr.bf16.mxu0 0
    %2388 = vmatpush2.bf16.msra.mxu0 0
    %2389 = vmatprep.subr.bf16.mxu0 0
    %2390 = vmatpush2.bf16.msra.mxu0 0
    %2391 = vmatprep.subr.bf16.mxu0 0
    %2392 = vmatpush2.bf16.msra.mxu0 0
    %2393 = vmatprep.mubr.bf16.mxu0 0
    %2394 = vmatmul.mubr.bf16.gmra.mxu0 %v2356
    %v2395 = vpop.f32.mrf.mxu0
    %v2396 = vadd.f32 0.0, %v2395
    %v2397 = vpop.f32.mrf.mxu0
    %v2398 = vadd.f32 0.0, %v2397
    %v2399 = vpop.f32.mrf.mxu0
    %v2400 = vpop.f32.mrf.mxu0
    %2401 = vdwg.mxu0
    %2402 = vmatprep.subr.bf16.mxu0 0
    %2403 = vmatpush1.bf16.msra.mxu0 %v2012
    %2404 = vmatprep.subr.bf16.mxu0 0
    %2405 = vmatpush1.bf16.msra.mxu0 %v2009
    %2406 = vmatprep.subr.bf16.mxu0 0
    %2407 = vmatpush1.bf16.msra.mxu0 %v2006
    %2408 = vmatprep.subr.bf16.mxu0 0
    %2409 = vmatpush1.bf16.msra.mxu0 %v2003
    %2410 = vmatprep.subr.bf16.mxu0 0
    %2411 = vmatpush1.bf16.msra.mxu0 %v2000
    %2412 = vmatprep.subr.bf16.mxu0 0
    %2413 = vmatpush1.bf16.msra.mxu0 %v1997
    %2414 = vmatprep.subr.bf16.mxu0 0
    %2415 = vmatpush1.bf16.msra.mxu0 %v1994
    %2416 = vmatprep.subr.bf16.mxu0 0
    %2417 = vmatpush1.bf16.msra.mxu0 %v1991
    %2418 = vmatprep.subr.bf16.mxu0 0
    %2419 = vmatpush2.bf16.msra.mxu0 0
    %2420 = vmatprep.subr.bf16.mxu0 0
    %2421 = vmatpush2.bf16.msra.mxu0 0
    %2422 = vmatprep.subr.bf16.mxu0 0
    %2423 = vmatpush2.bf16.msra.mxu0 0
    %2424 = vmatprep.subr.bf16.mxu0 0
    %2425 = vmatpush2.bf16.msra.mxu0 0
    %2426 = vmatprep.subr.bf16.mxu0 0
    %2427 = vmatpush2.bf16.msra.mxu0 0
    %2428 = vmatprep.subr.bf16.mxu0 0
    %2429 = vmatpush2.bf16.msra.mxu0 0
    %2430 = vmatprep.subr.bf16.mxu0 0
    %2431 = vmatpush2.bf16.msra.mxu0 0
    %2432 = vmatprep.subr.bf16.mxu0 0
    %2433 = vmatpush2.bf16.msra.mxu0 0
    %2434 = vmatprep.mubr.bf16.mxu0 0
    %2435 = vmatmul.mubr.bf16.gmra.mxu0 %v2356
    %v2436 = vpop.f32.mrf.mxu0
    %v2437 = vadd.f32 0.0, %v2436
    %v2438 = vpop.f32.mrf.mxu0
    %v2439 = vpop.f32.mrf.mxu0
    %v2440 = vpop.f32.mrf.mxu0
    %2441 = vdwg.mxu0
    %v2442 = vadd.f32 %v2358, %v2396
    %v2443 = vxor.u32 %v2442, 2147483648
    %v2444 = vmul.f32 %v2443, 1.442695
    %v2445 = vpow.pop %v2444
    %v2446 = vadd.f32 %v2445, 1.0
    %v2447 = vrcp.pop %v2446
    %v2448 = vmul.f32 1.0, %v2447
    %v2449 = vadd.f32 %v2359, %v2398
    %v2450 = vxor.u32 %v2449, 2147483648
    %v2451 = vmul.f32 %v2450, 1.442695
    %v2452 = vpow.pop %v2451
    %v2453 = vadd.f32 %v2452, 1.0
    %v2454 = vrcp.pop %v2453
    %v2455 = vmul.f32 1.0, %v2454
    %v2456 = vadd.f32 %v2437, %v1566
    %v2457 = vmul.f32 %v2448, %v2456
    %v2458 = vadd.f32 %v2360, %v2457
    %v2459 = vtanh.pop %v2458
    %v2460 = vsub.f32 1.0, %v2455
    %v2461 = vmul.f32 %v2460, %v2459
    %v2462 = vmul.f32 %v2455, %v2355
    %v2463 = vadd.f32 %v2461, %v2462
    %v2464 = vpack.c.bf16 %v2463, %v2463
    %2465 = vst [vmem:[%s1030] sm:$0xf] %v2464
    %v2466 = vld [vmem:[%s1034] sm:$0xff]
    %v2467 = vld [vmem:[%s1034 + $0x8] sm:$0xff]
    %v2468 = vld [vmem:[%s1034 + $0x10] sm:$0xff]
    %2469 = vmatprep.subr.bf16.mxu0 %v2011
    %2470 = vmatpush1.bf16.msra.mxu0 %v2010
    %2471 = vmatprep.subr.bf16.mxu0 %v2008
    %2472 = vmatpush1.bf16.msra.mxu0 %v2007
    %2473 = vmatprep.subr.bf16.mxu0 %v2005
    %2474 = vmatpush1.bf16.msra.mxu0 %v2004
    %2475 = vmatprep.subr.bf16.mxu0 %v2002
    %2476 = vmatpush1.bf16.msra.mxu0 %v2001
    %2477 = vmatprep.subr.bf16.mxu0 %v1999
    %2478 = vmatpush1.bf16.msra.mxu0 %v1998
    %2479 = vmatprep.subr.bf16.mxu0 %v1996
    %2480 = vmatpush1.bf16.msra.mxu0 %v1995
    %2481 = vmatprep.subr.bf16.mxu0 %v1993
    %2482 = vmatpush1.bf16.msra.mxu0 %v1992
    %2483 = vmatprep.subr.bf16.mxu0 %v1990
    %2484 = vmatpush1.bf16.msra.mxu0 %v1989
    %2485 = vmatprep.subr.bf16.mxu0 0
    %2486 = vmatpush2.bf16.msra.mxu0 0
    %2487 = vmatprep.subr.bf16.mxu0 0
    %2488 = vmatpush2.bf16.msra.mxu0 0
    %2489 = vmatprep.subr.bf16.mxu0 0
    %2490 = vmatpush2.bf16.msra.mxu0 0
    %2491 = vmatprep.subr.bf16.mxu0 0
    %2492 = vmatpush2.bf16.msra.mxu0 0
    %2493 = vmatprep.subr.bf16.mxu0 0
    %2494 = vmatpush2.bf16.msra.mxu0 0
    %2495 = vmatprep.subr.bf16.mxu0 0
    %2496 = vmatpush2.bf16.msra.mxu0 0
    %2497 = vmatprep.subr.bf16.mxu0 0
    %2498 = vmatpush2.bf16.msra.mxu0 0
    %2499 = vmatprep.subr.bf16.mxu0 0
    %2500 = vmatpush2.bf16.msra.mxu0 0
    %2501 = vmatprep.mubr.bf16.mxu0 0
    %2502 = vmatmul.mubr.bf16.gmra.mxu0 %v2464
    %v2503 = vpop.f32.mrf.mxu0
    %v2504 = vadd.f32 0.0, %v2503
    %v2505 = vpop.f32.mrf.mxu0
    %v2506 = vadd.f32 0.0, %v2505
    %v2507 = vpop.f32.mrf.mxu0
    %v2508 = vpop.f32.mrf.mxu0
    %2509 = vdwg.mxu0
    %2510 = vmatprep.subr.bf16.mxu0 0
    %2511 = vmatpush1.bf16.msra.mxu0 %v2012
    %2512 = vmatprep.subr.bf16.mxu0 0
    %2513 = vmatpush1.bf16.msra.mxu0 %v2009
    %2514 = vmatprep.subr.bf16.mxu0 0
    %2515 = vmatpush1.bf16.msra.mxu0 %v2006
    %2516 = vmatprep.subr.bf16.mxu0 0
    %2517 = vmatpush1.bf16.msra.mxu0 %v2003
    %2518 = vmatprep.subr.bf16.mxu0 0
    %2519 = vmatpush1.bf16.msra.mxu0 %v2000
    %2520 = vmatprep.subr.bf16.mxu0 0
    %2521 = vmatpush1.bf16.msra.mxu0 %v1997
    %2522 = vmatprep.subr.bf16.mxu0 0
    %2523 = vmatpush1.bf16.msra.mxu0 %v1994
    %2524 = vmatprep.subr.bf16.mxu0 0
    %2525 = vmatpush1.bf16.msra.mxu0 %v1991
    %2526 = vmatprep.subr.bf16.mxu0 0
    %2527 = vmatpush2.bf16.msra.mxu0 0
    %2528 = vmatprep.subr.bf16.mxu0 0
    %2529 = vmatpush2.bf16.msra.mxu0 0
    %2530 = vmatprep.subr.bf16.mxu0 0
    %2531 = vmatpush2.bf16.msra.mxu0 0
    %2532 = vmatprep.subr.bf16.mxu0 0
    %2533 = vmatpush2.bf16.msra.mxu0 0
    %2534 = vmatprep.subr.bf16.mxu0 0
    %2535 = vmatpush2.bf16.msra.mxu0 0
    %2536 = vmatprep.subr.bf16.mxu0 0
    %2537 = vmatpush2.bf16.msra.mxu0 0
    %2538 = vmatprep.subr.bf16.mxu0 0
    %2539 = vmatpush2.bf16.msra.mxu0 0
    %2540 = vmatprep.subr.bf16.mxu0 0
    %2541 = vmatpush2.bf16.msra.mxu0 0
    %2542 = vmatprep.mubr.bf16.mxu0 0
    %2543 = vmatmul.mubr.bf16.gmra.mxu0 %v2464
    %v2544 = vpop.f32.mrf.mxu0
    %v2545 = vadd.f32 0.0, %v2544
    %v2546 = vpop.f32.mrf.mxu0
    %v2547 = vpop.f32.mrf.mxu0
    %v2548 = vpop.f32.mrf.mxu0
    %2549 = vdwg.mxu0
    %v2550 = vadd.f32 %v2466, %v2504
    %v2551 = vxor.u32 %v2550, 2147483648
    %v2552 = vmul.f32 %v2551, 1.442695
    %v2553 = vpow.pop %v2552
    %v2554 = vadd.f32 %v2553, 1.0
    %v2555 = vrcp.pop %v2554
    %v2556 = vmul.f32 1.0, %v2555
    %v2557 = vadd.f32 %v2467, %v2506
    %v2558 = vxor.u32 %v2557, 2147483648
    %v2559 = vmul.f32 %v2558, 1.442695
    %v2560 = vpow.pop %v2559
    %v2561 = vadd.f32 %v2560, 1.0
    %v2562 = vrcp.pop %v2561
    %v2563 = vmul.f32 1.0, %v2562
    %v2564 = vadd.f32 %v2545, %v1566
    %v2565 = vmul.f32 %v2556, %v2564
    %v2566 = vadd.f32 %v2468, %v2565
    %v2567 = vtanh.pop %v2566
    %v2568 = vsub.f32 1.0, %v2563
    %v2569 = vmul.f32 %v2568, %v2567
    %v2570 = vmul.f32 %v2563, %v2463
    %v2571 = vadd.f32 %v2569, %v2570
    %v2572 = vpack.c.bf16 %v2571, %v2571
    %2573 = vst [vmem:[%s1146] sm:$0xf] %v2572
    %v2574 = vld [vmem:[%s1150] sm:$0xff]
    %v2575 = vld [vmem:[%s1150 + $0x8] sm:$0xff]
    %v2576 = vld [vmem:[%s1150 + $0x10] sm:$0xff]
    %2577 = vmatprep.subr.bf16.mxu0 %v2011
    %2578 = vmatpush1.bf16.msra.mxu0 %v2010
    %2579 = vmatprep.subr.bf16.mxu0 %v2008
    %2580 = vmatpush1.bf16.msra.mxu0 %v2007
    %2581 = vmatprep.subr.bf16.mxu0 %v2005
    %2582 = vmatpush1.bf16.msra.mxu0 %v2004
    %2583 = vmatprep.subr.bf16.mxu0 %v2002
    %2584 = vmatpush1.bf16.msra.mxu0 %v2001
    %2585 = vmatprep.subr.bf16.mxu0 %v1999
    %2586 = vmatpush1.bf16.msra.mxu0 %v1998
    %2587 = vmatprep.subr.bf16.mxu0 %v1996
    %2588 = vmatpush1.bf16.msra.mxu0 %v1995
    %2589 = vmatprep.subr.bf16.mxu0 %v1993
    %2590 = vmatpush1.bf16.msra.mxu0 %v1992
    %2591 = vmatprep.subr.bf16.mxu0 %v1990
    %2592 = vmatpush1.bf16.msra.mxu0 %v1989
    %2593 = vmatprep.subr.bf16.mxu0 0
    %2594 = vmatpush2.bf16.msra.mxu0 0
    %2595 = vmatprep.subr.bf16.mxu0 0
    %2596 = vmatpush2.bf16.msra.mxu0 0
    %2597 = vmatprep.subr.bf16.mxu0 0
    %2598 = vmatpush2.bf16.msra.mxu0 0
    %2599 = vmatprep.subr.bf16.mxu0 0
    %2600 = vmatpush2.bf16.msra.mxu0 0
    %2601 = vmatprep.subr.bf16.mxu0 0
    %2602 = vmatpush2.bf16.msra.mxu0 0
    %2603 = vmatprep.subr.bf16.mxu0 0
    %2604 = vmatpush2.bf16.msra.mxu0 0
    %2605 = vmatprep.subr.bf16.mxu0 0
    %2606 = vmatpush2.bf16.msra.mxu0 0
    %2607 = vmatprep.subr.bf16.mxu0 0
    %2608 = vmatpush2.bf16.msra.mxu0 0
    %2609 = vmatprep.mubr.bf16.mxu0 0
    %2610 = vmatmul.mubr.bf16.gmra.mxu0 %v2572
    %v2611 = vpop.f32.mrf.mxu0
    %v2612 = vadd.f32 0.0, %v2611
    %v2613 = vpop.f32.mrf.mxu0
    %v2614 = vadd.f32 0.0, %v2613
    %v2615 = vpop.f32.mrf.mxu0
    %v2616 = vpop.f32.mrf.mxu0
    %2617 = vdwg.mxu0
    %2618 = vmatprep.subr.bf16.mxu0 0
    %2619 = vmatpush1.bf16.msra.mxu0 %v2012
    %2620 = vmatprep.subr.bf16.mxu0 0
    %2621 = vmatpush1.bf16.msra.mxu0 %v2009
    %2622 = vmatprep.subr.bf16.mxu0 0
    %2623 = vmatpush1.bf16.msra.mxu0 %v2006
    %2624 = vmatprep.subr.bf16.mxu0 0
    %2625 = vmatpush1.bf16.msra.mxu0 %v2003
    %2626 = vmatprep.subr.bf16.mxu0 0
    %2627 = vmatpush1.bf16.msra.mxu0 %v2000
    %2628 = vmatprep.subr.bf16.mxu0 0
    %2629 = vmatpush1.bf16.msra.mxu0 %v1997
    %2630 = vmatprep.subr.bf16.mxu0 0
    %2631 = vmatpush1.bf16.msra.mxu0 %v1994
    %2632 = vmatprep.subr.bf16.mxu0 0
    %2633 = vmatpush1.bf16.msra.mxu0 %v1991
    %2634 = vmatprep.subr.bf16.mxu0 0
    %2635 = vmatpush2.bf16.msra.mxu0 0
    %2636 = vmatprep.subr.bf16.mxu0 0
    %2637 = vmatpush2.bf16.msra.mxu0 0
    %2638 = vmatprep.subr.bf16.mxu0 0
    %2639 = vmatpush2.bf16.msra.mxu0 0
    %2640 = vmatprep.subr.bf16.mxu0 0
    %2641 = vmatpush2.bf16.msra.mxu0 0
    %2642 = vmatprep.subr.bf16.mxu0 0
    %2643 = vmatpush2.bf16.msra.mxu0 0
    %2644 = vmatprep.subr.bf16.mxu0 0
    %2645 = vmatpush2.bf16.msra.mxu0 0
    %2646 = vmatprep.subr.bf16.mxu0 0
    %2647 = vmatpush2.bf16.msra.mxu0 0
    %2648 = vmatprep.subr.bf16.mxu0 0
    %2649 = vmatpush2.bf16.msra.mxu0 0
    %2650 = vmatprep.mubr.bf16.mxu0 0
    %2651 = vmatmul.mubr.bf16.gmra.mxu0 %v2572
    %v2652 = vpop.f32.mrf.mxu0
    %v2653 = vadd.f32 0.0, %v2652
    %v2654 = vpop.f32.mrf.mxu0
    %v2655 = vpop.f32.mrf.mxu0
    %v2656 = vpop.f32.mrf.mxu0
    %2657 = vdwg.mxu0
    %v2658 = vadd.f32 %v2574, %v2612
    %v2659 = vxor.u32 %v2658, 2147483648
    %v2660 = vmul.f32 %v2659, 1.442695
    %v2661 = vpow.pop %v2660
    %v2662 = vadd.f32 %v2661, 1.0
    %v2663 = vrcp.pop %v2662
    %v2664 = vmul.f32 1.0, %v2663
    %v2665 = vadd.f32 %v2575, %v2614
    %v2666 = vxor.u32 %v2665, 2147483648
    %v2667 = vmul.f32 %v2666, 1.442695
    %v2668 = vpow.pop %v2667
    %v2669 = vadd.f32 %v2668, 1.0
    %v2670 = vrcp.pop %v2669
    %v2671 = vmul.f32 1.0, %v2670
    %v2672 = vadd.f32 %v2653, %v1566
    %v2673 = vmul.f32 %v2664, %v2672
    %v2674 = vadd.f32 %v2576, %v2673
    %v2675 = vtanh.pop %v2674
    %v2676 = vsub.f32 1.0, %v2671
    %v2677 = vmul.f32 %v2676, %v2675
    %v2678 = vmul.f32 %v2671, %v2571
    %v2679 = vadd.f32 %v2677, %v2678
    %v2680 = vpack.c.bf16 %v2679, %v2679
    %2681 = vst [vmem:[%s1262] sm:$0xf] %v2680
    %v2682 = vld [vmem:[%s1266] sm:$0xff]
    %v2683 = vld [vmem:[%s1266 + $0x8] sm:$0xff]
    %v2684 = vld [vmem:[%s1266 + $0x10] sm:$0xff]
    %2685 = vmatprep.subr.bf16.mxu0 %v2011
    %2686 = vmatpush1.bf16.msra.mxu0 %v2010
    %2687 = vmatprep.subr.bf16.mxu0 %v2008
    %2688 = vmatpush1.bf16.msra.mxu0 %v2007
    %2689 = vmatprep.subr.bf16.mxu0 %v2005
    %2690 = vmatpush1.bf16.msra.mxu0 %v2004
    %2691 = vmatprep.subr.bf16.mxu0 %v2002
    %2692 = vmatpush1.bf16.msra.mxu0 %v2001
    %2693 = vmatprep.subr.bf16.mxu0 %v1999
    %2694 = vmatpush1.bf16.msra.mxu0 %v1998
    %2695 = vmatprep.subr.bf16.mxu0 %v1996
    %2696 = vmatpush1.bf16.msra.mxu0 %v1995
    %2697 = vmatprep.subr.bf16.mxu0 %v1993
    %2698 = vmatpush1.bf16.msra.mxu0 %v1992
    %2699 = vmatprep.subr.bf16.mxu0 %v1990
    %2700 = vmatpush1.bf16.msra.mxu0 %v1989
    %2701 = vmatprep.subr.bf16.mxu0 0
    %2702 = vmatpush2.bf16.msra.mxu0 0
    %2703 = vmatprep.subr.bf16.mxu0 0
    %2704 = vmatpush2.bf16.msra.mxu0 0
    %2705 = vmatprep.subr.bf16.mxu0 0
    %2706 = vmatpush2.bf16.msra.mxu0 0
    %2707 = vmatprep.subr.bf16.mxu0 0
    %2708 = vmatpush2.bf16.msra.mxu0 0
    %2709 = vmatprep.subr.bf16.mxu0 0
    %2710 = vmatpush2.bf16.msra.mxu0 0
    %2711 = vmatprep.subr.bf16.mxu0 0
    %2712 = vmatpush2.bf16.msra.mxu0 0
    %2713 = vmatprep.subr.bf16.mxu0 0
    %2714 = vmatpush2.bf16.msra.mxu0 0
    %2715 = vmatprep.subr.bf16.mxu0 0
    %2716 = vmatpush2.bf16.msra.mxu0 0
    %2717 = vmatprep.mubr.bf16.mxu0 0
    %2718 = vmatmul.mubr.bf16.gmra.mxu0 %v2680
    %v2719 = vpop.f32.mrf.mxu0
    %v2720 = vadd.f32 0.0, %v2719
    %v2721 = vpop.f32.mrf.mxu0
    %v2722 = vadd.f32 0.0, %v2721
    %v2723 = vpop.f32.mrf.mxu0
    %v2724 = vpop.f32.mrf.mxu0
    %2725 = vdwg.mxu0
    %2726 = vmatprep.subr.bf16.mxu0 0
    %2727 = vmatpush1.bf16.msra.mxu0 %v2012
    %2728 = vmatprep.subr.bf16.mxu0 0
    %2729 = vmatpush1.bf16.msra.mxu0 %v2009
    %2730 = vmatprep.subr.bf16.mxu0 0
    %2731 = vmatpush1.bf16.msra.mxu0 %v2006
    %2732 = vmatprep.subr.bf16.mxu0 0
    %2733 = vmatpush1.bf16.msra.mxu0 %v2003
    %2734 = vmatprep.subr.bf16.mxu0 0
    %2735 = vmatpush1.bf16.msra.mxu0 %v2000
    %2736 = vmatprep.subr.bf16.mxu0 0
    %2737 = vmatpush1.bf16.msra.mxu0 %v1997
    %2738 = vmatprep.subr.bf16.mxu0 0
    %2739 = vmatpush1.bf16.msra.mxu0 %v1994
    %2740 = vmatprep.subr.bf16.mxu0 0
    %2741 = vmatpush1.bf16.msra.mxu0 %v1991
    %2742 = vmatprep.subr.bf16.mxu0 0
    %2743 = vmatpush2.bf16.msra.mxu0 0
    %2744 = vmatprep.subr.bf16.mxu0 0
    %2745 = vmatpush2.bf16.msra.mxu0 0
    %2746 = vmatprep.subr.bf16.mxu0 0
    %2747 = vmatpush2.bf16.msra.mxu0 0
    %2748 = vmatprep.subr.bf16.mxu0 0
    %2749 = vmatpush2.bf16.msra.mxu0 0
    %2750 = vmatprep.subr.bf16.mxu0 0
    %2751 = vmatpush2.bf16.msra.mxu0 0
    %2752 = vmatprep.subr.bf16.mxu0 0
    %2753 = vmatpush2.bf16.msra.mxu0 0
    %2754 = vmatprep.subr.bf16.mxu0 0
    %2755 = vmatpush2.bf16.msra.mxu0 0
    %2756 = vmatprep.subr.bf16.mxu0 0
    %2757 = vmatpush2.bf16.msra.mxu0 0
    %2758 = vmatprep.mubr.bf16.mxu0 0
    %2759 = vmatmul.mubr.bf16.gmra.mxu0 %v2680
    %v2760 = vpop.f32.mrf.mxu0
    %v2761 = vadd.f32 0.0, %v2760
    %v2762 = vpop.f32.mrf.mxu0
    %v2763 = vpop.f32.mrf.mxu0
    %v2764 = vpop.f32.mrf.mxu0
    %2765 = vdwg.mxu0
    %v2766 = vadd.f32 %v2682, %v2720
    %v2767 = vxor.u32 %v2766, 2147483648
    %v2768 = vmul.f32 %v2767, 1.442695
    %v2769 = vpow.pop %v2768
    %v2770 = vadd.f32 %v2769, 1.0
    %v2771 = vrcp.pop %v2770
    %v2772 = vmul.f32 1.0, %v2771
    %v2773 = vadd.f32 %v2683, %v2722
    %v2774 = vxor.u32 %v2773, 2147483648
    %v2775 = vmul.f32 %v2774, 1.442695
    %v2776 = vpow.pop %v2775
    %v2777 = vadd.f32 %v2776, 1.0
    %v2778 = vrcp.pop %v2777
    %v2779 = vmul.f32 1.0, %v2778
    %v2780 = vadd.f32 %v2761, %v1566
    %v2781 = vmul.f32 %v2772, %v2780
    %v2782 = vadd.f32 %v2684, %v2781
    %v2783 = vtanh.pop %v2782
    %v2784 = vsub.f32 1.0, %v2779
    %v2785 = vmul.f32 %v2784, %v2783
    %v2786 = vmul.f32 %v2779, %v2679
    %v2787 = vadd.f32 %v2785, %v2786
    %v2788 = vpack.c.bf16 %v2787, %v2787
    %2789 = vst [vmem:[%s1378] sm:$0xf] %v2788
    %v2790 = vld [vmem:[%s1382] sm:$0xff]
    %v2791 = vld [vmem:[%s1382 + $0x8] sm:$0xff]
    %v2792 = vld [vmem:[%s1382 + $0x10] sm:$0xff]
    %2793 = vmatprep.subr.bf16.mxu0 %v2011
    %2794 = vmatpush1.bf16.msra.mxu0 %v2010
    %2795 = vmatprep.subr.bf16.mxu0 %v2008
    %2796 = vmatpush1.bf16.msra.mxu0 %v2007
    %2797 = vmatprep.subr.bf16.mxu0 %v2005
    %2798 = vmatpush1.bf16.msra.mxu0 %v2004
    %2799 = vmatprep.subr.bf16.mxu0 %v2002
    %2800 = vmatpush1.bf16.msra.mxu0 %v2001
    %2801 = vmatprep.subr.bf16.mxu0 %v1999
    %2802 = vmatpush1.bf16.msra.mxu0 %v1998
    %2803 = vmatprep.subr.bf16.mxu0 %v1996
    %2804 = vmatpush1.bf16.msra.mxu0 %v1995
    %2805 = vmatprep.subr.bf16.mxu0 %v1993
    %2806 = vmatpush1.bf16.msra.mxu0 %v1992
    %2807 = vmatprep.subr.bf16.mxu0 %v1990
    %2808 = vmatpush1.bf16.msra.mxu0 %v1989
    %2809 = vmatprep.subr.bf16.mxu0 0
    %2810 = vmatpush2.bf16.msra.mxu0 0
    %2811 = vmatprep.subr.bf16.mxu0 0
    %2812 = vmatpush2.bf16.msra.mxu0 0
    %2813 = vmatprep.subr.bf16.mxu0 0
    %2814 = vmatpush2.bf16.msra.mxu0 0
    %2815 = vmatprep.subr.bf16.mxu0 0
    %2816 = vmatpush2.bf16.msra.mxu0 0
    %2817 = vmatprep.subr.bf16.mxu0 0
    %2818 = vmatpush2.bf16.msra.mxu0 0
    %2819 = vmatprep.subr.bf16.mxu0 0
    %2820 = vmatpush2.bf16.msra.mxu0 0
    %2821 = vmatprep.subr.bf16.mxu0 0
    %2822 = vmatpush2.bf16.msra.mxu0 0
    %2823 = vmatprep.subr.bf16.mxu0 0
    %2824 = vmatpush2.bf16.msra.mxu0 0
    %2825 = vmatprep.mubr.bf16.mxu0 0
    %2826 = vmatmul.mubr.bf16.gmra.mxu0 %v2788
    %v2827 = vpop.f32.mrf.mxu0
    %v2828 = vadd.f32 0.0, %v2827
    %v2829 = vpop.f32.mrf.mxu0
    %v2830 = vadd.f32 0.0, %v2829
    %v2831 = vpop.f32.mrf.mxu0
    %v2832 = vpop.f32.mrf.mxu0
    %2833 = vdwg.mxu0
    %2834 = vmatprep.subr.bf16.mxu0 0
    %2835 = vmatpush1.bf16.msra.mxu0 %v2012
    %2836 = vmatprep.subr.bf16.mxu0 0
    %2837 = vmatpush1.bf16.msra.mxu0 %v2009
    %2838 = vmatprep.subr.bf16.mxu0 0
    %2839 = vmatpush1.bf16.msra.mxu0 %v2006
    %2840 = vmatprep.subr.bf16.mxu0 0
    %2841 = vmatpush1.bf16.msra.mxu0 %v2003
    %2842 = vmatprep.subr.bf16.mxu0 0
    %2843 = vmatpush1.bf16.msra.mxu0 %v2000
    %2844 = vmatprep.subr.bf16.mxu0 0
    %2845 = vmatpush1.bf16.msra.mxu0 %v1997
    %2846 = vmatprep.subr.bf16.mxu0 0
    %2847 = vmatpush1.bf16.msra.mxu0 %v1994
    %2848 = vmatprep.subr.bf16.mxu0 0
    %2849 = vmatpush1.bf16.msra.mxu0 %v1991
    %2850 = vmatprep.subr.bf16.mxu0 0
    %2851 = vmatpush2.bf16.msra.mxu0 0
    %2852 = vmatprep.subr.bf16.mxu0 0
    %2853 = vmatpush2.bf16.msra.mxu0 0
    %2854 = vmatprep.subr.bf16.mxu0 0
    %2855 = vmatpush2.bf16.msra.mxu0 0
    %2856 = vmatprep.subr.bf16.mxu0 0
    %2857 = vmatpush2.bf16.msra.mxu0 0
    %2858 = vmatprep.subr.bf16.mxu0 0
    %2859 = vmatpush2.bf16.msra.mxu0 0
    %2860 = vmatprep.subr.bf16.mxu0 0
    %2861 = vmatpush2.bf16.msra.mxu0 0
    %2862 = vmatprep.subr.bf16.mxu0 0
    %2863 = vmatpush2.bf16.msra.mxu0 0
    %2864 = vmatprep.subr.bf16.mxu0 0
    %2865 = vmatpush2.bf16.msra.mxu0 0
    %2866 = vmatprep.mubr.bf16.mxu0 0
    %2867 = vmatmul.mubr.bf16.gmra.mxu0 %v2788
    %v2868 = vpop.f32.mrf.mxu0
    %v2869 = vadd.f32 0.0, %v2868
    %v2870 = vpop.f32.mrf.mxu0
    %v2871 = vpop.f32.mrf.mxu0
    %v2872 = vpop.f32.mrf.mxu0
    %2873 = vdwg.mxu0
    %v2874 = vadd.f32 %v2790, %v2828
    %v2875 = vxor.u32 %v2874, 2147483648
    %v2876 = vmul.f32 %v2875, 1.442695
    %v2877 = vpow.pop %v2876
    %v2878 = vadd.f32 %v2877, 1.0
    %v2879 = vrcp.pop %v2878
    %v2880 = vmul.f32 1.0, %v2879
    %v2881 = vadd.f32 %v2791, %v2830
    %v2882 = vxor.u32 %v2881, 2147483648
    %v2883 = vmul.f32 %v2882, 1.442695
    %v2884 = vpow.pop %v2883
    %v2885 = vadd.f32 %v2884, 1.0
    %v2886 = vrcp.pop %v2885
    %v2887 = vmul.f32 1.0, %v2886
    %v2888 = vadd.f32 %v2869, %v1566
    %v2889 = vmul.f32 %v2880, %v2888
    %v2890 = vadd.f32 %v2792, %v2889
    %v2891 = vtanh.pop %v2890
    %v2892 = vsub.f32 1.0, %v2887
    %v2893 = vmul.f32 %v2892, %v2891
    %v2894 = vmul.f32 %v2887, %v2787
    %v2895 = vadd.f32 %v2893, %v2894
    %v2896 = vpack.c.bf16 %v2895, %v2895
    %2897 = vst [vmem:[%s1494] sm:$0xf] %v2896
    %v2898 = vld [vmem:[#allocation8] sm:$0xff]
    %v2899 = vld [vmem:[#allocation8 + $0x8] sm:$0xf]
    %v2900 = vld [vmem:[#allocation8 + $0xc] sm:$0xff]
    %v2901 = vld [vmem:[#allocation8 + $0x14] sm:$0xf]
    %v2902 = vld [vmem:[#allocation8 + $0x18] sm:$0xff]
    %v2903 = vld [vmem:[#allocation8 + $0x20] sm:$0xf]
    %v2904 = vld [vmem:[#allocation8 + $0x24] sm:$0xff]
    %v2905 = vld [vmem:[#allocation8 + $0x2c] sm:$0xf]
    %v2906 = vld [vmem:[#allocation8 + $0x30] sm:$0xff]
    %v2907 = vld [vmem:[#allocation8 + $0x38] sm:$0xf]
    %v2908 = vld [vmem:[#allocation8 + $0x3c] sm:$0xff]
    %v2909 = vld [vmem:[#allocation8 + $0x44] sm:$0xf]
    %v2910 = vld [vmem:[#allocation8 + $0x48] sm:$0xff]
    %v2911 = vld [vmem:[#allocation8 + $0x50] sm:$0xf]
    %v2912 = vld [vmem:[#allocation8 + $0x54] sm:$0xff]
    %v2913 = vld [vmem:[#allocation8 + $0x5c] sm:$0xf]
    %v2914 = vld [vmem:[#allocation8 + $0x60] sm:$0xff]
    %v2915 = vld [vmem:[#allocation8 + $0x68] sm:$0xf]
    %v2916 = vld [vmem:[#allocation8 + $0x6c] sm:$0xff]
    %v2917 = vld [vmem:[#allocation8 + $0x74] sm:$0xf]
    %v2918 = vld [vmem:[#allocation8 + $0x78] sm:$0xff]
    %v2919 = vld [vmem:[#allocation8 + $0x80] sm:$0xf]
    %v2920 = vld [vmem:[#allocation8 + $0x84] sm:$0xff]
    %v2921 = vld [vmem:[#allocation8 + $0x8c] sm:$0xf]
    %v2922 = vld [vmem:[#allocation8 + $0x90] sm:$0xff]
    %v2923 = vld [vmem:[#allocation8 + $0x98] sm:$0xf]
    %v2924 = vld [vmem:[#allocation8 + $0x9c] sm:$0xff]
    %v2925 = vld [vmem:[#allocation8 + $0xa4] sm:$0xf]
    %v2926 = vld [vmem:[#allocation8 + $0xa8] sm:$0xff]
    %v2927 = vld [vmem:[#allocation8 + $0xb0] sm:$0xf]
    %v2928 = vld [vmem:[#allocation8 + $0xb4] sm:$0xff]
    %v2929 = vld [vmem:[#allocation8 + $0xbc] sm:$0xf]
    %v2930 = vld [vmem:[%s10] sm:$0x7]
    %v2931 = vld [vmem:[#allocation9] sm:$0xff]
    %v2932 = vld [vmem:[#allocation9 + $0x8] sm:$0xf]
    %v2933 = vld [vmem:[#allocation9 + $0xc] sm:$0xff]
    %v2934 = vld [vmem:[#allocation9 + $0x14] sm:$0xf]
    %v2935 = vld [vmem:[#allocation9 + $0x18] sm:$0xff]
    %v2936 = vld [vmem:[#allocation9 + $0x20] sm:$0xf]
    %v2937 = vld [vmem:[#allocation9 + $0x24] sm:$0xff]
    %v2938 = vld [vmem:[#allocation9 + $0x2c] sm:$0xf]
    %v2939 = vld [vmem:[#allocation9 + $0x30] sm:$0xff]
    %v2940 = vld [vmem:[#allocation9 + $0x38] sm:$0xf]
    %v2941 = vld [vmem:[#allocation9 + $0x3c] sm:$0xff]
    %v2942 = vld [vmem:[#allocation9 + $0x44] sm:$0xf]
    %v2943 = vld [vmem:[#allocation9 + $0x48] sm:$0xff]
    %v2944 = vld [vmem:[#allocation9 + $0x50] sm:$0xf]
    %v2945 = vld [vmem:[#allocation9 + $0x54] sm:$0xff]
    %v2946 = vld [vmem:[#allocation9 + $0x5c] sm:$0xf]
    %v2947 = vld [vmem:[#allocation9 + $0x60] sm:$0xff]
    %v2948 = vld [vmem:[#allocation9 + $0x68] sm:$0xf]
    %v2949 = vld [vmem:[#allocation9 + $0x6c] sm:$0xff]
    %v2950 = vld [vmem:[#allocation9 + $0x74] sm:$0xf]
    %v2951 = vld [vmem:[#allocation9 + $0x78] sm:$0xff]
    %v2952 = vld [vmem:[#allocation9 + $0x80] sm:$0xf]
    %v2953 = vld [vmem:[#allocation9 + $0x84] sm:$0xff]
    %v2954 = vld [vmem:[#allocation9 + $0x8c] sm:$0xf]
    %v2955 = vld [vmem:[#allocation9 + $0x90] sm:$0xff]
    %v2956 = vld [vmem:[#allocation9 + $0x98] sm:$0xf]
    %v2957 = vld [vmem:[#allocation9 + $0x9c] sm:$0xff]
    %v2958 = vld [vmem:[#allocation9 + $0xa4] sm:$0xf]
    %v2959 = vld [vmem:[#allocation9 + $0xa8] sm:$0xff]
    %v2960 = vld [vmem:[#allocation9 + $0xb0] sm:$0xf]
    %v2961 = vld [vmem:[#allocation9 + $0xb4] sm:$0xff]
    %v2962 = vld [vmem:[#allocation9 + $0xbc] sm:$0xf]
    %v2963 = vld [vmem:[%s12] sm:$0x1]
    %v2965 = vlaneseq
    %v2966 = vshrl.u32 %v2965, 7
    %v2967 = vsub.s32 0, %v2966
    %v2968 = vrot.slane %v2963, %v2967
    %v2970 = vld [vmem:[#allocation2] sm:$0xf]
    %v2971 = vld [vmem:[#allocation2 + $0x4] sm:$0xf]
    %v2972 = vld [vmem:[#allocation2 + $0x8] sm:$0xf]
    %v2973 = vld [vmem:[#allocation2 + $0xc] sm:$0xf]
    %v2974 = vld [vmem:[#allocation2 + $0x10] sm:$0xf]
    %v2975 = vld [vmem:[#allocation2 + $0x14] sm:$0xf]
    %v2976 = vld [vmem:[#allocation2 + $0x18] sm:$0xf]
    %v2977 = vld [vmem:[#allocation2 + $0x1c] sm:$0xf]
    %v2979 = vlaneseq
    %v2980 = vshrl.u32 %v2979, 7
    %v2981 = vsub.s32 0, %v2980
    %v2982 = vrot.slane %v2930, %v2981
    %v2983 = vlaneseq
    %v2984 = vshrl.u32 %v2983, 7
    %v2985 = vsub.s32 1, %v2984
    %v2986 = vrot.slane %v2930, %v2985
    %v2987 = vlaneseq
    %v2988 = vshrl.u32 %v2987, 7
    %v2989 = vsub.s32 2, %v2988
    %v2990 = vrot.slane %v2930, %v2989
    %v3002 = vunpack.c.l.b16 %v2970
    %v3003 = vunpack.c.l.b16 %v2971
    %v3004 = vunpack.c.l.b16 %v2972
    %v3005 = vunpack.c.l.b16 %v2973
    %v3006 = vunpack.c.l.b16 %v2974
    %v3007 = vunpack.c.l.b16 %v2975
    %v3008 = vunpack.c.l.b16 %v2976
    %v3009 = vunpack.c.l.b16 %v2977
    %v3010 = vpack.c.b16 %v3003, %v3002
    %v3011 = vpack.c.b16 %v3005, %v3004
    %v3012 = vpack.c.b16 %v3007, %v3006
    %v3013 = vpack.c.b16 %v3009, %v3008
    %v3050 = vunpack.c.l.b16 %v2898
    %v3051 = vunpack.c.h.b16 %v2898
    %v3052 = vunpack.c.l.b16 %v2899
    %v3053 = vunpack.c.l.b16 %v2900
    %v3054 = vunpack.c.h.b16 %v2900
    %v3055 = vunpack.c.l.b16 %v2901
    %v3056 = vunpack.c.l.b16 %v2902
    %v3057 = vunpack.c.h.b16 %v2902
    %v3058 = vunpack.c.l.b16 %v2903
    %v3059 = vunpack.c.l.b16 %v2904
    %v3060 = vunpack.c.h.b16 %v2904
    %v3061 = vunpack.c.l.b16 %v2905
    %v3062 = vunpack.c.l.b16 %v2906
    %v3063 = vunpack.c.h.b16 %v2906
    %v3064 = vunpack.c.l.b16 %v2907
    %v3065 = vunpack.c.l.b16 %v2908
    %v3066 = vunpack.c.h.b16 %v2908
    %v3067 = vunpack.c.l.b16 %v2909
    %v3068 = vunpack.c.l.b16 %v2910
    %v3069 = vunpack.c.h.b16 %v2910
    %v3070 = vunpack.c.l.b16 %v2911
    %v3071 = vunpack.c.l.b16 %v2912
    %v3072 = vunpack.c.h.b16 %v2912
    %v3073 = vunpack.c.l.b16 %v2913
    %v3074 = vunpack.c.l.b16 %v2914
    %v3075 = vunpack.c.h.b16 %v2914
    %v3076 = vunpack.c.l.b16 %v2915
    %v3077 = vunpack.c.l.b16 %v2916
    %v3078 = vunpack.c.h.b16 %v2916
    %v3079 = vunpack.c.l.b16 %v2917
    %v3080 = vunpack.c.l.b16 %v2918
    %v3081 = vunpack.c.h.b16 %v2918
    %v3082 = vunpack.c.l.b16 %v2919
    %v3083 = vunpack.c.l.b16 %v2920
    %v3084 = vunpack.c.h.b16 %v2920
    %v3085 = vunpack.c.l.b16 %v2921
    %v3086 = vunpack.c.l.b16 %v2922
    %v3087 = vunpack.c.h.b16 %v2922
    %v3088 = vunpack.c.l.b16 %v2923
    %v3089 = vunpack.c.l.b16 %v2924
    %v3090 = vunpack.c.h.b16 %v2924
    %v3091 = vunpack.c.l.b16 %v2925
    %v3092 = vunpack.c.l.b16 %v2926
    %v3093 = vunpack.c.h.b16 %v2926
    %v3094 = vunpack.c.l.b16 %v2927
    %v3095 = vunpack.c.l.b16 %v2928
    %v3096 = vunpack.c.h.b16 %v2928
    %v3097 = vunpack.c.l.b16 %v2929
    %v3098 = vpack.c.b16 %v3053, %v3050
    %v3099 = vpack.c.b16 %v3054, %v3051
    %v3100 = vpack.c.b16 %v3055, %v3052
    %v3101 = vpack.c.b16 %v3059, %v3056
    %v3102 = vpack.c.b16 %v3060, %v3057
    %v3103 = vpack.c.b16 %v3061, %v3058
    %v3104 = vpack.c.b16 %v3065, %v3062
    %v3105 = vpack.c.b16 %v3066, %v3063
    %v3106 = vpack.c.b16 %v3067, %v3064
    %v3107 = vpack.c.b16 %v3071, %v3068
    %v3108 = vpack.c.b16 %v3072, %v3069
    %v3109 = vpack.c.b16 %v3073, %v3070
    %v3110 = vpack.c.b16 %v3077, %v3074
    %v3111 = vpack.c.b16 %v3078, %v3075
    %v3112 = vpack.c.b16 %v3079, %v3076
    %v3113 = vpack.c.b16 %v3083, %v3080
    %v3114 = vpack.c.b16 %v3084, %v3081
    %v3115 = vpack.c.b16 %v3085, %v3082
    %v3116 = vpack.c.b16 %v3089, %v3086
    %v3117 = vpack.c.b16 %v3090, %v3087
    %v3118 = vpack.c.b16 %v3091, %v3088
    %v3119 = vpack.c.b16 %v3095, %v3092
    %v3120 = vpack.c.b16 %v3096, %v3093
    %v3121 = vpack.c.b16 %v3097, %v3094
    %3146 = vmatprep.subr.bf16.mxu0 %v3120
    %3147 = vmatpush1.bf16.msra.mxu0 %v3119
    %3148 = vmatprep.subr.bf16.mxu0 %v3117
    %3149 = vmatpush1.bf16.msra.mxu0 %v3116
    %3150 = vmatprep.subr.bf16.mxu0 %v3114
    %3151 = vmatpush1.bf16.msra.mxu0 %v3113
    %3152 = vmatprep.subr.bf16.mxu0 %v3111
    %3153 = vmatpush1.bf16.msra.mxu0 %v3110
    %3154 = vmatprep.subr.bf16.mxu0 %v3108
    %3155 = vmatpush1.bf16.msra.mxu0 %v3107
    %3156 = vmatprep.subr.bf16.mxu0 %v3105
    %3157 = vmatpush1.bf16.msra.mxu0 %v3104
    %3158 = vmatprep.subr.bf16.mxu0 %v3102
    %3159 = vmatpush1.bf16.msra.mxu0 %v3101
    %3160 = vmatprep.subr.bf16.mxu0 %v3099
    %3161 = vmatpush1.bf16.msra.mxu0 %v3098
    %3162 = vmatprep.subr.bf16.mxu0 0
    %3163 = vmatpush2.bf16.msra.mxu0 0
    %3164 = vmatprep.subr.bf16.mxu0 0
    %3165 = vmatpush2.bf16.msra.mxu0 0
    %3166 = vmatprep.subr.bf16.mxu0 0
    %3167 = vmatpush2.bf16.msra.mxu0 0
    %3168 = vmatprep.subr.bf16.mxu0 0
    %3169 = vmatpush2.bf16.msra.mxu0 0
    %3170 = vmatprep.subr.bf16.mxu0 0
    %3171 = vmatpush2.bf16.msra.mxu0 0
    %3172 = vmatprep.subr.bf16.mxu0 0
    %3173 = vmatpush2.bf16.msra.mxu0 0
    %3174 = vmatprep.subr.bf16.mxu0 0
    %3175 = vmatpush2.bf16.msra.mxu0 0
    %3176 = vmatprep.subr.bf16.mxu0 0
    %3177 = vmatpush2.bf16.msra.mxu0 0
    %3178 = vmatprep.mubr.bf16.mxu0 0
    %3179 = vmatmul.mubr.bf16.gmra.mxu0 %v3010
    %v3180 = vpop.f32.mrf.mxu0
    %v3181 = vadd.f32 %v2982, %v3180
    %v3182 = vpop.f32.mrf.mxu0
    %v3183 = vadd.f32 %v2986, %v3182
    %v3184 = vpop.f32.mrf.mxu0
    %v3185 = vadd.f32 %v2982, %v3184
    %v3186 = vpop.f32.mrf.mxu0
    %v3187 = vadd.f32 %v2986, %v3186
    %3188 = vmatprep.mubr.bf16.mxu0 0
    %3189 = vmatmul.mubr.bf16.gmra.mxu0 %v3011
    %v3190 = vpop.f32.mrf.mxu0
    %v3191 = vadd.f32 %v2982, %v3190
    %v3192 = vpop.f32.mrf.mxu0
    %v3193 = vadd.f32 %v2986, %v3192
    %v3194 = vpop.f32.mrf.mxu0
    %v3195 = vadd.f32 %v2982, %v3194
    %v3196 = vpop.f32.mrf.mxu0
    %v3197 = vadd.f32 %v2986, %v3196
    %3198 = vmatprep.mubr.bf16.mxu0 0
    %3199 = vmatmul.mubr.bf16.gmra.mxu0 %v3012
    %v3200 = vpop.f32.mrf.mxu0
    %v3201 = vadd.f32 %v2982, %v3200
    %v3202 = vpop.f32.mrf.mxu0
    %v3203 = vadd.f32 %v2986, %v3202
    %v3204 = vpop.f32.mrf.mxu0
    %v3205 = vadd.f32 %v2982, %v3204
    %v3206 = vpop.f32.mrf.mxu0
    %v3207 = vadd.f32 %v2986, %v3206
    %3208 = vmatprep.mubr.bf16.mxu0 0
    %3209 = vmatmul.mubr.bf16.gmra.mxu0 %v3013
    %v3210 = vpop.f32.mrf.mxu0
    %v3211 = vadd.f32 %v2982, %v3210
    %v3212 = vpop.f32.mrf.mxu0
    %v3213 = vadd.f32 %v2986, %v3212
    %v3214 = vpop.f32.mrf.mxu0
    %v3215 = vadd.f32 %v2982, %v3214
    %v3216 = vpop.f32.mrf.mxu0
    %v3217 = vadd.f32 %v2986, %v3216
    %3218 = vdwg.mxu0
    %3219 = vmatprep.subr.bf16.mxu0 0
    %3220 = vmatpush1.bf16.msra.mxu0 %v3121
    %3221 = vmatprep.subr.bf16.mxu0 0
    %3222 = vmatpush1.bf16.msra.mxu0 %v3118
    %3223 = vmatprep.subr.bf16.mxu0 0
    %3224 = vmatpush1.bf16.msra.mxu0 %v3115
    %3225 = vmatprep.subr.bf16.mxu0 0
    %3226 = vmatpush1.bf16.msra.mxu0 %v3112
    %3227 = vmatprep.subr.bf16.mxu0 0
    %3228 = vmatpush1.bf16.msra.mxu0 %v3109
    %3229 = vmatprep.subr.bf16.mxu0 0
    %3230 = vmatpush1.bf16.msra.mxu0 %v3106
    %3231 = vmatprep.subr.bf16.mxu0 0
    %3232 = vmatpush1.bf16.msra.mxu0 %v3103
    %3233 = vmatprep.subr.bf16.mxu0 0
    %3234 = vmatpush1.bf16.msra.mxu0 %v3100
    %3235 = vmatprep.subr.bf16.mxu0 0
    %3236 = vmatpush2.bf16.msra.mxu0 0
    %3237 = vmatprep.subr.bf16.mxu0 0
    %3238 = vmatpush2.bf16.msra.mxu0 0
    %3239 = vmatprep.subr.bf16.mxu0 0
    %3240 = vmatpush2.bf16.msra.mxu0 0
    %3241 = vmatprep.subr.bf16.mxu0 0
    %3242 = vmatpush2.bf16.msra.mxu0 0
    %3243 = vmatprep.subr.bf16.mxu0 0
    %3244 = vmatpush2.bf16.msra.mxu0 0
    %3245 = vmatprep.subr.bf16.mxu0 0
    %3246 = vmatpush2.bf16.msra.mxu0 0
    %3247 = vmatprep.subr.bf16.mxu0 0
    %3248 = vmatpush2.bf16.msra.mxu0 0
    %3249 = vmatprep.subr.bf16.mxu0 0
    %3250 = vmatpush2.bf16.msra.mxu0 0
    %3251 = vmatprep.mubr.bf16.mxu0 0
    %3252 = vmatmul.mubr.bf16.gmra.mxu0 %v3010
    %v3253 = vpop.f32.mrf.mxu0
    %v3254 = vadd.f32 %v2990, %v3253
    %v3255 = vpop.f32.mrf.mxu0
    %v3256 = vpop.f32.mrf.mxu0
    %v3257 = vadd.f32 %v2990, %v3256
    %v3258 = vpop.f32.mrf.mxu0
    %3259 = vmatprep.mubr.bf16.mxu0 0
    %3260 = vmatmul.mubr.bf16.gmra.mxu0 %v3011
    %v3261 = vpop.f32.mrf.mxu0
    %v3262 = vadd.f32 %v2990, %v3261
    %v3263 = vpop.f32.mrf.mxu0
    %v3264 = vpop.f32.mrf.mxu0
    %v3265 = vadd.f32 %v2990, %v3264
    %v3266 = vpop.f32.mrf.mxu0
    %3267 = vmatprep.mubr.bf16.mxu0 0
    %3268 = vmatmul.mubr.bf16.gmra.mxu0 %v3012
    %v3269 = vpop.f32.mrf.mxu0
    %v3270 = vadd.f32 %v2990, %v3269
    %v3271 = vpop.f32.mrf.mxu0
    %v3272 = vpop.f32.mrf.mxu0
    %v3273 = vadd.f32 %v2990, %v3272
    %v3274 = vpop.f32.mrf.mxu0
    %3275 = vmatprep.mubr.bf16.mxu0 0
    %3276 = vmatmul.mubr.bf16.gmra.mxu0 %v3013
    %v3277 = vpop.f32.mrf.mxu0
    %v3278 = vadd.f32 %v2990, %v3277
    %v3279 = vpop.f32.mrf.mxu0
    %v3280 = vpop.f32.mrf.mxu0
    %v3281 = vadd.f32 %v2990, %v3280
    %v3282 = vpop.f32.mrf.mxu0
    %3283 = vdwg.mxu0
    %3284 = vst [vmem:[#allocation3] sm:$0xff] %v3181
    %3285 = vst [vmem:[#allocation3 + $0x8] sm:$0xff] %v3183
    %3286 = vst [vmem:[#allocation3 + $0x10] sm:$0xff] %v3254
    %3287 = vst [vmem:[#allocation3 + $0x18] sm:$0xff] %v3185
    %3288 = vst [vmem:[#allocation3 + $0x20] sm:$0xff] %v3187
    %3289 = vst [vmem:[#allocation3 + $0x28] sm:$0xff] %v3257
    %3290 = vst [vmem:[#allocation3 + $0x30] sm:$0xff] %v3191
    %3291 = vst [vmem:[#allocation3 + $0x38] sm:$0xff] %v3193
    %3292 = vst [vmem:[#allocation3 + $0x40] sm:$0xff] %v3262
    %3293 = vst [vmem:[#allocation3 + $0x48] sm:$0xff] %v3195
    %3294 = vst [vmem:[#allocation3 + $0x50] sm:$0xff] %v3197
    %3295 = vst [vmem:[#allocation3 + $0x58] sm:$0xff] %v3265
    %3296 = vst [vmem:[#allocation3 + $0x60] sm:$0xff] %v3201
    %3297 = vst [vmem:[#allocation3 + $0x68] sm:$0xff] %v3203
    %3298 = vst [vmem:[#allocation3 + $0x70] sm:$0xff] %v3270
    %3299 = vst [vmem:[#allocation3 + $0x78] sm:$0xff] %v3205
    %3300 = vst [vmem:[#allocation3 + $0x80] sm:$0xff] %v3207
    %3301 = vst [vmem:[#allocation3 + $0x88] sm:$0xff] %v3273
    %3302 = vst [vmem:[#allocation3 + $0x90] sm:$0xff] %v3211
    %3303 = vst [vmem:[#allocation3 + $0x98] sm:$0xff] %v3213
    %3304 = vst [vmem:[#allocation3 + $0xa0] sm:$0xff] %v3278
    %3305 = vst [vmem:[#allocation3 + $0xa8] sm:$0xff] %v3215
    %3306 = vst [vmem:[#allocation3 + $0xb0] sm:$0xff] %v3217
    %3307 = vst [vmem:[#allocation3 + $0xb8] sm:$0xff] %v3281
    %v3308 = vld [vmem:[%s442] sm:$0xff]
    %v3309 = vld [vmem:[%s442 + $0x8] sm:$0xff]
    %v3310 = vld [vmem:[%s442 + $0x10] sm:$0xff]
    %v3343 = vunpack.c.l.b16 %v2931
    %v3344 = vunpack.c.h.b16 %v2931
    %v3345 = vunpack.c.l.b16 %v2932
    %v3346 = vunpack.c.l.b16 %v2933
    %v3347 = vunpack.c.h.b16 %v2933
    %v3348 = vunpack.c.l.b16 %v2934
    %v3349 = vunpack.c.l.b16 %v2935
    %v3350 = vunpack.c.h.b16 %v2935
    %v3351 = vunpack.c.l.b16 %v2936
    %v3352 = vunpack.c.l.b16 %v2937
    %v3353 = vunpack.c.h.b16 %v2937
    %v3354 = vunpack.c.l.b16 %v2938
    %v3355 = vunpack.c.l.b16 %v2939
    %v3356 = vunpack.c.h.b16 %v2939
    %v3357 = vunpack.c.l.b16 %v2940
    %v3358 = vunpack.c.l.b16 %v2941
    %v3359 = vunpack.c.h.b16 %v2941
    %v3360 = vunpack.c.l.b16 %v2942
    %v3361 = vunpack.c.l.b16 %v2943
    %v3362 = vunpack.c.h.b16 %v2943
    %v3363 = vunpack.c.l.b16 %v2944
    %v3364 = vunpack.c.l.b16 %v2945
    %v3365 = vunpack.c.h.b16 %v2945
    %v3366 = vunpack.c.l.b16 %v2946
    %v3367 = vunpack.c.l.b16 %v2947
    %v3368 = vunpack.c.h.b16 %v2947
    %v3369 = vunpack.c.l.b16 %v2948
    %v3370 = vunpack.c.l.b16 %v2949
    %v3371 = vunpack.c.h.b16 %v2949
    %v3372 = vunpack.c.l.b16 %v2950
    %v3373 = vunpack.c.l.b16 %v2951
    %v3374 = vunpack.c.h.b16 %v2951
    %v3375 = vunpack.c.l.b16 %v2952
    %v3376 = vunpack.c.l.b16 %v2953
    %v3377 = vunpack.c.h.b16 %v2953
    %v3378 = vunpack.c.l.b16 %v2954
    %v3379 = vunpack.c.l.b16 %v2955
    %v3380 = vunpack.c.h.b16 %v2955
    %v3381 = vunpack.c.l.b16 %v2956
    %v3382 = vunpack.c.l.b16 %v2957
    %v3383 = vunpack.c.h.b16 %v2957
    %v3384 = vunpack.c.l.b16 %v2958
    %v3385 = vunpack.c.l.b16 %v2959
    %v3386 = vunpack.c.h.b16 %v2959
    %v3387 = vunpack.c.l.b16 %v2960
    %v3388 = vunpack.c.l.b16 %v2961
    %v3389 = vunpack.c.h.b16 %v2961
    %v3390 = vunpack.c.l.b16 %v2962
    %v3391 = vpack.c.b16 %v3346, %v3343
    %v3392 = vpack.c.b16 %v3347, %v3344
    %v3393 = vpack.c.b16 %v3348, %v3345
    %v3394 = vpack.c.b16 %v3352, %v3349
    %v3395 = vpack.c.b16 %v3353, %v3350
    %v3396 = vpack.c.b16 %v3354, %v3351
    %v3397 = vpack.c.b16 %v3358, %v3355
    %v3398 = vpack.c.b16 %v3359, %v3356
    %v3399 = vpack.c.b16 %v3360, %v3357
    %v3400 = vpack.c.b16 %v3364, %v3361
    %v3401 = vpack.c.b16 %v3365, %v3362
    %v3402 = vpack.c.b16 %v3366, %v3363
    %v3403 = vpack.c.b16 %v3370, %v3367
    %v3404 = vpack.c.b16 %v3371, %v3368
    %v3405 = vpack.c.b16 %v3372, %v3369
    %v3406 = vpack.c.b16 %v3376, %v3373
    %v3407 = vpack.c.b16 %v3377, %v3374
    %v3408 = vpack.c.b16 %v3378, %v3375
    %v3409 = vpack.c.b16 %v3382, %v3379
    %v3410 = vpack.c.b16 %v3383, %v3380
    %v3411 = vpack.c.b16 %v3384, %v3381
    %v3412 = vpack.c.b16 %v3388, %v3385
    %v3413 = vpack.c.b16 %v3389, %v3386
    %v3414 = vpack.c.b16 %v3390, %v3387
    %3439 = vmatprep.subr.bf16.mxu0 %v3413
    %3440 = vmatpush1.bf16.msra.mxu0 %v3412
    %3441 = vmatprep.subr.bf16.mxu0 %v3410
    %3442 = vmatpush1.bf16.msra.mxu0 %v3409
    %3443 = vmatprep.subr.bf16.mxu0 %v3407
    %3444 = vmatpush1.bf16.msra.mxu0 %v3406
    %3445 = vmatprep.subr.bf16.mxu0 %v3404
    %3446 = vmatpush1.bf16.msra.mxu0 %v3403
    %3447 = vmatprep.subr.bf16.mxu0 %v3401
    %3448 = vmatpush1.bf16.msra.mxu0 %v3400
    %3449 = vmatprep.subr.bf16.mxu0 %v3398
    %3450 = vmatpush1.bf16.msra.mxu0 %v3397
    %3451 = vmatprep.subr.bf16.mxu0 %v3395
    %3452 = vmatpush1.bf16.msra.mxu0 %v3394
    %3453 = vmatprep.subr.bf16.mxu0 %v3392
    %3454 = vmatpush1.bf16.msra.mxu0 %v3391
    %3455 = vmatprep.subr.bf16.mxu0 0
    %3456 = vmatpush2.bf16.msra.mxu0 0
    %3457 = vmatprep.subr.bf16.mxu0 0
    %3458 = vmatpush2.bf16.msra.mxu0 0
    %3459 = vmatprep.subr.bf16.mxu0 0
    %3460 = vmatpush2.bf16.msra.mxu0 0
    %3461 = vmatprep.subr.bf16.mxu0 0
    %3462 = vmatpush2.bf16.msra.mxu0 0
    %3463 = vmatprep.subr.bf16.mxu0 0
    %3464 = vmatpush2.bf16.msra.mxu0 0
    %3465 = vmatprep.subr.bf16.mxu0 0
    %3466 = vmatpush2.bf16.msra.mxu0 0
    %3467 = vmatprep.subr.bf16.mxu0 0
    %3468 = vmatpush2.bf16.msra.mxu0 0
    %3469 = vmatprep.subr.bf16.mxu0 0
    %3470 = vmatpush2.bf16.msra.mxu0 0
    %3471 = vmatprep.mubr.bf16.mxu0 0
    %3472 = vmatmul.mubr.bf16.gmra.mxu0 0
    %v3473 = vpop.f32.mrf.mxu0
    %v3474 = vadd.f32 0.0, %v3473
    %v3475 = vpop.f32.mrf.mxu0
    %v3476 = vadd.f32 0.0, %v3475
    %v3477 = vpop.f32.mrf.mxu0
    %v3478 = vpop.f32.mrf.mxu0
    %3479 = vdwg.mxu0
    %3480 = vmatprep.subr.bf16.mxu0 0
    %3481 = vmatpush1.bf16.msra.mxu0 %v3414
    %3482 = vmatprep.subr.bf16.mxu0 0
    %3483 = vmatpush1.bf16.msra.mxu0 %v3411
    %3484 = vmatprep.subr.bf16.mxu0 0
    %3485 = vmatpush1.bf16.msra.mxu0 %v3408
    %3486 = vmatprep.subr.bf16.mxu0 0
    %3487 = vmatpush1.bf16.msra.mxu0 %v3405
    %3488 = vmatprep.subr.bf16.mxu0 0
    %3489 = vmatpush1.bf16.msra.mxu0 %v3402
    %3490 = vmatprep.subr.bf16.mxu0 0
    %3491 = vmatpush1.bf16.msra.mxu0 %v3399
    %3492 = vmatprep.subr.bf16.mxu0 0
    %3493 = vmatpush1.bf16.msra.mxu0 %v3396
    %3494 = vmatprep.subr.bf16.mxu0 0
    %3495 = vmatpush1.bf16.msra.mxu0 %v3393
    %3496 = vmatprep.subr.bf16.mxu0 0
    %3497 = vmatpush2.bf16.msra.mxu0 0
    %3498 = vmatprep.subr.bf16.mxu0 0
    %3499 = vmatpush2.bf16.msra.mxu0 0
    %3500 = vmatprep.subr.bf16.mxu0 0
    %3501 = vmatpush2.bf16.msra.mxu0 0
    %3502 = vmatprep.subr.bf16.mxu0 0
    %3503 = vmatpush2.bf16.msra.mxu0 0
    %3504 = vmatprep.subr.bf16.mxu0 0
    %3505 = vmatpush2.bf16.msra.mxu0 0
    %3506 = vmatprep.subr.bf16.mxu0 0
    %3507 = vmatpush2.bf16.msra.mxu0 0
    %3508 = vmatprep.subr.bf16.mxu0 0
    %3509 = vmatpush2.bf16.msra.mxu0 0
    %3510 = vmatprep.subr.bf16.mxu0 0
    %3511 = vmatpush2.bf16.msra.mxu0 0
    %3512 = vmatprep.mubr.bf16.mxu0 0
    %3513 = vmatmul.mubr.bf16.gmra.mxu0 0
    %v3514 = vpop.f32.mrf.mxu0
    %v3515 = vadd.f32 0.0, %v3514
    %v3516 = vpop.f32.mrf.mxu0
    %v3517 = vpop.f32.mrf.mxu0
    %v3518 = vpop.f32.mrf.mxu0
    %3519 = vdwg.mxu0
    %v3520 = vadd.f32 %v3308, %v3474
    %v3521 = vxor.u32 %v3520, 2147483648
    %v3522 = vmul.f32 %v3521, 1.442695
    %v3523 = vpow.pop %v3522
    %v3524 = vadd.f32 %v3523, 1.0
    %v3525 = vrcp.pop %v3524
    %v3526 = vmul.f32 1.0, %v3525
    %v3527 = vadd.f32 %v3309, %v3476
    %v3528 = vxor.u32 %v3527, 2147483648
    %v3529 = vmul.f32 %v3528, 1.442695
    %v3530 = vpow.pop %v3529
    %v3531 = vadd.f32 %v3530, 1.0
    %v3532 = vrcp.pop %v3531
    %v3533 = vmul.f32 1.0, %v3532
    %v3534 = vadd.f32 %v3515, %v2968
    %v3535 = vmul.f32 %v3526, %v3534
    %v3536 = vadd.f32 %v3310, %v3535
    %v3537 = vtanh.pop %v3536
    %v3538 = vsub.f32 1.0, %v3533
    %v3539 = vmul.f32 %v3538, %v3537
    %v3540 = vmul.f32 %v3533, 0.0
    %v3541 = vadd.f32 %v3539, %v3540
    %v3542 = vld [vmem:[%s686] sm:$0xff]
    %v3543 = vld [vmem:[%s686 + $0x8] sm:$0xff]
    %v3544 = vld [vmem:[%s686 + $0x10] sm:$0xff]
    %v3545 = vpack.c.bf16 %v3541, %v3541
    %3546 = vmatprep.subr.bf16.mxu0 %v3413
    %3547 = vmatpush1.bf16.msra.mxu0 %v3412
    %3548 = vmatprep.subr.bf16.mxu0 %v3410
    %3549 = vmatpush1.bf16.msra.mxu0 %v3409
    %3550 = vmatprep.subr.bf16.mxu0 %v3407
    %3551 = vmatpush1.bf16.msra.mxu0 %v3406
    %3552 = vmatprep.subr.bf16.mxu0 %v3404
    %3553 = vmatpush1.bf16.msra.mxu0 %v3403
    %3554 = vmatprep.subr.bf16.mxu0 %v3401
    %3555 = vmatpush1.bf16.msra.mxu0 %v3400
    %3556 = vmatprep.subr.bf16.mxu0 %v3398
    %3557 = vmatpush1.bf16.msra.mxu0 %v3397
    %3558 = vmatprep.subr.bf16.mxu0 %v3395
    %3559 = vmatpush1.bf16.msra.mxu0 %v3394
    %3560 = vmatprep.subr.bf16.mxu0 %v3392
    %3561 = vmatpush1.bf16.msra.mxu0 %v3391
    %3562 = vmatprep.subr.bf16.mxu0 0
    %3563 = vmatpush2.bf16.msra.mxu0 0
    %3564 = vmatprep.subr.bf16.mxu0 0
    %3565 = vmatpush2.bf16.msra.mxu0 0
    %3566 = vmatprep.subr.bf16.mxu0 0
    %3567 = vmatpush2.bf16.msra.mxu0 0
    %3568 = vmatprep.subr.bf16.mxu0 0
    %3569 = vmatpush2.bf16.msra.mxu0 0
    %3570 = vmatprep.subr.bf16.mxu0 0
    %3571 = vmatpush2.bf16.msra.mxu0 0
    %3572 = vmatprep.subr.bf16.mxu0 0
    %3573 = vmatpush2.bf16.msra.mxu0 0
    %3574 = vmatprep.subr.bf16.mxu0 0
    %3575 = vmatpush2.bf16.msra.mxu0 0
    %3576 = vmatprep.subr.bf16.mxu0 0
    %3577 = vmatpush2.bf16.msra.mxu0 0
    %3578 = vmatprep.mubr.bf16.mxu0 0
    %3579 = vmatmul.mubr.bf16.gmra.mxu0 %v3545
    %v3580 = vpop.f32.mrf.mxu0
    %v3581 = vadd.f32 0.0, %v3580
    %v3582 = vpop.f32.mrf.mxu0
    %v3583 = vadd.f32 0.0, %v3582
    %v3584 = vpop.f32.mrf.mxu0
    %v3585 = vpop.f32.mrf.mxu0
    %3586 = vdwg.mxu0
    %3587 = vmatprep.subr.bf16.mxu0 0
    %3588 = vmatpush1.bf16.msra.mxu0 %v3414
    %3589 = vmatprep.subr.bf16.mxu0 0
    %3590 = vmatpush1.bf16.msra.mxu0 %v3411
    %3591 = vmatprep.subr.bf16.mxu0 0
    %3592 = vmatpush1.bf16.msra.mxu0 %v3408
    %3593 = vmatprep.subr.bf16.mxu0 0
    %3594 = vmatpush1.bf16.msra.mxu0 %v3405
    %3595 = vmatprep.subr.bf16.mxu0 0
    %3596 = vmatpush1.bf16.msra.mxu0 %v3402
    %3597 = vmatprep.subr.bf16.mxu0 0
    %3598 = vmatpush1.bf16.msra.mxu0 %v3399
    %3599 = vmatprep.subr.bf16.mxu0 0
    %3600 = vmatpush1.bf16.msra.mxu0 %v3396
    %3601 = vmatprep.subr.bf16.mxu0 0
    %3602 = vmatpush1.bf16.msra.mxu0 %v3393
    %3603 = vmatprep.subr.bf16.mxu0 0
    %3604 = vmatpush2.bf16.msra.mxu0 0
    %3605 = vmatprep.subr.bf16.mxu0 0
    %3606 = vmatpush2.bf16.msra.mxu0 0
    %3607 = vmatprep.subr.bf16.mxu0 0
    %3608 = vmatpush2.bf16.msra.mxu0 0
    %3609 = vmatprep.subr.bf16.mxu0 0
    %3610 = vmatpush2.bf16.msra.mxu0 0
    %3611 = vmatprep.subr.bf16.mxu0 0
    %3612 = vmatpush2.bf16.msra.mxu0 0
    %3613 = vmatprep.subr.bf16.mxu0 0
    %3614 = vmatpush2.bf16.msra.mxu0 0
    %3615 = vmatprep.subr.bf16.mxu0 0
    %3616 = vmatpush2.bf16.msra.mxu0 0
    %3617 = vmatprep.subr.bf16.mxu0 0
    %3618 = vmatpush2.bf16.msra.mxu0 0
    %3619 = vmatprep.mubr.bf16.mxu0 0
    %3620 = vmatmul.mubr.bf16.gmra.mxu0 %v3545
    %v3621 = vpop.f32.mrf.mxu0
    %v3622 = vadd.f32 0.0, %v3621
    %v3623 = vpop.f32.mrf.mxu0
    %v3624 = vpop.f32.mrf.mxu0
    %v3625 = vpop.f32.mrf.mxu0
    %3626 = vdwg.mxu0
    %v3627 = vadd.f32 %v3542, %v3581
    %v3628 = vxor.u32 %v3627, 2147483648
    %v3629 = vmul.f32 %v3628, 1.442695
    %v3630 = vpow.pop %v3629
    %v3631 = vadd.f32 %v3630, 1.0
    %v3632 = vrcp.pop %v3631
    %v3633 = vmul.f32 1.0, %v3632
    %v3634 = vadd.f32 %v3543, %v3583
    %v3635 = vxor.u32 %v3634, 2147483648
    %v3636 = vmul.f32 %v3635, 1.442695
    %v3637 = vpow.pop %v3636
    %v3638 = vadd.f32 %v3637, 1.0
    %v3639 = vrcp.pop %v3638
    %v3640 = vmul.f32 1.0, %v3639
    %v3641 = vadd.f32 %v3622, %v2968
    %v3642 = vmul.f32 %v3633, %v3641
    %v3643 = vadd.f32 %v3544, %v3642
    %v3644 = vtanh.pop %v3643
    %v3645 = vsub.f32 1.0, %v3640
    %v3646 = vmul.f32 %v3645, %v3644
    %v3647 = vmul.f32 %v3640, %v3541
    %v3648 = vadd.f32 %v3646, %v3647
    %v3649 = vld [vmem:[%s802] sm:$0xff]
    %v3650 = vld [vmem:[%s802 + $0x8] sm:$0xff]
    %v3651 = vld [vmem:[%s802 + $0x10] sm:$0xff]
    %v3652 = vpack.c.bf16 %v3648, %v3648
    %3653 = vmatprep.subr.bf16.mxu0 %v3413
    %3654 = vmatpush1.bf16.msra.mxu0 %v3412
    %3655 = vmatprep.subr.bf16.mxu0 %v3410
    %3656 = vmatpush1.bf16.msra.mxu0 %v3409
    %3657 = vmatprep.subr.bf16.mxu0 %v3407
    %3658 = vmatpush1.bf16.msra.mxu0 %v3406
    %3659 = vmatprep.subr.bf16.mxu0 %v3404
    %3660 = vmatpush1.bf16.msra.mxu0 %v3403
    %3661 = vmatprep.subr.bf16.mxu0 %v3401
    %3662 = vmatpush1.bf16.msra.mxu0 %v3400
    %3663 = vmatprep.subr.bf16.mxu0 %v3398
    %3664 = vmatpush1.bf16.msra.mxu0 %v3397
    %3665 = vmatprep.subr.bf16.mxu0 %v3395
    %3666 = vmatpush1.bf16.msra.mxu0 %v3394
    %3667 = vmatprep.subr.bf16.mxu0 %v3392
    %3668 = vmatpush1.bf16.msra.mxu0 %v3391
    %3669 = vmatprep.subr.bf16.mxu0 0
    %3670 = vmatpush2.bf16.msra.mxu0 0
    %3671 = vmatprep.subr.bf16.mxu0 0
    %3672 = vmatpush2.bf16.msra.mxu0 0
    %3673 = vmatprep.subr.bf16.mxu0 0
    %3674 = vmatpush2.bf16.msra.mxu0 0
    %3675 = vmatprep.subr.bf16.mxu0 0
    %3676 = vmatpush2.bf16.msra.mxu0 0
    %3677 = vmatprep.subr.bf16.mxu0 0
    %3678 = vmatpush2.bf16.msra.mxu0 0
    %3679 = vmatprep.subr.bf16.mxu0 0
    %3680 = vmatpush2.bf16.msra.mxu0 0
    %3681 = vmatprep.subr.bf16.mxu0 0
    %3682 = vmatpush2.bf16.msra.mxu0 0
    %3683 = vmatprep.subr.bf16.mxu0 0
    %3684 = vmatpush2.bf16.msra.mxu0 0
    %3685 = vmatprep.mubr.bf16.mxu0 0
    %3686 = vmatmul.mubr.bf16.gmra.mxu0 %v3652
    %v3687 = vpop.f32.mrf.mxu0
    %v3688 = vadd.f32 0.0, %v3687
    %v3689 = vpop.f32.mrf.mxu0
    %v3690 = vadd.f32 0.0, %v3689
    %v3691 = vpop.f32.mrf.mxu0
    %v3692 = vpop.f32.mrf.mxu0
    %3693 = vdwg.mxu0
    %3694 = vmatprep.subr.bf16.mxu0 0
    %3695 = vmatpush1.bf16.msra.mxu0 %v3414
    %3696 = vmatprep.subr.bf16.mxu0 0
    %3697 = vmatpush1.bf16.msra.mxu0 %v3411
    %3698 = vmatprep.subr.bf16.mxu0 0
    %3699 = vmatpush1.bf16.msra.mxu0 %v3408
    %3700 = vmatprep.subr.bf16.mxu0 0
    %3701 = vmatpush1.bf16.msra.mxu0 %v3405
    %3702 = vmatprep.subr.bf16.mxu0 0
    %3703 = vmatpush1.bf16.msra.mxu0 %v3402
    %3704 = vmatprep.subr.bf16.mxu0 0
    %3705 = vmatpush1.bf16.msra.mxu0 %v3399
    %3706 = vmatprep.subr.bf16.mxu0 0
    %3707 = vmatpush1.bf16.msra.mxu0 %v3396
    %3708 = vmatprep.subr.bf16.mxu0 0
    %3709 = vmatpush1.bf16.msra.mxu0 %v3393
    %3710 = vmatprep.subr.bf16.mxu0 0
    %3711 = vmatpush2.bf16.msra.mxu0 0
    %3712 = vmatprep.subr.bf16.mxu0 0
    %3713 = vmatpush2.bf16.msra.mxu0 0
    %3714 = vmatprep.subr.bf16.mxu0 0
    %3715 = vmatpush2.bf16.msra.mxu0 0
    %3716 = vmatprep.subr.bf16.mxu0 0
    %3717 = vmatpush2.bf16.msra.mxu0 0
    %3718 = vmatprep.subr.bf16.mxu0 0
    %3719 = vmatpush2.bf16.msra.mxu0 0
    %3720 = vmatprep.subr.bf16.mxu0 0
    %3721 = vmatpush2.bf16.msra.mxu0 0
    %3722 = vmatprep.subr.bf16.mxu0 0
    %3723 = vmatpush2.bf16.msra.mxu0 0
    %3724 = vmatprep.subr.bf16.mxu0 0
    %3725 = vmatpush2.bf16.msra.mxu0 0
    %3726 = vmatprep.mubr.bf16.mxu0 0
    %3727 = vmatmul.mubr.bf16.gmra.mxu0 %v3652
    %v3728 = vpop.f32.mrf.mxu0
    %v3729 = vadd.f32 0.0, %v3728
    %v3730 = vpop.f32.mrf.mxu0
    %v3731 = vpop.f32.mrf.mxu0
    %v3732 = vpop.f32.mrf.mxu0
    %3733 = vdwg.mxu0
    %v3734 = vadd.f32 %v3649, %v3688
    %v3735 = vxor.u32 %v3734, 2147483648
    %v3736 = vmul.f32 %v3735, 1.442695
    %v3737 = vpow.pop %v3736
    %v3738 = vadd.f32 %v3737, 1.0
    %v3739 = vrcp.pop %v3738
    %v3740 = vmul.f32 1.0, %v3739
    %v3741 = vadd.f32 %v3650, %v3690
    %v3742 = vxor.u32 %v3741, 2147483648
    %v3743 = vmul.f32 %v3742, 1.442695
    %v3744 = vpow.pop %v3743
    %v3745 = vadd.f32 %v3744, 1.0
    %v3746 = vrcp.pop %v3745
    %v3747 = vmul.f32 1.0, %v3746
    %v3748 = vadd.f32 %v3729, %v2968
    %v3749 = vmul.f32 %v3740, %v3748
    %v3750 = vadd.f32 %v3651, %v3749
    %v3751 = vtanh.pop %v3750
    %v3752 = vsub.f32 1.0, %v3747
    %v3753 = vmul.f32 %v3752, %v3751
    %v3754 = vmul.f32 %v3747, %v3648
    %v3755 = vadd.f32 %v3753, %v3754
    %v3756 = vld [vmem:[%s918] sm:$0xff]
    %v3757 = vld [vmem:[%s918 + $0x8] sm:$0xff]
    %v3758 = vld [vmem:[%s918 + $0x10] sm:$0xff]
    %v3759 = vpack.c.bf16 %v3755, %v3755
    %3760 = vmatprep.subr.bf16.mxu0 %v3413
    %3761 = vmatpush1.bf16.msra.mxu0 %v3412
    %3762 = vmatprep.subr.bf16.mxu0 %v3410
    %3763 = vmatpush1.bf16.msra.mxu0 %v3409
    %3764 = vmatprep.subr.bf16.mxu0 %v3407
    %3765 = vmatpush1.bf16.msra.mxu0 %v3406
    %3766 = vmatprep.subr.bf16.mxu0 %v3404
    %3767 = vmatpush1.bf16.msra.mxu0 %v3403
    %3768 = vmatprep.subr.bf16.mxu0 %v3401
    %3769 = vmatpush1.bf16.msra.mxu0 %v3400
    %3770 = vmatprep.subr.bf16.mxu0 %v3398
    %3771 = vmatpush1.bf16.msra.mxu0 %v3397
    %3772 = vmatprep.subr.bf16.mxu0 %v3395
    %3773 = vmatpush1.bf16.msra.mxu0 %v3394
    %3774 = vmatprep.subr.bf16.mxu0 %v3392
    %3775 = vmatpush1.bf16.msra.mxu0 %v3391
    %3776 = vmatprep.subr.bf16.mxu0 0
    %3777 = vmatpush2.bf16.msra.mxu0 0
    %3778 = vmatprep.subr.bf16.mxu0 0
    %3779 = vmatpush2.bf16.msra.mxu0 0
    %3780 = vmatprep.subr.bf16.mxu0 0
    %3781 = vmatpush2.bf16.msra.mxu0 0
    %3782 = vmatprep.subr.bf16.mxu0 0
    %3783 = vmatpush2.bf16.msra.mxu0 0
    %3784 = vmatprep.subr.bf16.mxu0 0
    %3785 = vmatpush2.bf16.msra.mxu0 0
    %3786 = vmatprep.subr.bf16.mxu0 0
    %3787 = vmatpush2.bf16.msra.mxu0 0
    %3788 = vmatprep.subr.bf16.mxu0 0
    %3789 = vmatpush2.bf16.msra.mxu0 0
    %3790 = vmatprep.subr.bf16.mxu0 0
    %3791 = vmatpush2.bf16.msra.mxu0 0
    %3792 = vmatprep.mubr.bf16.mxu0 0
    %3793 = vmatmul.mubr.bf16.gmra.mxu0 %v3759
    %v3794 = vpop.f32.mrf.mxu0
    %v3795 = vadd.f32 0.0, %v3794
    %v3796 = vpop.f32.mrf.mxu0
    %v3797 = vadd.f32 0.0, %v3796
    %v3798 = vpop.f32.mrf.mxu0
    %v3799 = vpop.f32.mrf.mxu0
    %3800 = vdwg.mxu0
    %3801 = vmatprep.subr.bf16.mxu0 0
    %3802 = vmatpush1.bf16.msra.mxu0 %v3414
    %3803 = vmatprep.subr.bf16.mxu0 0
    %3804 = vmatpush1.bf16.msra.mxu0 %v3411
    %3805 = vmatprep.subr.bf16.mxu0 0
    %3806 = vmatpush1.bf16.msra.mxu0 %v3408
    %3807 = vmatprep.subr.bf16.mxu0 0
    %3808 = vmatpush1.bf16.msra.mxu0 %v3405
    %3809 = vmatprep.subr.bf16.mxu0 0
    %3810 = vmatpush1.bf16.msra.mxu0 %v3402
    %3811 = vmatprep.subr.bf16.mxu0 0
    %3812 = vmatpush1.bf16.msra.mxu0 %v3399
    %3813 = vmatprep.subr.bf16.mxu0 0
    %3814 = vmatpush1.bf16.msra.mxu0 %v3396
    %3815 = vmatprep.subr.bf16.mxu0 0
    %3816 = vmatpush1.bf16.msra.mxu0 %v3393
    %3817 = vmatprep.subr.bf16.mxu0 0
    %3818 = vmatpush2.bf16.msra.mxu0 0
    %3819 = vmatprep.subr.bf16.mxu0 0
    %3820 = vmatpush2.bf16.msra.mxu0 0
    %3821 = vmatprep.subr.bf16.mxu0 0
    %3822 = vmatpush2.bf16.msra.mxu0 0
    %3823 = vmatprep.subr.bf16.mxu0 0
    %3824 = vmatpush2.bf16.msra.mxu0 0
    %3825 = vmatprep.subr.bf16.mxu0 0
    %3826 = vmatpush2.bf16.msra.mxu0 0
    %3827 = vmatprep.subr.bf16.mxu0 0
    %3828 = vmatpush2.bf16.msra.mxu0 0
    %3829 = vmatprep.subr.bf16.mxu0 0
    %3830 = vmatpush2.bf16.msra.mxu0 0
    %3831 = vmatprep.subr.bf16.mxu0 0
    %3832 = vmatpush2.bf16.msra.mxu0 0
    %3833 = vmatprep.mubr.bf16.mxu0 0
    %3834 = vmatmul.mubr.bf16.gmra.mxu0 %v3759
    %v3835 = vpop.f32.mrf.mxu0
    %v3836 = vadd.f32 0.0, %v3835
    %v3837 = vpop.f32.mrf.mxu0
    %v3838 = vpop.f32.mrf.mxu0
    %v3839 = vpop.f32.mrf.mxu0
    %3840 = vdwg.mxu0
    %v3841 = vadd.f32 %v3756, %v3795
    %v3842 = vxor.u32 %v3841, 2147483648
    %v3843 = vmul.f32 %v3842, 1.442695
    %v3844 = vpow.pop %v3843
    %v3845 = vadd.f32 %v3844, 1.0
    %v3846 = vrcp.pop %v3845
    %v3847 = vmul.f32 1.0, %v3846
    %v3848 = vadd.f32 %v3757, %v3797
    %v3849 = vxor.u32 %v3848, 2147483648
    %v3850 = vmul.f32 %v3849, 1.442695
    %v3851 = vpow.pop %v3850
    %v3852 = vadd.f32 %v3851, 1.0
    %v3853 = vrcp.pop %v3852
    %v3854 = vmul.f32 1.0, %v3853
    %v3855 = vadd.f32 %v3836, %v2968
    %v3856 = vmul.f32 %v3847, %v3855
    %v3857 = vadd.f32 %v3758, %v3856
    %v3858 = vtanh.pop %v3857
    %v3859 = vsub.f32 1.0, %v3854
    %v3860 = vmul.f32 %v3859, %v3858
    %v3861 = vmul.f32 %v3854, %v3755
    %v3862 = vadd.f32 %v3860, %v3861
    %v3863 = vld [vmem:[%s1034] sm:$0xff]
    %v3864 = vld [vmem:[%s1034 + $0x8] sm:$0xff]
    %v3865 = vld [vmem:[%s1034 + $0x10] sm:$0xff]
    %v3866 = vpack.c.bf16 %v3862, %v3862
    %3867 = vmatprep.subr.bf16.mxu0 %v3413
    %3868 = vmatpush1.bf16.msra.mxu0 %v3412
    %3869 = vmatprep.subr.bf16.mxu0 %v3410
    %3870 = vmatpush1.bf16.msra.mxu0 %v3409
    %3871 = vmatprep.subr.bf16.mxu0 %v3407
    %3872 = vmatpush1.bf16.msra.mxu0 %v3406
    %3873 = vmatprep.subr.bf16.mxu0 %v3404
    %3874 = vmatpush1.bf16.msra.mxu0 %v3403
    %3875 = vmatprep.subr.bf16.mxu0 %v3401
    %3876 = vmatpush1.bf16.msra.mxu0 %v3400
    %3877 = vmatprep.subr.bf16.mxu0 %v3398
    %3878 = vmatpush1.bf16.msra.mxu0 %v3397
    %3879 = vmatprep.subr.bf16.mxu0 %v3395
    %3880 = vmatpush1.bf16.msra.mxu0 %v3394
    %3881 = vmatprep.subr.bf16.mxu0 %v3392
    %3882 = vmatpush1.bf16.msra.mxu0 %v3391
    %3883 = vmatprep.subr.bf16.mxu0 0
    %3884 = vmatpush2.bf16.msra.mxu0 0
    %3885 = vmatprep.subr.bf16.mxu0 0
    %3886 = vmatpush2.bf16.msra.mxu0 0
    %3887 = vmatprep.subr.bf16.mxu0 0
    %3888 = vmatpush2.bf16.msra.mxu0 0
    %3889 = vmatprep.subr.bf16.mxu0 0
    %3890 = vmatpush2.bf16.msra.mxu0 0
    %3891 = vmatprep.subr.bf16.mxu0 0
    %3892 = vmatpush2.bf16.msra.mxu0 0
    %3893 = vmatprep.subr.bf16.mxu0 0
    %3894 = vmatpush2.bf16.msra.mxu0 0
    %3895 = vmatprep.subr.bf16.mxu0 0
    %3896 = vmatpush2.bf16.msra.mxu0 0
    %3897 = vmatprep.subr.bf16.mxu0 0
    %3898 = vmatpush2.bf16.msra.mxu0 0
    %3899 = vmatprep.mubr.bf16.mxu0 0
    %3900 = vmatmul.mubr.bf16.gmra.mxu0 %v3866
    %v3901 = vpop.f32.mrf.mxu0
    %v3902 = vadd.f32 0.0, %v3901
    %v3903 = vpop.f32.mrf.mxu0
    %v3904 = vadd.f32 0.0, %v3903
    %v3905 = vpop.f32.mrf.mxu0
    %v3906 = vpop.f32.mrf.mxu0
    %3907 = vdwg.mxu0
    %3908 = vmatprep.subr.bf16.mxu0 0
    %3909 = vmatpush1.bf16.msra.mxu0 %v3414
    %3910 = vmatprep.subr.bf16.mxu0 0
    %3911 = vmatpush1.bf16.msra.mxu0 %v3411
    %3912 = vmatprep.subr.bf16.mxu0 0
    %3913 = vmatpush1.bf16.msra.mxu0 %v3408
    %3914 = vmatprep.subr.bf16.mxu0 0
    %3915 = vmatpush1.bf16.msra.mxu0 %v3405
    %3916 = vmatprep.subr.bf16.mxu0 0
    %3917 = vmatpush1.bf16.msra.mxu0 %v3402
    %3918 = vmatprep.subr.bf16.mxu0 0
    %3919 = vmatpush1.bf16.msra.mxu0 %v3399
    %3920 = vmatprep.subr.bf16.mxu0 0
    %3921 = vmatpush1.bf16.msra.mxu0 %v3396
    %3922 = vmatprep.subr.bf16.mxu0 0
    %3923 = vmatpush1.bf16.msra.mxu0 %v3393
    %3924 = vmatprep.subr.bf16.mxu0 0
    %3925 = vmatpush2.bf16.msra.mxu0 0
    %3926 = vmatprep.subr.bf16.mxu0 0
    %3927 = vmatpush2.bf16.msra.mxu0 0
    %3928 = vmatprep.subr.bf16.mxu0 0
    %3929 = vmatpush2.bf16.msra.mxu0 0
    %3930 = vmatprep.subr.bf16.mxu0 0
    %3931 = vmatpush2.bf16.msra.mxu0 0
    %3932 = vmatprep.subr.bf16.mxu0 0
    %3933 = vmatpush2.bf16.msra.mxu0 0
    %3934 = vmatprep.subr.bf16.mxu0 0
    %3935 = vmatpush2.bf16.msra.mxu0 0
    %3936 = vmatprep.subr.bf16.mxu0 0
    %3937 = vmatpush2.bf16.msra.mxu0 0
    %3938 = vmatprep.subr.bf16.mxu0 0
    %3939 = vmatpush2.bf16.msra.mxu0 0
    %3940 = vmatprep.mubr.bf16.mxu0 0
    %3941 = vmatmul.mubr.bf16.gmra.mxu0 %v3866
    %v3942 = vpop.f32.mrf.mxu0
    %v3943 = vadd.f32 0.0, %v3942
    %v3944 = vpop.f32.mrf.mxu0
    %v3945 = vpop.f32.mrf.mxu0
    %v3946 = vpop.f32.mrf.mxu0
    %3947 = vdwg.mxu0
    %v3948 = vadd.f32 %v3863, %v3902
    %v3949 = vxor.u32 %v3948, 2147483648
    %v3950 = vmul.f32 %v3949, 1.442695
    %v3951 = vpow.pop %v3950
    %v3952 = vadd.f32 %v3951, 1.0
    %v3953 = vrcp.pop %v3952
    %v3954 = vmul.f32 1.0, %v3953
    %v3955 = vadd.f32 %v3864, %v3904
    %v3956 = vxor.u32 %v3955, 2147483648
    %v3957 = vmul.f32 %v3956, 1.442695
    %v3958 = vpow.pop %v3957
    %v3959 = vadd.f32 %v3958, 1.0
    %v3960 = vrcp.pop %v3959
    %v3961 = vmul.f32 1.0, %v3960
    %v3962 = vadd.f32 %v3943, %v2968
    %v3963 = vmul.f32 %v3954, %v3962
    %v3964 = vadd.f32 %v3865, %v3963
    %v3965 = vtanh.pop %v3964
    %v3966 = vsub.f32 1.0, %v3961
    %v3967 = vmul.f32 %v3966, %v3965
    %v3968 = vmul.f32 %v3961, %v3862
    %v3969 = vadd.f32 %v3967, %v3968
    %v3970 = vld [vmem:[%s1150] sm:$0xff]
    %v3971 = vld [vmem:[%s1150 + $0x8] sm:$0xff]
    %v3972 = vld [vmem:[%s1150 + $0x10] sm:$0xff]
    %v3973 = vpack.c.bf16 %v3969, %v3969
    %3974 = vmatprep.subr.bf16.mxu0 %v3413
    %3975 = vmatpush1.bf16.msra.mxu0 %v3412
    %3976 = vmatprep.subr.bf16.mxu0 %v3410
    %3977 = vmatpush1.bf16.msra.mxu0 %v3409
    %3978 = vmatprep.subr.bf16.mxu0 %v3407
    %3979 = vmatpush1.bf16.msra.mxu0 %v3406
    %3980 = vmatprep.subr.bf16.mxu0 %v3404
    %3981 = vmatpush1.bf16.msra.mxu0 %v3403
    %3982 = vmatprep.subr.bf16.mxu0 %v3401
    %3983 = vmatpush1.bf16.msra.mxu0 %v3400
    %3984 = vmatprep.subr.bf16.mxu0 %v3398
    %3985 = vmatpush1.bf16.msra.mxu0 %v3397
    %3986 = vmatprep.subr.bf16.mxu0 %v3395
    %3987 = vmatpush1.bf16.msra.mxu0 %v3394
    %3988 = vmatprep.subr.bf16.mxu0 %v3392
    %3989 = vmatpush1.bf16.msra.mxu0 %v3391
    %3990 = vmatprep.subr.bf16.mxu0 0
    %3991 = vmatpush2.bf16.msra.mxu0 0
    %3992 = vmatprep.subr.bf16.mxu0 0
    %3993 = vmatpush2.bf16.msra.mxu0 0
    %3994 = vmatprep.subr.bf16.mxu0 0
    %3995 = vmatpush2.bf16.msra.mxu0 0
    %3996 = vmatprep.subr.bf16.mxu0 0
    %3997 = vmatpush2.bf16.msra.mxu0 0
    %3998 = vmatprep.subr.bf16.mxu0 0
    %3999 = vmatpush2.bf16.msra.mxu0 0
    %4000 = vmatprep.subr.bf16.mxu0 0
    %4001 = vmatpush2.bf16.msra.mxu0 0
    %4002 = vmatprep.subr.bf16.mxu0 0
    %4003 = vmatpush2.bf16.msra.mxu0 0
    %4004 = vmatprep.subr.bf16.mxu0 0
    %4005 = vmatpush2.bf16.msra.mxu0 0
    %4006 = vmatprep.mubr.bf16.mxu0 0
    %4007 = vmatmul.mubr.bf16.gmra.mxu0 %v3973
    %v4008 = vpop.f32.mrf.mxu0
    %v4009 = vadd.f32 0.0, %v4008
    %v4010 = vpop.f32.mrf.mxu0
    %v4011 = vadd.f32 0.0, %v4010
    %v4012 = vpop.f32.mrf.mxu0
    %v4013 = vpop.f32.mrf.mxu0
    %4014 = vdwg.mxu0
    %4015 = vmatprep.subr.bf16.mxu0 0
    %4016 = vmatpush1.bf16.msra.mxu0 %v3414
    %4017 = vmatprep.subr.bf16.mxu0 0
    %4018 = vmatpush1.bf16.msra.mxu0 %v3411
    %4019 = vmatprep.subr.bf16.mxu0 0
    %4020 = vmatpush1.bf16.msra.mxu0 %v3408
    %4021 = vmatprep.subr.bf16.mxu0 0
    %4022 = vmatpush1.bf16.msra.mxu0 %v3405
    %4023 = vmatprep.subr.bf16.mxu0 0
    %4024 = vmatpush1.bf16.msra.mxu0 %v3402
    %4025 = vmatprep.subr.bf16.mxu0 0
    %4026 = vmatpush1.bf16.msra.mxu0 %v3399
    %4027 = vmatprep.subr.bf16.mxu0 0
    %4028 = vmatpush1.bf16.msra.mxu0 %v3396
    %4029 = vmatprep.subr.bf16.mxu0 0
    %4030 = vmatpush1.bf16.msra.mxu0 %v3393
    %4031 = vmatprep.subr.bf16.mxu0 0
    %4032 = vmatpush2.bf16.msra.mxu0 0
    %4033 = vmatprep.subr.bf16.mxu0 0
    %4034 = vmatpush2.bf16.msra.mxu0 0
    %4035 = vmatprep.subr.bf16.mxu0 0
    %4036 = vmatpush2.bf16.msra.mxu0 0
    %4037 = vmatprep.subr.bf16.mxu0 0
    %4038 = vmatpush2.bf16.msra.mxu0 0
    %4039 = vmatprep.subr.bf16.mxu0 0
    %4040 = vmatpush2.bf16.msra.mxu0 0
    %4041 = vmatprep.subr.bf16.mxu0 0
    %4042 = vmatpush2.bf16.msra.mxu0 0
    %4043 = vmatprep.subr.bf16.mxu0 0
    %4044 = vmatpush2.bf16.msra.mxu0 0
    %4045 = vmatprep.subr.bf16.mxu0 0
    %4046 = vmatpush2.bf16.msra.mxu0 0
    %4047 = vmatprep.mubr.bf16.mxu0 0
    %4048 = vmatmul.mubr.bf16.gmra.mxu0 %v3973
    %v4049 = vpop.f32.mrf.mxu0
    %v4050 = vadd.f32 0.0, %v4049
    %v4051 = vpop.f32.mrf.mxu0
    %v4052 = vpop.f32.mrf.mxu0
    %v4053 = vpop.f32.mrf.mxu0
    %4054 = vdwg.mxu0
    %v4055 = vadd.f32 %v3970, %v4009
    %v4056 = vxor.u32 %v4055, 2147483648
    %v4057 = vmul.f32 %v4056, 1.442695
    %v4058 = vpow.pop %v4057
    %v4059 = vadd.f32 %v4058, 1.0
    %v4060 = vrcp.pop %v4059
    %v4061 = vmul.f32 1.0, %v4060
    %v4062 = vadd.f32 %v3971, %v4011
    %v4063 = vxor.u32 %v4062, 2147483648
    %v4064 = vmul.f32 %v4063, 1.442695
    %v4065 = vpow.pop %v4064
    %v4066 = vadd.f32 %v4065, 1.0
    %v4067 = vrcp.pop %v4066
    %v4068 = vmul.f32 1.0, %v4067
    %v4069 = vadd.f32 %v4050, %v2968
    %v4070 = vmul.f32 %v4061, %v4069
    %v4071 = vadd.f32 %v3972, %v4070
    %v4072 = vtanh.pop %v4071
    %v4073 = vsub.f32 1.0, %v4068
    %v4074 = vmul.f32 %v4073, %v4072
    %v4075 = vmul.f32 %v4068, %v3969
    %v4076 = vadd.f32 %v4074, %v4075
    %v4077 = vld [vmem:[%s1266] sm:$0xff]
    %v4078 = vld [vmem:[%s1266 + $0x8] sm:$0xff]
    %v4079 = vld [vmem:[%s1266 + $0x10] sm:$0xff]
    %v4080 = vpack.c.bf16 %v4076, %v4076
    %4081 = vmatprep.subr.bf16.mxu0 %v3413
    %4082 = vmatpush1.bf16.msra.mxu0 %v3412
    %4083 = vmatprep.subr.bf16.mxu0 %v3410
    %4084 = vmatpush1.bf16.msra.mxu0 %v3409
    %4085 = vmatprep.subr.bf16.mxu0 %v3407
    %4086 = vmatpush1.bf16.msra.mxu0 %v3406
    %4087 = vmatprep.subr.bf16.mxu0 %v3404
    %4088 = vmatpush1.bf16.msra.mxu0 %v3403
    %4089 = vmatprep.subr.bf16.mxu0 %v3401
    %4090 = vmatpush1.bf16.msra.mxu0 %v3400
    %4091 = vmatprep.subr.bf16.mxu0 %v3398
    %4092 = vmatpush1.bf16.msra.mxu0 %v3397
    %4093 = vmatprep.subr.bf16.mxu0 %v3395
    %4094 = vmatpush1.bf16.msra.mxu0 %v3394
    %4095 = vmatprep.subr.bf16.mxu0 %v3392
    %4096 = vmatpush1.bf16.msra.mxu0 %v3391
    %4097 = vmatprep.subr.bf16.mxu0 0
    %4098 = vmatpush2.bf16.msra.mxu0 0
    %4099 = vmatprep.subr.bf16.mxu0 0
    %4100 = vmatpush2.bf16.msra.mxu0 0
    %4101 = vmatprep.subr.bf16.mxu0 0
    %4102 = vmatpush2.bf16.msra.mxu0 0
    %4103 = vmatprep.subr.bf16.mxu0 0
    %4104 = vmatpush2.bf16.msra.mxu0 0
    %4105 = vmatprep.subr.bf16.mxu0 0
    %4106 = vmatpush2.bf16.msra.mxu0 0
    %4107 = vmatprep.subr.bf16.mxu0 0
    %4108 = vmatpush2.bf16.msra.mxu0 0
    %4109 = vmatprep.subr.bf16.mxu0 0
    %4110 = vmatpush2.bf16.msra.mxu0 0
    %4111 = vmatprep.subr.bf16.mxu0 0
    %4112 = vmatpush2.bf16.msra.mxu0 0
    %4113 = vmatprep.mubr.bf16.mxu0 0
    %4114 = vmatmul.mubr.bf16.gmra.mxu0 %v4080
    %v4115 = vpop.f32.mrf.mxu0
    %v4116 = vadd.f32 0.0, %v4115
    %v4117 = vpop.f32.mrf.mxu0
    %v4118 = vadd.f32 0.0, %v4117
    %v4119 = vpop.f32.mrf.mxu0
    %v4120 = vpop.f32.mrf.mxu0
    %4121 = vdwg.mxu0
    %4122 = vmatprep.subr.bf16.mxu0 0
    %4123 = vmatpush1.bf16.msra.mxu0 %v3414
    %4124 = vmatprep.subr.bf16.mxu0 0
    %4125 = vmatpush1.bf16.msra.mxu0 %v3411
    %4126 = vmatprep.subr.bf16.mxu0 0
    %4127 = vmatpush1.bf16.msra.mxu0 %v3408
    %4128 = vmatprep.subr.bf16.mxu0 0
    %4129 = vmatpush1.bf16.msra.mxu0 %v3405
    %4130 = vmatprep.subr.bf16.mxu0 0
    %4131 = vmatpush1.bf16.msra.mxu0 %v3402
    %4132 = vmatprep.subr.bf16.mxu0 0
    %4133 = vmatpush1.bf16.msra.mxu0 %v3399
    %4134 = vmatprep.subr.bf16.mxu0 0
    %4135 = vmatpush1.bf16.msra.mxu0 %v3396
    %4136 = vmatprep.subr.bf16.mxu0 0
    %4137 = vmatpush1.bf16.msra.mxu0 %v3393
    %4138 = vmatprep.subr.bf16.mxu0 0
    %4139 = vmatpush2.bf16.msra.mxu0 0
    %4140 = vmatprep.subr.bf16.mxu0 0
    %4141 = vmatpush2.bf16.msra.mxu0 0
    %4142 = vmatprep.subr.bf16.mxu0 0
    %4143 = vmatpush2.bf16.msra.mxu0 0
    %4144 = vmatprep.subr.bf16.mxu0 0
    %4145 = vmatpush2.bf16.msra.mxu0 0
    %4146 = vmatprep.subr.bf16.mxu0 0
    %4147 = vmatpush2.bf16.msra.mxu0 0
    %4148 = vmatprep.subr.bf16.mxu0 0
    %4149 = vmatpush2.bf16.msra.mxu0 0
    %4150 = vmatprep.subr.bf16.mxu0 0
    %4151 = vmatpush2.bf16.msra.mxu0 0
    %4152 = vmatprep.subr.bf16.mxu0 0
    %4153 = vmatpush2.bf16.msra.mxu0 0
    %4154 = vmatprep.mubr.bf16.mxu0 0
    %4155 = vmatmul.mubr.bf16.gmra.mxu0 %v4080
    %v4156 = vpop.f32.mrf.mxu0
    %v4157 = vadd.f32 0.0, %v4156
    %v4158 = vpop.f32.mrf.mxu0
    %v4159 = vpop.f32.mrf.mxu0
    %v4160 = vpop.f32.mrf.mxu0
    %4161 = vdwg.mxu0
    %v4162 = vadd.f32 %v4077, %v4116
    %v4163 = vxor.u32 %v4162, 2147483648
    %v4164 = vmul.f32 %v4163, 1.442695
    %v4165 = vpow.pop %v4164
    %v4166 = vadd.f32 %v4165, 1.0
    %v4167 = vrcp.pop %v4166
    %v4168 = vmul.f32 1.0, %v4167
    %v4169 = vadd.f32 %v4078, %v4118
    %v4170 = vxor.u32 %v4169, 2147483648
    %v4171 = vmul.f32 %v4170, 1.442695
    %v4172 = vpow.pop %v4171
    %v4173 = vadd.f32 %v4172, 1.0
    %v4174 = vrcp.pop %v4173
    %v4175 = vmul.f32 1.0, %v4174
    %v4176 = vadd.f32 %v4157, %v2968
    %v4177 = vmul.f32 %v4168, %v4176
    %v4178 = vadd.f32 %v4079, %v4177
    %v4179 = vtanh.pop %v4178
    %v4180 = vsub.f32 1.0, %v4175
    %v4181 = vmul.f32 %v4180, %v4179
    %v4182 = vmul.f32 %v4175, %v4076
    %v4183 = vadd.f32 %v4181, %v4182
    %v4184 = vld [vmem:[%s1382] sm:$0xff]
    %v4185 = vld [vmem:[%s1382 + $0x8] sm:$0xff]
    %v4186 = vld [vmem:[%s1382 + $0x10] sm:$0xff]
    %v4187 = vpack.c.bf16 %v4183, %v4183
    %4188 = vmatprep.subr.bf16.mxu0 %v3413
    %4189 = vmatpush1.bf16.msra.mxu0 %v3412
    %4190 = vmatprep.subr.bf16.mxu0 %v3410
    %4191 = vmatpush1.bf16.msra.mxu0 %v3409
    %4192 = vmatprep.subr.bf16.mxu0 %v3407
    %4193 = vmatpush1.bf16.msra.mxu0 %v3406
    %4194 = vmatprep.subr.bf16.mxu0 %v3404
    %4195 = vmatpush1.bf16.msra.mxu0 %v3403
    %4196 = vmatprep.subr.bf16.mxu0 %v3401
    %4197 = vmatpush1.bf16.msra.mxu0 %v3400
    %4198 = vmatprep.subr.bf16.mxu0 %v3398
    %4199 = vmatpush1.bf16.msra.mxu0 %v3397
    %4200 = vmatprep.subr.bf16.mxu0 %v3395
    %4201 = vmatpush1.bf16.msra.mxu0 %v3394
    %4202 = vmatprep.subr.bf16.mxu0 %v3392
    %4203 = vmatpush1.bf16.msra.mxu0 %v3391
    %4204 = vmatprep.subr.bf16.mxu0 0
    %4205 = vmatpush2.bf16.msra.mxu0 0
    %4206 = vmatprep.subr.bf16.mxu0 0
    %4207 = vmatpush2.bf16.msra.mxu0 0
    %4208 = vmatprep.subr.bf16.mxu0 0
    %4209 = vmatpush2.bf16.msra.mxu0 0
    %4210 = vmatprep.subr.bf16.mxu0 0
    %4211 = vmatpush2.bf16.msra.mxu0 0
    %4212 = vmatprep.subr.bf16.mxu0 0
    %4213 = vmatpush2.bf16.msra.mxu0 0
    %4214 = vmatprep.subr.bf16.mxu0 0
    %4215 = vmatpush2.bf16.msra.mxu0 0
    %4216 = vmatprep.subr.bf16.mxu0 0
    %4217 = vmatpush2.bf16.msra.mxu0 0
    %4218 = vmatprep.subr.bf16.mxu0 0
    %4219 = vmatpush2.bf16.msra.mxu0 0
    %4220 = vmatprep.mubr.bf16.mxu0 0
    %4221 = vmatmul.mubr.bf16.gmra.mxu0 %v4187
    %v4222 = vpop.f32.mrf.mxu0
    %v4223 = vadd.f32 0.0, %v4222
    %v4224 = vpop.f32.mrf.mxu0
    %v4225 = vadd.f32 0.0, %v4224
    %v4226 = vpop.f32.mrf.mxu0
    %v4227 = vpop.f32.mrf.mxu0
    %4228 = vdwg.mxu0
    %4229 = vmatprep.subr.bf16.mxu0 0
    %4230 = vmatpush1.bf16.msra.mxu0 %v3414
    %4231 = vmatprep.subr.bf16.mxu0 0
    %4232 = vmatpush1.bf16.msra.mxu0 %v3411
    %4233 = vmatprep.subr.bf16.mxu0 0
    %4234 = vmatpush1.bf16.msra.mxu0 %v3408
    %4235 = vmatprep.subr.bf16.mxu0 0
    %4236 = vmatpush1.bf16.msra.mxu0 %v3405
    %4237 = vmatprep.subr.bf16.mxu0 0
    %4238 = vmatpush1.bf16.msra.mxu0 %v3402
    %4239 = vmatprep.subr.bf16.mxu0 0
    %4240 = vmatpush1.bf16.msra.mxu0 %v3399
    %4241 = vmatprep.subr.bf16.mxu0 0
    %4242 = vmatpush1.bf16.msra.mxu0 %v3396
    %4243 = vmatprep.subr.bf16.mxu0 0
    %4244 = vmatpush1.bf16.msra.mxu0 %v3393
    %4245 = vmatprep.subr.bf16.mxu0 0
    %4246 = vmatpush2.bf16.msra.mxu0 0
    %4247 = vmatprep.subr.bf16.mxu0 0
    %4248 = vmatpush2.bf16.msra.mxu0 0
    %4249 = vmatprep.subr.bf16.mxu0 0
    %4250 = vmatpush2.bf16.msra.mxu0 0
    %4251 = vmatprep.subr.bf16.mxu0 0
    %4252 = vmatpush2.bf16.msra.mxu0 0
    %4253 = vmatprep.subr.bf16.mxu0 0
    %4254 = vmatpush2.bf16.msra.mxu0 0
    %4255 = vmatprep.subr.bf16.mxu0 0
    %4256 = vmatpush2.bf16.msra.mxu0 0
    %4257 = vmatprep.subr.bf16.mxu0 0
    %4258 = vmatpush2.bf16.msra.mxu0 0
    %4259 = vmatprep.subr.bf16.mxu0 0
    %4260 = vmatpush2.bf16.msra.mxu0 0
    %4261 = vmatprep.mubr.bf16.mxu0 0
    %4262 = vmatmul.mubr.bf16.gmra.mxu0 %v4187
    %v4263 = vpop.f32.mrf.mxu0
    %v4264 = vadd.f32 0.0, %v4263
    %v4265 = vpop.f32.mrf.mxu0
    %v4266 = vpop.f32.mrf.mxu0
    %v4267 = vpop.f32.mrf.mxu0
    %4268 = vdwg.mxu0
    %v4269 = vadd.f32 %v4184, %v4223
    %v4270 = vxor.u32 %v4269, 2147483648
    %v4271 = vmul.f32 %v4270, 1.442695
    %v4272 = vpow.pop %v4271
    %v4273 = vadd.f32 %v4272, 1.0
    %v4274 = vrcp.pop %v4273
    %v4275 = vmul.f32 1.0, %v4274
    %v4276 = vadd.f32 %v4185, %v4225
    %v4277 = vxor.u32 %v4276, 2147483648
    %v4278 = vmul.f32 %v4277, 1.442695
    %v4279 = vpow.pop %v4278
    %v4280 = vadd.f32 %v4279, 1.0
    %v4281 = vrcp.pop %v4280
    %v4282 = vmul.f32 1.0, %v4281
    %v4283 = vadd.f32 %v4264, %v2968
    %v4284 = vmul.f32 %v4275, %v4283
    %v4285 = vadd.f32 %v4186, %v4284
    %v4286 = vtanh.pop %v4285
    %v4287 = vsub.f32 1.0, %v4282
    %v4288 = vmul.f32 %v4287, %v4286
    %v4289 = vmul.f32 %v4282, %v4183
    %v4290 = vadd.f32 %v4288, %v4289
    %v4291 = vld [vmem:[%s13] sm:$0xff]
    %v4292 = vld [vmem:[%s13 + $0x8] sm:$0xff]
    %v4293 = vld [vmem:[%s13 + $0x10] sm:$0xff]
    %v4294 = vld [vmem:[%s13 + $0x18] sm:$0xff]
    %v4295 = vld [vmem:[%s13 + $0x20] sm:$0xff]
    %v4296 = vld [vmem:[%s13 + $0x28] sm:$0xff]
    %v4297 = vld [vmem:[%s13 + $0x30] sm:$0xff]
    %v4298 = vld [vmem:[%s13 + $0x38] sm:$0xff]
    %v4299 = vld [vmem:[%s13 + $0x40] sm:$0xff]
    %v4300 = vld [vmem:[%s13 + $0x48] sm:$0xff]
    %v4301 = vld [vmem:[%s13 + $0x50] sm:$0xff]
    %v4302 = vld [vmem:[%s13 + $0x58] sm:$0xff]
    %v4303 = vld [vmem:[%s13 + $0x60] sm:$0xff]
    %v4304 = vld [vmem:[%s13 + $0x68] sm:$0xff]
    %v4305 = vld [vmem:[%s13 + $0x70] sm:$0xff]
    %v4306 = vld [vmem:[%s13 + $0x78] sm:$0xff]
    %v4307 = vld [vmem:[%s14] sm:$0x1]
    %v4309 = vlaneseq
    %v4310 = vshrl.u32 %v4309, 7
    %v4311 = vsub.s32 0, %v4310
    %v4312 = vrot.slane %v4307, %v4311
    %4314 = vmatprep.subr.mxu0 0.0
    %4315 = vmatpush1.msra.mxu0 %v4306
    %4316 = vmatprep.subr.mxu0 0.0
    %4317 = vmatpush1.msra.mxu0 %v4305
    %4318 = vmatprep.subr.mxu0 0.0
    %4319 = vmatpush1.msra.mxu0 %v4304
    %4320 = vmatprep.subr.mxu0 0.0
    %4321 = vmatpush1.msra.mxu0 %v4303
    %4322 = vmatprep.subr.mxu0 0.0
    %4323 = vmatpush1.msra.mxu0 %v4302
    %4324 = vmatprep.subr.mxu0 0.0
    %4325 = vmatpush1.msra.mxu0 %v4301
    %4326 = vmatprep.subr.mxu0 0.0
    %4327 = vmatpush1.msra.mxu0 %v4300
    %4328 = vmatprep.subr.mxu0 0.0
    %4329 = vmatpush1.msra.mxu0 %v4299
    %4330 = vmatprep.subr.mxu0 0.0
    %4331 = vmatpush1.msra.mxu0 %v4298
    %4332 = vmatprep.subr.mxu0 0.0
    %4333 = vmatpush1.msra.mxu0 %v4297
    %4334 = vmatprep.subr.mxu0 0.0
    %4335 = vmatpush1.msra.mxu0 %v4296
    %4336 = vmatprep.subr.mxu0 0.0
    %4337 = vmatpush1.msra.mxu0 %v4295
    %4338 = vmatprep.subr.mxu0 0.0
    %4339 = vmatpush1.msra.mxu0 %v4294
    %4340 = vmatprep.subr.mxu0 0.0
    %4341 = vmatpush1.msra.mxu0 %v4293
    %4342 = vmatprep.subr.mxu0 0.0
    %4343 = vmatpush1.msra.mxu0 %v4292
    %4344 = vmatprep.subr.mxu0 0.0
    %4345 = vmatpush1.msra.mxu0 %v4291
    %4346 = vmatprep.subr.mxu0 0.0
    %4347 = vmatpush2.msra.mxu0 0.0
    %4348 = vmatprep.subr.mxu0 0.0
    %4349 = vmatpush2.msra.mxu0 0.0
    %4350 = vmatprep.subr.mxu0 0.0
    %4351 = vmatpush2.msra.mxu0 0.0
    %4352 = vmatprep.subr.mxu0 0.0
    %4353 = vmatpush2.msra.mxu0 0.0
    %4354 = vmatprep.subr.mxu0 0.0
    %4355 = vmatpush2.msra.mxu0 0.0
    %4356 = vmatprep.subr.mxu0 0.0
    %4357 = vmatpush2.msra.mxu0 0.0
    %4358 = vmatprep.subr.mxu0 0.0
    %4359 = vmatpush2.msra.mxu0 0.0
    %4360 = vmatprep.subr.mxu0 0.0
    %4361 = vmatpush2.msra.mxu0 0.0
    %4362 = vmatprep.subr.mxu0 0.0
    %4363 = vmatpush2.msra.mxu0 0.0
    %4364 = vmatprep.subr.mxu0 0.0
    %4365 = vmatpush2.msra.mxu0 0.0
    %4366 = vmatprep.subr.mxu0 0.0
    %4367 = vmatpush2.msra.mxu0 0.0
    %4368 = vmatprep.subr.mxu0 0.0
    %4369 = vmatpush2.msra.mxu0 0.0
    %4370 = vmatprep.subr.mxu0 0.0
    %4371 = vmatpush2.msra.mxu0 0.0
    %4372 = vmatprep.subr.mxu0 0.0
    %4373 = vmatpush2.msra.mxu0 0.0
    %4374 = vmatprep.subr.mxu0 0.0
    %4375 = vmatpush2.msra.mxu0 0.0
    %4376 = vmatprep.subr.mxu0 0.0
    %4377 = vmatpush2.msra.mxu0 0.0
    %4378 = vmatprep.mubr.f32.mxu0 0.0
    %4379 = vmatmul.mubr.f32.gmra.mxu0 %v4290
    %v4380 = vpop.f32.mrf.mxu0
    %v4381 = vadd.f32 %v4312, %v4380
    %v4382 = vpop.f32.mrf.mxu0
    %4383 = vdwg.mxu0
    %vm4384 = vcmask 15360
    %4385 = vst.msk [vmem:[%s15] sm:$0xff] %vm4384, %v4381
    // Predicated region
    $region78: #{bpnet_forward.1} parent=1 // pred_check
      _
    $region79: #{bpnet_forward.1} parent=1 // pred_check_branch
      %4387 = sbr.rel (0) target = $region81
    $region80: #{bpnet_forward.1} parent=1 // pred_region
      _
    $region81: #{bpnet_forward.1} parent=1 // pred_fallthru
      _
    // Predicated region
    $region82: #{bpnet_forward.1} parent=1 // pred_check
      _
    $region83: #{bpnet_forward.1} parent=1 // pred_check_branch
      %4389 = sbr.rel (0) target = $region85
    $region84: #{bpnet_forward.1} parent=1 // pred_region
      _
    $region85: #{bpnet_forward.1} parent=1 // pred_fallthru
      _
    %4390 = vsyncpa [#allocation5], 1
    %4391 = vsyncpa [#allocation7], 1
    %4392 = vsyncpa [#allocation10], 1

</llo_original>
